<compile_context>
chip_gen: v6e
topology: v6e:2x2x1
jax: 0.10.0
libtpu: 0.0.40
codegen_flags: <defaults>
</compile_context>

<pallas_src>
import math
import functools

import jax
import jax.numpy as jnp
from jax import lax
from jax.experimental import pallas as pl
from jax.experimental.pallas import tpu as pltpu


def qkv_proj_kernel(x_ref, wq_ref, wk_ref, wv_ref, bq_ref, bk_ref, bv_ref,
                    q_ref, k_ref, v_ref):
    """Grid = (batch, token_tiles).  Hoisted in_proj, run once per token tile.

    x_ref    : (1, C, Tp) f32   activation tile in native NCS layout
    wq/wk/wv : (C, C)     bf16  (in, out) layout; 1/sqrt(C) already folded into wq
    bq/bv    : (1, C)     f32 ; bk : (C, 1) f32 (column vector for the (C, Tp) K layout)
    q_ref    : (1, Tp, C) bf16  token-major Q (pre-scaled)
    k_ref    : (1, C, Tp) bf16  channel-major K  -> scores = Q @ K is a plain matmul
    v_ref    : (1, Tp, C) bf16  token-major V    -> P @ V is a plain matmul
    """
    x = x_ref[0].astype(jnp.bfloat16)                                      # (C, Tp)
    q = lax.dot_general(x, wq_ref[...], (((0,), (0,)), ((), ())),
                        preferred_element_type=jnp.float32) + bq_ref[...]  # (Tp, C)
    q_ref[0] = q.astype(jnp.bfloat16)
    v = lax.dot_general(x, wv_ref[...], (((0,), (0,)), ((), ())),
                        preferred_element_type=jnp.float32) + bv_ref[...]  # (Tp, C)
    v_ref[0] = v.astype(jnp.bfloat16)
    k = lax.dot_general(wk_ref[...], x, (((0,), (0,)), ((), ())),
                        preferred_element_type=jnp.float32) + bk_ref[...]  # (C, Tp)
    k_ref[0] = k.astype(jnp.bfloat16)


def flash_attn_kernel(q_ref, k_ref, v_ref, xres_ref, wout_ref, bout_ref,
                      o_ref, m_scr, l_scr, acc_scr):
    """Grid = (batch, q_tiles, kv_tiles); kv is the innermost (reduction) axis.

    q_ref    : (1, Tq, C) bf16  pre-projected, pre-scaled Q (resident across kv steps)
    k_ref    : (1, C, Tk) bf16  pre-projected K tile (streamed per kv step)
    v_ref    : (1, Tk, C) bf16  pre-projected V tile (streamed per kv step)
    xres_ref : (1, C, Tq) f32   residual (original activation, NCS layout)
    wout     : (C, C)     bf16  out_proj weight, (in, out) layout
    bout     : (C, 1)     f32   out_proj bias (column vector for (C, Tq) broadcast)
    o_ref    : (1, C, Tq) f32   attention output + residual, NCS layout (lane-dense)
    scratch  : m/l (Tq, 1) f32 running max / denom, acc (Tq, C) f32 accumulator
    """
    ki = pl.program_id(2)
    nk = pl.num_programs(2)

    @pl.when(ki == 0)
    def _init():
        m_scr[...] = jnp.full(m_scr.shape, -jnp.inf, dtype=m_scr.dtype)
        l_scr[...] = jnp.zeros_like(l_scr)
        acc_scr[...] = jnp.zeros_like(acc_scr)

    # scores tile (Tq, Tk): plain matmul, contraction over C, no transposes.
    s = jnp.dot(q_ref[0], k_ref[0], preferred_element_type=jnp.float32)

    # Online softmax update (f32 stats).
    m_prev = m_scr[...]                                                    # (Tq, 1)
    m_new = jnp.maximum(m_prev, jnp.max(s, axis=-1, keepdims=True))
    alpha = jnp.exp(m_prev - m_new)
    p = jnp.exp(s - m_new)
    l_scr[...] = alpha * l_scr[...] + jnp.sum(p, axis=-1, keepdims=True)
    acc_scr[...] = alpha * acc_scr[...] + jnp.dot(
        p.astype(jnp.bfloat16), v_ref[0], preferred_element_type=jnp.float32)  # (Tq, C)
    m_scr[...] = m_new

    @pl.when(ki == nk - 1)
    def _finalize():
        # Exact divide: runs once per q tile, off the hot path (perf review).
        attn = (acc_scr[...] / l_scr[...]).astype(jnp.bfloat16)            # (Tq, C)
        # out_proj producing (C, Tq) directly: absorbs the (S,C)->(C,S) transpose;
        # this single transposed contraction is amortized over all kv steps.
        out = lax.dot_general(wout_ref[...], attn, (((0,), (1,)), ((), ())),
                              preferred_element_type=jnp.float32)          # (C, Tq)
        out = out + bout_ref[...]
        o_ref[0] = (out + xres_ref[0]).astype(o_ref.dtype)                 # + residual (f32)


def _pick_tile(s, requested, *, cap=512, keep_two_tiles=False):
    """Largest power-of-two tile <= cap that divides s (>=128 when possible).

    keep_two_tiles keeps S//tile >= 2 so the q-tile axis can shard across both v7x
    TensorCores even when N == 1 (megacore balance).
    """
    if requested is not None:
        assert s % requested == 0, "tile must divide the sequence length"
        return requested
    limit = cap
    if keep_two_tiles:
        limit = min(limit, max(s // 2, 128))
    for t in (1024, 512, 256, 128):
        if t <= limit and s % t == 0:
            return t
    return s


@functools.partial(jax.jit, static_argnames=("q_block", "kv_block"))
def vae_attention_block(x_nchw, w_in, b_in, w_out, b_out, *,
                        q_block=None, kv_block=None):
    """x_nchw: (N, C, H, W) float32.
    w_in: (C, 3C), b_in: (1, 3C), w_out: (C, C), b_out: (1, C) — (in, out) layout
    (pre-transposed relative to PyTorch nn.Linear's (out, in) weights)."""
    N, C, H, W = x_nchw.shape
    S = H * W
    Tq = _pick_tile(S, q_block, cap=512, keep_two_tiles=True)
    Tk = _pick_tile(S, kv_block, cap=512)
    Tp = Tk                                   # projection-stage token tile

    # NCHW -> (N, C, S): free reshape, no HBM transpose (kernels consume NCS directly).
    x_ncs = x_nchw.reshape(N, C, S)

    # Constant preprocessing: split fused in_proj, fold 1/sqrt(C) into the Q path,
    # cast weights to bf16 for the MXU.
    scale = 1.0 / math.sqrt(C)
    wq = (w_in[:, 0 * C:1 * C] * scale).astype(jnp.bfloat16)
    wk = w_in[:, 1 * C:2 * C].astype(jnp.bfloat16)
    wv = w_in[:, 2 * C:3 * C].astype(jnp.bfloat16)
    wo = w_out.astype(jnp.bfloat16)
    bq = (b_in[:, 0 * C:1 * C] * scale).astype(jnp.float32)                 # (1, C)
    bk = b_in[:, 1 * C:2 * C].astype(jnp.float32).reshape(C, 1)             # (C, 1)
    bv = b_in[:, 2 * C:3 * C].astype(jnp.float32)                           # (1, C)
    bo = b_out.astype(jnp.float32).reshape(C, 1)                            # (C, 1)

    # Above v5e's 16 MiB / v6e-v7x 32 MiB default scoped limits, below v7x's 64 MiB
    # physical VMEM.  Production-shape live set (C=512, Tq=Tk=512) is ~14 MiB.
    vmem_limit = 48 * 1024 * 1024

    # ---- Stage 1: hoisted QKV projection (once per token tile, not per (qi, ki)). ----
    q, k, v = pl.pallas_call(
        qkv_proj_kernel,
        out_shape=(jax.ShapeDtypeStruct((N, S, C), jnp.bfloat16),
                   jax.ShapeDtypeStruct((N, C, S), jnp.bfloat16),
                   jax.ShapeDtypeStruct((N, S, C), jnp.bfloat16)),
        grid_spec=pltpu.PrefetchScalarGridSpec(
            num_scalar_prefetch=0,
            grid=(N, S // Tp),
            in_specs=[
                pl.BlockSpec((1, C, Tp), lambda n, i: (n, 0, i)),   # x tile (NCS)
                pl.BlockSpec((C, C), lambda n, i: (0, 0)),          # Wq (scaled)
                pl.BlockSpec((C, C), lambda n, i: (0, 0)),          # Wk
                pl.BlockSpec((C, C), lambda n, i: (0, 0)),          # Wv
                pl.BlockSpec((1, C), lambda n, i: (0, 0)),          # bq (scaled)
                pl.BlockSpec((C, 1), lambda n, i: (0, 0)),          # bk (column)
                pl.BlockSpec((1, C), lambda n, i: (0, 0)),          # bv
            ],
            out_specs=[
                pl.BlockSpec((1, Tp, C), lambda n, i: (n, i, 0)),   # Q (N, S, C)
                pl.BlockSpec((1, C, Tp), lambda n, i: (n, 0, i)),   # K (N, C, S)
                pl.BlockSpec((1, Tp, C), lambda n, i: (n, i, 0)),   # V (N, S, C)
            ],
        ),
        compiler_params=pltpu.CompilerParams(
            dimension_semantics=("parallel", "parallel"),
            vmem_limit_bytes=vmem_limit),
    )(x_ncs, wq, wk, wv, bq, bk, bv)

    # ---- Stage 2: flash attention + out_proj + residual on pre-projected bf16 QKV. ----
    out_ncs = pl.pallas_call(
        flash_attn_kernel,
        out_shape=jax.ShapeDtypeStruct((N, C, S), x_nchw.dtype),
        grid_spec=pltpu.PrefetchScalarGridSpec(
            num_scalar_prefetch=0,
            grid=(N, S // Tq, S // Tk),
            in_specs=[
                pl.BlockSpec((1, Tq, C), lambda n, qi, ki: (n, qi, 0)),   # Q (resident)
                pl.BlockSpec((1, C, Tk), lambda n, qi, ki: (n, 0, ki)),   # K (streamed, bf16)
                pl.BlockSpec((1, Tk, C), lambda n, qi, ki: (n, ki, 0)),   # V (streamed, bf16)
                pl.BlockSpec((1, C, Tq), lambda n, qi, ki: (n, 0, qi)),   # residual (f32)
                pl.BlockSpec((C, C), lambda n, qi, ki: (0, 0)),           # Wout
                pl.BlockSpec((C, 1), lambda n, qi, ki: (0, 0)),           # bout
            ],
            out_specs=pl.BlockSpec((1, C, Tq), lambda n, qi, ki: (n, 0, qi)),
            scratch_shapes=[
                pltpu.VMEM((Tq, 1), jnp.float32),    # running max
                pltpu.VMEM((Tq, 1), jnp.float32),    # running denom
                pltpu.VMEM((Tq, C), jnp.float32),    # output accumulator
            ],
        ),
        compiler_params=pltpu.CompilerParams(
            dimension_semantics=("parallel", "parallel", "arbitrary"),
            vmem_limit_bytes=vmem_limit),
    )(q, k, v, x_ncs, wo, bo)

    # (N, C, S) -> NCHW: free reshape, no transpose.
    return out_ncs.reshape(N, C, H, W)


def _reference(x_nchw, w_in, b_in, w_out, b_out):
    """Pure-jnp f32 reference mirroring the PyTorch forward."""
    N, C, H, W = x_nchw.shape
    S = H * W
    x = jnp.transpose(x_nchw.reshape(N, C, S), (0, 2, 1))                 # (N, S, C)
    qkv = x @ w_in + b_in                                                 # (N, S, 3C)
    q, k, v = qkv[..., :C], qkv[..., C:2 * C], qkv[..., 2 * C:]
    scores = jnp.einsum("nsc,ntc->nst", q, k) / math.sqrt(C)
    p = jax.nn.softmax(scores, axis=-1)
    attn = jnp.einsum("nst,ntc->nsc", p, v)
    out = attn @ w_out + b_out
    out = out + x
    return jnp.transpose(out, (0, 2, 1)).reshape(N, C, H, W)


if __name__ == "__main__":
    # Small shapes consistent with SelfAttention(1, channels); S = H*W = 256.
    # GroupNorm(32, C) exists in __init__ but is unused in the given forward.
    N, C, H, W = 2, 32, 16, 16

    key = jax.random.PRNGKey(0)
    k1, k2, k3, k4, k5 = jax.random.split(key, 5)
    wscale = 0.02
    # nn.Linear shapes: in_proj (3C, C), out_proj (C, C); stored pre-transposed (in, out).
    w_in = jax.random.normal(k1, (C, 3 * C), jnp.float32) * wscale
    b_in = jax.random.normal(k2, (1, 3 * C), jnp.float32) * wscale
    w_out = jax.random.normal(k3, (C, C), jnp.float32) * wscale
    b_out = jax.random.normal(k4, (1, C), jnp.float32) * wscale

    x = jax.random.normal(k5, (N, C, H, W), jnp.float32)

    # q_block/kv_block = 128 so the test exercises multi-tile online-softmax accumulation
    # and multi-tile projection.
    out = jax.block_until_ready(
        vae_attention_block(x, w_in, b_in, w_out, b_out, q_block=128, kv_block=128))
    ref = jax.block_until_ready(_reference(x, w_in, b_in, w_out, b_out))

    assert out.shape == x.shape and out.dtype == x.dtype
    # bf16 MXU operands (intentional precision choice) -> small drift vs f32 reference.
    err = float(jnp.max(jnp.abs(out - ref)))
    assert jnp.allclose(out, ref, atol=2e-2, rtol=2e-2), err
    print("KERNEL_OK")
</pallas_src>

<mosaic_0001>
module attributes {stable_mosaic.version = 11 : i64} {
  func.func @qkv_proj_kernel(%arg0: i32, %arg1: i32, %arg2: memref<1x32x128xf32, #tpu.memory_space<vmem>>, %arg3: memref<32x32xbf16, #tpu.memory_space<vmem>>, %arg4: memref<32x32xbf16, #tpu.memory_space<vmem>>, %arg5: memref<32x32xbf16, #tpu.memory_space<vmem>>, %arg6: memref<1x32xf32, #tpu.memory_space<vmem>>, %arg7: memref<32x1xf32, #tpu.memory_space<vmem>>, %arg8: memref<1x32xf32, #tpu.memory_space<vmem>>, %arg9: memref<1x128x32xbf16, #tpu.memory_space<vmem>>, %arg10: memref<1x32x128xbf16, #tpu.memory_space<vmem>>, %arg11: memref<1x128x32xbf16, #tpu.memory_space<vmem>>) attributes {dimension_semantics = [#tpu.dimension_semantics<parallel>, #tpu.dimension_semantics<parallel>], iteration_bounds = array<i64: 2, 2>, scalar_prefetch = 0 : i64, scratch_operands = 0 : i64, tpu.core_type = #tpu.core_type<tc>, window_params = [{transform_indices = @transform_0, window_bounds = array<i64: 1, 32, 128>}, {pipeline_mode = #tpu.pipeline_mode<synchronous>, transform_indices = @transform_1, window_bounds = array<i64: 32, 32>}, {pipeline_mode = #tpu.pipeline_mode<synchronous>, transform_indices = @transform_2, window_bounds = array<i64: 32, 32>}, {pipeline_mode = #tpu.pipeline_mode<synchronous>, transform_indices = @transform_3, window_bounds = array<i64: 32, 32>}, {pipeline_mode = #tpu.pipeline_mode<synchronous>, transform_indices = @transform_4, window_bounds = array<i64: 1, 32>}, {pipeline_mode = #tpu.pipeline_mode<synchronous>, transform_indices = @transform_5, window_bounds = array<i64: 32, 1>}, {pipeline_mode = #tpu.pipeline_mode<synchronous>, transform_indices = @transform_6, window_bounds = array<i64: 1, 32>}, {transform_indices = @transform_7, window_bounds = array<i64: 1, 128, 32>}, {transform_indices = @transform_8, window_bounds = array<i64: 1, 32, 128>}, {transform_indices = @transform_9, window_bounds = array<i64: 1, 128, 32>}]} {
    %c0 = arith.constant 0 : index
    %c0_0 = arith.constant 0 : index
    %c0_1 = arith.constant 0 : index
    %0 = vector.load %arg2[%c0, %c0_0, %c0_1] : memref<1x32x128xf32, #tpu.memory_space<vmem>>, vector<1x32x128xf32>
    %1 = vector.shape_cast %0 : vector<1x32x128xf32> to vector<32x128xf32>
    %2 = arith.truncf %1 : vector<32x128xf32> to vector<32x128xbf16>
    %c0_2 = arith.constant 0 : index
    %c0_3 = arith.constant 0 : index
    %3 = vector.load %arg3[%c0_2, %c0_3] : memref<32x32xbf16, #tpu.memory_space<vmem>>, vector<32x32xbf16>
    %cst = arith.constant dense<0.000000e+00> : vector<128x32xf32>
    %4 = tpu.matmul %2, %3, %cst {dimension_numbers = #tpu.dot_dimension_numbers<[0], [0], [1], [1], [0, 1, 1, 1], [], []>} : vector<32x128xbf16>, vector<32x32xbf16>, vector<128x32xf32> -> vector<128x32xf32>
    %c0_4 = arith.constant 0 : index
    %c0_5 = arith.constant 0 : index
    %5 = vector.load %arg6[%c0_4, %c0_5] : memref<1x32xf32, #tpu.memory_space<vmem>>, vector<1x32xf32>
    %6 = vector.broadcast %5 : vector<1x32xf32> to vector<128x32xf32>
    %7 = arith.addf %4, %6 : vector<128x32xf32>
    %8 = arith.truncf %7 : vector<128x32xf32> to vector<128x32xbf16>
    %c0_6 = arith.constant 0 : index
    %c0_7 = arith.constant 0 : index
    %c0_8 = arith.constant 0 : index
    %9 = vector.load %arg9[%c0_6, %c0_7, %c0_8] : memref<1x128x32xbf16, #tpu.memory_space<vmem>>, vector<1x128x32xbf16>
    %10 = vector.shape_cast %9 : vector<1x128x32xbf16> to vector<128x32xbf16>
    %11 = vector.shape_cast %8 : vector<128x32xbf16> to vector<1x128x32xbf16>
    tpu.vector_store %arg9[%c0_6, %c0_7, %c0_8], %11 {strides = array<i32>} : memref<1x128x32xbf16, #tpu.memory_space<vmem>>, vector<1x128x32xbf16>,
    %c0_9 = arith.constant 0 : index
    %c0_10 = arith.constant 0 : index
    %12 = vector.load %arg5[%c0_9, %c0_10] : memref<32x32xbf16, #tpu.memory_space<vmem>>, vector<32x32xbf16>
    %cst_11 = arith.constant dense<0.000000e+00> : vector<128x32xf32>
    %13 = tpu.matmul %2, %12, %cst_11 {dimension_numbers = #tpu.dot_dimension_numbers<[0], [0], [1], [1], [0, 1, 1, 1], [], []>} : vector<32x128xbf16>, vector<32x32xbf16>, vector<128x32xf32> -> vector<128x32xf32>
    %c0_12 = arith.constant 0 : index
    %c0_13 = arith.constant 0 : index
    %14 = vector.load %arg8[%c0_12, %c0_13] : memref<1x32xf32, #tpu.memory_space<vmem>>, vector<1x32xf32>
    %15 = vector.broadcast %14 : vector<1x32xf32> to vector<128x32xf32>
    %16 = arith.addf %13, %15 : vector<128x32xf32>
    %17 = arith.truncf %16 : vector<128x32xf32> to vector<128x32xbf16>
    %c0_14 = arith.constant 0 : index
    %c0_15 = arith.constant 0 : index
    %c0_16 = arith.constant 0 : index
    %18 = vector.load %arg11[%c0_14, %c0_15, %c0_16] : memref<1x128x32xbf16, #tpu.memory_space<vmem>>, vector<1x128x32xbf16>
    %19 = vector.shape_cast %18 : vector<1x128x32xbf16> to vector<128x32xbf16>
    %20 = vector.shape_cast %17 : vector<128x32xbf16> to vector<1x128x32xbf16>
    tpu.vector_store %arg11[%c0_14, %c0_15, %c0_16], %20 {strides = array<i32>} : memref<1x128x32xbf16, #tpu.memory_space<vmem>>, vector<1x128x32xbf16>,
    %c0_17 = arith.constant 0 : index
    %c0_18 = arith.constant 0 : index
    %21 = vector.load %arg4[%c0_17, %c0_18] : memref<32x32xbf16, #tpu.memory_space<vmem>>, vector<32x32xbf16>
    %cst_19 = arith.constant dense<0.000000e+00> : vector<32x128xf32>
    %22 = tpu.matmul %21, %2, %cst_19 {dimension_numbers = #tpu.dot_dimension_numbers<[0], [0], [1], [1], [0, 1, 1, 1], [], []>} : vector<32x32xbf16>, vector<32x128xbf16>, vector<32x128xf32> -> vector<32x128xf32>
    %c0_20 = arith.constant 0 : index
    %c0_21 = arith.constant 0 : index
    %23 = vector.load %arg7[%c0_20, %c0_21] : memref<32x1xf32, #tpu.memory_space<vmem>>, vector<32x1xf32>
    %24 = vector.broadcast %23 : vector<32x1xf32> to vector<32x128xf32>
    %25 = arith.addf %22, %24 : vector<32x128xf32>
    %26 = arith.truncf %25 : vector<32x128xf32> to vector<32x128xbf16>
    %c0_22 = arith.constant 0 : index
    %c0_23 = arith.constant 0 : index
    %c0_24 = arith.constant 0 : index
    %27 = vector.load %arg10[%c0_22, %c0_23, %c0_24] : memref<1x32x128xbf16, #tpu.memory_space<vmem>>, vector<1x32x128xbf16>
    %28 = vector.shape_cast %27 : vector<1x32x128xbf16> to vector<32x128xbf16>
    %29 = vector.shape_cast %26 : vector<32x128xbf16> to vector<1x32x128xbf16>
    tpu.vector_store %arg10[%c0_22, %c0_23, %c0_24], %29 {strides = array<i32>} : memref<1x32x128xbf16, #tpu.memory_space<vmem>>, vector<1x32x128xbf16>,
    return
  }
  func.func @transform_0(%arg0: i32, %arg1: i32) -> (i32, i32, i32) {
    %c0_i32 = arith.constant 0 : i32
    %c0_i32_0 = arith.constant 0 : i32
    return %arg0, %c0_i32, %arg1 : i32, i32, i32
  }
  func.func @transform_1(%arg0: i32, %arg1: i32) -> (i32, i32) {
    %c0_i32 = arith.constant 0 : i32
    %c0_i32_0 = arith.constant 0 : i32
    %c0_i32_1 = arith.constant 0 : i32
    return %c0_i32, %c0_i32_0 : i32, i32
  }
  func.func @transform_2(%arg0: i32, %arg1: i32) -> (i32, i32) {
    %c0_i32 = arith.constant 0 : i32
    %c0_i32_0 = arith.constant 0 : i32
    %c0_i32_1 = arith.constant 0 : i32
    return %c0_i32, %c0_i32_0 : i32, i32
  }
  func.func @transform_3(%arg0: i32, %arg1: i32) -> (i32, i32) {
    %c0_i32 = arith.constant 0 : i32
    %c0_i32_0 = arith.constant 0 : i32
    %c0_i32_1 = arith.constant 0 : i32
    return %c0_i32, %c0_i32_0 : i32, i32
  }
  func.func @transform_4(%arg0: i32, %arg1: i32) -> (i32, i32) {
    %c0_i32 = arith.constant 0 : i32
    %c0_i32_0 = arith.constant 0 : i32
    %c0_i32_1 = arith.constant 0 : i32
    return %c0_i32, %c0_i32_0 : i32, i32
  }
  func.func @transform_5(%arg0: i32, %arg1: i32) -> (i32, i32) {
    %c0_i32 = arith.constant 0 : i32
    %c0_i32_0 = arith.constant 0 : i32
    %c0_i32_1 = arith.constant 0 : i32
    return %c0_i32, %c0_i32_0 : i32, i32
  }
  func.func @transform_6(%arg0: i32, %arg1: i32) -> (i32, i32) {
    %c0_i32 = arith.constant 0 : i32
    %c0_i32_0 = arith.constant 0 : i32
    %c0_i32_1 = arith.constant 0 : i32
    return %c0_i32, %c0_i32_0 : i32, i32
  }
  func.func @transform_7(%arg0: i32, %arg1: i32) -> (i32, i32, i32) {
    %c0_i32 = arith.constant 0 : i32
    %c0_i32_0 = arith.constant 0 : i32
    return %arg0, %arg1, %c0_i32 : i32, i32, i32
  }
  func.func @transform_8(%arg0: i32, %arg1: i32) -> (i32, i32, i32) {
    %c0_i32 = arith.constant 0 : i32
    %c0_i32_0 = arith.constant 0 : i32
    return %arg0, %c0_i32, %arg1 : i32, i32, i32
  }
  func.func @transform_9(%arg0: i32, %arg1: i32) -> (i32, i32, i32) {
    %c0_i32 = arith.constant 0 : i32
    %c0_i32_0 = arith.constant 0 : i32
    return %arg0, %arg1, %c0_i32 : i32, i32, i32
  }
}

module attributes {stable_mosaic.version = 11 : i64} {
  func.func @flash_attn_kernel(%arg0: i32, %arg1: i32, %arg2: i32, %arg3: memref<1x128x32xbf16, #tpu.memory_space<vmem>>, %arg4: memref<1x32x128xbf16, #tpu.memory_space<vmem>>, %arg5: memref<1x128x32xbf16, #tpu.memory_space<vmem>>, %arg6: memref<1x32x128xf32, #tpu.memory_space<vmem>>, %arg7: memref<32x32xbf16, #tpu.memory_space<vmem>>, %arg8: memref<32x1xf32, #tpu.memory_space<vmem>>, %arg9: memref<1x32x128xf32, #tpu.memory_space<vmem>>, %arg10: memref<128x1xf32, #tpu.memory_space<vmem>>, %arg11: memref<128x1xf32, #tpu.memory_space<vmem>>, %arg12: memref<128x32xf32, #tpu.memory_space<vmem>>) attributes {dimension_semantics = [#tpu.dimension_semantics<parallel>, #tpu.dimension_semantics<parallel>, #tpu.dimension_semantics<arbitrary>], iteration_bounds = array<i64: 2, 2, 2>, scalar_prefetch = 0 : i64, scratch_operands = 3 : i64, tpu.core_type = #tpu.core_type<tc>, window_params = [{transform_indices = @transform_0, window_bounds = array<i64: 1, 128, 32>}, {transform_indices = @transform_1, window_bounds = array<i64: 1, 32, 128>}, {transform_indices = @transform_2, window_bounds = array<i64: 1, 128, 32>}, {transform_indices = @transform_3, window_bounds = array<i64: 1, 32, 128>}, {pipeline_mode = #tpu.pipeline_mode<synchronous>, transform_indices = @transform_4, window_bounds = array<i64: 32, 32>}, {pipeline_mode = #tpu.pipeline_mode<synchronous>, transform_indices = @transform_5, window_bounds = array<i64: 32, 1>}, {transform_indices = @transform_6, window_bounds = array<i64: 1, 32, 128>}]} {
    %c0_i32 = arith.constant 0 : i32
    %0 = arith.cmpi eq, %arg2, %c0_i32 : i32
    %1 = arith.extui %0 : i1 to i32
    %c0_i32_0 = arith.constant 0 : i32
    %2 = arith.cmpi ne, %1, %c0_i32_0 : i32
    scf.if %2 {
      %cst_25 = arith.constant 0xFF800000 : f32
      %36 = vector.broadcast %cst_25 : f32 to vector<128x1xf32>
      %c0_26 = arith.constant 0 : index
      %c0_27 = arith.constant 0 : index
      %37 = vector.load %arg10[%c0_26, %c0_27] : memref<128x1xf32, #tpu.memory_space<vmem>>, vector<128x1xf32>
      tpu.vector_store %arg10[%c0_26, %c0_27], %36 {strides = array<i32>} : memref<128x1xf32, #tpu.memory_space<vmem>>, vector<128x1xf32>,
      %cst_28 = arith.constant 0.000000e+00 : f32
      %38 = vector.broadcast %cst_28 : f32 to vector<128x1xf32>
      %c0_29 = arith.constant 0 : index
      %c0_30 = arith.constant 0 : index
      %39 = vector.load %arg11[%c0_29, %c0_30] : memref<128x1xf32, #tpu.memory_space<vmem>>, vector<128x1xf32>
      tpu.vector_store %arg11[%c0_29, %c0_30], %38 {strides = array<i32>} : memref<128x1xf32, #tpu.memory_space<vmem>>, vector<128x1xf32>,
      %cst_31 = arith.constant 0.000000e+00 : f32
      %40 = vector.broadcast %cst_31 : f32 to vector<128x32xf32>
      %c0_32 = arith.constant 0 : index
      %c0_33 = arith.constant 0 : index
      %41 = vector.load %arg12[%c0_32, %c0_33] : memref<128x32xf32, #tpu.memory_space<vmem>>, vector<128x32xf32>
      tpu.vector_store %arg12[%c0_32, %c0_33], %40 {strides = array<i32>} : memref<128x32xf32, #tpu.memory_space<vmem>>, vector<128x32xf32>,
    } else {
    }
    %c0 = arith.constant 0 : index
    %c0_1 = arith.constant 0 : index
    %c0_2 = arith.constant 0 : index
    %3 = vector.load %arg3[%c0, %c0_1, %c0_2] : memref<1x128x32xbf16, #tpu.memory_space<vmem>>, vector<1x128x32xbf16>
    %4 = vector.shape_cast %3 : vector<1x128x32xbf16> to vector<128x32xbf16>
    %c0_3 = arith.constant 0 : index
    %c0_4 = arith.constant 0 : index
    %c0_5 = arith.constant 0 : index
    %5 = vector.load %arg4[%c0_3, %c0_4, %c0_5] : memref<1x32x128xbf16, #tpu.memory_space<vmem>>, vector<1x32x128xbf16>
    %6 = vector.shape_cast %5 : vector<1x32x128xbf16> to vector<32x128xbf16>
    %cst = arith.constant dense<0.000000e+00> : vector<128x128xf32>
    %7 = tpu.matmul %4, %6, %cst {dimension_numbers = #tpu.dot_dimension_numbers<[1], [0], [0], [1], [0, 0, 1, 1], [], []>} : vector<128x32xbf16>, vector<32x128xbf16>, vector<128x128xf32> -> vector<128x128xf32>
    %c0_6 = arith.constant 0 : index
    %c0_7 = arith.constant 0 : index
    %8 = vector.load %arg10[%c0_6, %c0_7] : memref<128x1xf32, #tpu.memory_space<vmem>>, vector<128x1xf32>
    %cst_8 = arith.constant dense<0xFF800000> : vector<128xf32>
    %9 = vector.multi_reduction <maximumf>, %7, %cst_8 [1] : vector<128x128xf32> to vector<128xf32>
    %10 = vector.shape_cast %9 : vector<128xf32> to vector<128x1xf32>
    %11 = arith.maximumf %8, %10 : vector<128x1xf32>
    %12 = arith.subf %8, %11 : vector<128x1xf32>
    %13 = math.exp %12 : vector<128x1xf32>
    %14 = vector.broadcast %11 : vector<128x1xf32> to vector<128x128xf32>
    %15 = arith.subf %7, %14 : vector<128x128xf32>
    %16 = math.exp %15 : vector<128x128xf32>
    %c0_9 = arith.constant 0 : index
    %c0_10 = arith.constant 0 : index
    %17 = vector.load %arg11[%c0_9, %c0_10] : memref<128x1xf32, #tpu.memory_space<vmem>>, vector<128x1xf32>
    %18 = arith.mulf %13, %17 : vector<128x1xf32>
    %cst_11 = arith.constant dense<0.000000e+00> : vector<128xf32>
    %19 = vector.multi_reduction <add>, %16, %cst_11 [1] : vector<128x128xf32> to vector<128xf32>
    %20 = vector.shape_cast %19 : vector<128xf32> to vector<128x1xf32>
    %21 = arith.addf %18, %20 : vector<128x1xf32>
    %c0_12 = arith.constant 0 : index
    %c0_13 = arith.constant 0 : index
    %22 = vector.load %arg11[%c0_12, %c0_13] : memref<128x1xf32, #tpu.memory_space<vmem>>, vector<128x1xf32>
    tpu.vector_store %arg11[%c0_12, %c0_13], %21 {strides = array<i32>} : memref<128x1xf32, #tpu.memory_space<vmem>>, vector<128x1xf32>,
    %c0_14 = arith.constant 0 : index
    %c0_15 = arith.constant 0 : index
    %23 = vector.load %arg12[%c0_14, %c0_15] : memref<128x32xf32, #tpu.memory_space<vmem>>, vector<128x32xf32>
    %24 = vector.broadcast %13 : vector<128x1xf32> to vector<128x32xf32>
    %25 = arith.mulf %24, %23 : vector<128x32xf32>
    %26 = arith.truncf %16 : vector<128x128xf32> to vector<128x128xbf16>
    %c0_16 = arith.constant 0 : index
    %c0_17 = arith.constant 0 : index
    %c0_18 = arith.constant 0 : index
    %27 = vector.load %arg5[%c0_16, %c0_17, %c0_18] : memref<1x128x32xbf16, #tpu.memory_space<vmem>>, vector<1x128x32xbf16>
    %28 = vector.shape_cast %27 : vector<1x128x32xbf16> to vector<128x32xbf16>
    %cst_19 = arith.constant dense<0.000000e+00> : vector<128x32xf32>
    %29 = tpu.matmul %26, %28, %cst_19 {dimension_numbers = #tpu.dot_dimension_numbers<[1], [0], [0], [1], [0, 0, 1, 1], [], []>} : vector<128x128xbf16>, vector<128x32xbf16>, vector<128x32xf32> -> vector<128x32xf32>
    %30 = arith.addf %25, %29 : vector<128x32xf32>
    %c0_20 = arith.constant 0 : index
    %c0_21 = arith.constant 0 : index
    %31 = vector.load %arg12[%c0_20, %c0_21] : memref<128x32xf32, #tpu.memory_space<vmem>>, vector<128x32xf32>
    tpu.vector_store %arg12[%c0_20, %c0_21], %30 {strides = array<i32>} : memref<128x32xf32, #tpu.memory_space<vmem>>, vector<128x32xf32>,
    %c0_22 = arith.constant 0 : index
    %c0_23 = arith.constant 0 : index
    %32 = vector.load %arg10[%c0_22, %c0_23] : memref<128x1xf32, #tpu.memory_space<vmem>>, vector<128x1xf32>
    tpu.vector_store %arg10[%c0_22, %c0_23], %11 {strides = array<i32>} : memref<128x1xf32, #tpu.memory_space<vmem>>, vector<128x1xf32>,
    %c1_i32 = arith.constant 1 : i32
    %33 = arith.cmpi eq, %arg2, %c1_i32 : i32
    %34 = arith.extui %33 : i1 to i32
    %c0_i32_24 = arith.constant 0 : i32
    %35 = arith.cmpi ne, %34, %c0_i32_24 : i32
    scf.if %35 {
      %c0_25 = arith.constant 0 : index
      %c0_26 = arith.constant 0 : index
      %36 = vector.load %arg12[%c0_25, %c0_26] : memref<128x32xf32, #tpu.memory_space<vmem>>, vector<128x32xf32>
      %c0_27 = arith.constant 0 : index
      %c0_28 = arith.constant 0 : index
      %37 = vector.load %arg11[%c0_27, %c0_28] : memref<128x1xf32, #tpu.memory_space<vmem>>, vector<128x1xf32>
      %38 = vector.broadcast %37 : vector<128x1xf32> to vector<128x32xf32>
      %39 = arith.divf %36, %38 : vector<128x32xf32>
      %40 = arith.truncf %39 : vector<128x32xf32> to vector<128x32xbf16>
      %c0_29 = arith.constant 0 : index
      %c0_30 = arith.constant 0 : index
      %41 = vector.load %arg7[%c0_29, %c0_30] : memref<32x32xbf16, #tpu.memory_space<vmem>>, vector<32x32xbf16>
      %cst_31 = arith.constant dense<0.000000e+00> : vector<32x128xf32>
      %42 = tpu.matmul %41, %40, %cst_31 {dimension_numbers = #tpu.dot_dimension_numbers<[0], [1], [1], [0], [0, 1, 1, 0], [], []>} : vector<32x32xbf16>, vector<128x32xbf16>, vector<32x128xf32> -> vector<32x128xf32>
      %c0_32 = arith.constant 0 : index
      %c0_33 = arith.constant 0 : index
      %43 = vector.load %arg8[%c0_32, %c0_33] : memref<32x1xf32, #tpu.memory_space<vmem>>, vector<32x1xf32>
      %44 = vector.broadcast %43 : vector<32x1xf32> to vector<32x128xf32>
      %45 = arith.addf %42, %44 : vector<32x128xf32>
      %c0_34 = arith.constant 0 : index
      %c0_35 = arith.constant 0 : index
      %c0_36 = arith.constant 0 : index
      %46 = vector.load %arg6[%c0_34, %c0_35, %c0_36] : memref<1x32x128xf32, #tpu.memory_space<vmem>>, vector<1x32x128xf32>
      %47 = vector.shape_cast %46 : vector<1x32x128xf32> to vector<32x128xf32>
      %48 = arith.addf %45, %47 : vector<32x128xf32>
      %c0_37 = arith.constant 0 : index
      %c0_38 = arith.constant 0 : index
      %c0_39 = arith.constant 0 : index
      %49 = vector.load %arg9[%c0_37, %c0_38, %c0_39] : memref<1x32x128xf32, #tpu.memory_space<vmem>>, vector<1x32x128xf32>
      %50 = vector.shape_cast %49 : vector<1x32x128xf32> to vector<32x128xf32>
      %51 = vector.shape_cast %48 : vector<32x128xf32> to vector<1x32x128xf32>
      tpu.vector_store %arg9[%c0_37, %c0_38, %c0_39], %51 {strides = array<i32>} : memref<1x32x128xf32, #tpu.memory_space<vmem>>, vector<1x32x128xf32>,
    } else {
    }
    return
  }
  func.func @transform_0(%arg0: i32, %arg1: i32, %arg2: i32) -> (i32, i32, i32) {
    %c0_i32 = arith.constant 0 : i32
    %c0_i32_0 = arith.constant 0 : i32
    return %arg0, %arg1, %c0_i32 : i32, i32, i32
  }
  func.func @transform_1(%arg0: i32, %arg1: i32, %arg2: i32) -> (i32, i32, i32) {
    %c0_i32 = arith.constant 0 : i32
    %c0_i32_0 = arith.constant 0 : i32
    return %arg0, %c0_i32, %arg2 : i32, i32, i32
  }
  func.func @transform_2(%arg0: i32, %arg1: i32, %arg2: i32) -> (i32, i32, i32) {
    %c0_i32 = arith.constant 0 : i32
    %c0_i32_0 = arith.constant 0 : i32
    return %arg0, %arg2, %c0_i32 : i32, i32, i32
  }
  func.func @transform_3(%arg0: i32, %arg1: i32, %arg2: i32) -> (i32, i32, i32) {
    %c0_i32 = arith.constant 0 : i32
    %c0_i32_0 = arith.constant 0 : i32
    return %arg0, %c0_i32, %arg1 : i32, i32, i32
  }
  func.func @transform_4(%arg0: i32, %arg1: i32, %arg2: i32) -> (i32, i32) {
    %c0_i32 = arith.constant 0 : i32
    %c0_i32_0 = arith.constant 0 : i32
    %c0_i32_1 = arith.constant 0 : i32
    return %c0_i32, %c0_i32_0 : i32, i32
  }
  func.func @transform_5(%arg0: i32, %arg1: i32, %arg2: i32) -> (i32, i32) {
    %c0_i32 = arith.constant 0 : i32
    %c0_i32_0 = arith.constant 0 : i32
    %c0_i32_1 = arith.constant 0 : i32
    return %c0_i32, %c0_i32_0 : i32, i32
  }
  func.func @transform_6(%arg0: i32, %arg1: i32, %arg2: i32) -> (i32, i32, i32) {
    %c0_i32 = arith.constant 0 : i32
    %c0_i32_0 = arith.constant 0 : i32
    return %arg0, %c0_i32, %arg1 : i32, i32, i32
  }
}

</mosaic_0001>

<llo_original>
// kernel: vae_attention_block.2
$region0: #{vae_attention_block.2}
  #allocation0 [shape = 'u32[]', space=smem, size = 0x4, offset = 0x4, fixed_abs, tag = 'smem constant byte address 0x4 - core index']
  #allocation1 [shape = 'u32[144,128]{1,0:T(1,128)}', space=vmem, size = 0x12000, scoped, tag = 'internal scratch']
  %s0 = inlined_call_operand.vmem [shape: f32[2,32,256], index: 0, kind: input, shape index: {}]
  %s1 = inlined_call_operand.vmem [shape: bf16[32,32], index: 1, kind: input, shape index: {}]
  %s2 = inlined_call_operand.vmem [shape: bf16[32,32], index: 2, kind: input, shape index: {}]
  %s3 = inlined_call_operand.vmem [shape: bf16[32,32], index: 3, kind: input, shape index: {}]
  %s4 = inlined_call_operand.vmem [shape: f32[1,32], index: 4, kind: input, shape index: {}]
  %s5 = inlined_call_operand.vmem [shape: f32[32,1], index: 5, kind: input, shape index: {}]
  %s6 = inlined_call_operand.vmem [shape: f32[1,32], index: 6, kind: input, shape index: {}]
  %s7 = inlined_call_operand.vmem [shape: bf16[2,256,32], index: 7, kind: output, shape index: {0}]
  %s8 = inlined_call_operand.vmem [shape: bf16[2,32,256], index: 8, kind: output, shape index: {1}]
  %s9 = inlined_call_operand.vmem [shape: bf16[2,256,32], index: 9, kind: output, shape index: {2}]
  %10 = xla_tuple %s7, %s8, %s9
  %s11 = sld [smem:[#allocation0]]
  $region152: #{vae_attention_block.2} parent=0
    _
  %s13 = ssub.s32 1, %s11
  %s14 = scalar_select 0, %s13, %s11
  $region1: #{vae_attention_block.2} parent=0
    #allocation2 [shape = 'u8[32768]{0}', space=vmem, size = 0x8000, scoped, tag = 'input window, operand 0']
    #allocation3 [shape = 'u8[16384]{0}', space=vmem, size = 0x4000, scoped, tag = 'output window, operand 1']
    loop: start=0, step=1, limit=6
    $region2: #{vae_attention_block.2} parent=1 // loop_pre_header
      _
    $region3: #{vae_attention_block.2} parent=1 // loop_header
      %s16 = sphi 0, %s20
      %p17 = scmp.ge.s32.totalorder %s16, 6
      %s23 = sphi 0, %s35
      %s24 = sphi 0, %s31
      %s25 = sphi 0, %s23
      %s26 = sphi 0, %s24
      %s27 = sphi 0, %s25
      %s28 = sphi 0, %s26
      %s40 = sphi 0, %s42
      %s43 = sphi 0, %s40
      %s44 = sphi 0, %s43
      %s60 = sphi 0, %s44
      %s64 = sphi 0, %s64
      %s66 = sphi 0, %s64
      %s67 = sphi 0, %s66
      %s81 = sphi 0, %s67
      %s85 = sphi 0, %s85
      %s87 = sphi 0, %s85
      %s88 = sphi 0, %s87
      %s102 = sphi 0, %s88
      %s106 = sphi 0, %s106
      %s108 = sphi 0, %s106
      %s109 = sphi 0, %s108
      %s123 = sphi 0, %s109
      %s127 = sphi 0, %s127
      %s129 = sphi 0, %s127
      %s130 = sphi 0, %s129
      %s144 = sphi 0, %s130
      %s148 = sphi 0, %s148
      %s150 = sphi 0, %s148
      %s151 = sphi 0, %s150
      %s165 = sphi 0, %s151
      %s169 = sphi 0, %s169
      %s171 = sphi 0, %s169
      %s172 = sphi 0, %s171
      %s186 = sphi 0, %s172
      %s194 = sphi 0, %s196
      %s197 = sphi 0, %s194
      %s198 = sphi 0, %s197
      %s214 = sphi 0, %s198
      %s222 = sphi 0, %s224
      %s225 = sphi 0, %s222
      %s226 = sphi 0, %s225
      %s242 = sphi 0, %s226
      %s250 = sphi 0, %s252
      %s253 = sphi 0, %s250
      %s254 = sphi 0, %s253
      %s270 = sphi 0, %s254
    $region4: #{vae_attention_block.2} parent=1 // loop_header_branch
      %19 = sbr.rel (%p17) target = $region8
    $region5: #{vae_attention_block.2} parent=1 // loop_body
      %s21 = ssub.s32 %s16, 1
      %s22 = ssub.s32 %s16, 2
      %s29 = sadd.s32 1, %s24
      %p30 = scmp.ge.s32.totalorder %s29, 2
      %s31 = scalar_select %p30, 0, %s29
      %s32 = sadd.s32 1, %s23
      %s33 = scalar_select %p30, %s32, %s23
      %p34 = scmp.ge.s32.totalorder %s33, 2
      %s35 = scalar_select %p34, 0, %s33
      %s36 = ssub.s32 %s23, %s35
      %s37 = ssub.s32 %s24, %s31
      %s38 = sor.u32 %s36, %s37
      %p39 = scmp.eq.s32.totalorder %s38, 0
      %s41 = sadd.s32 %s40, 1
      %s42 = scalar_select %p39, %s40, %s41
      %p45 = pneg %p39
      %p46 = scmp.eq.s32.totalorder %s16, 3
      %p47 = por %p45, %p46
      %p48 = scmp.ne.s32.totalorder %s40, %s43
      %p49 = scmp.eq.s32.totalorder %s16, 0
      %p50 = por %p48, %p49
      %p51 = scmp.ne.s32.totalorder %s40, %s43
      %p52 = scmp.eq.s32.totalorder %s21, 3
      %p53 = por %p51, %p52
      %p54 = scmp.ne.s32.totalorder %s43, %s44
      %p55 = scmp.eq.s32.totalorder %s21, 0
      %p56 = por %p54, %p55
      %p57 = scmp.ne.s32.totalorder %s43, %s44
      %p58 = scmp.eq.s32.totalorder %s22, 3
      %p59 = por %p57, %p58
      %p61 = scmp.ne.s32.totalorder %s44, %s60
      %p62 = scmp.eq.s32.totalorder %s22, 0
      %p63 = por %p61, %p62
      %s65 = sadd.s32 %s64, 1
      %p68 = scmp.eq.s32.totalorder %s16, 3
      %p69 = scmp.ne.s32.totalorder %s64, %s66
      %p70 = scmp.eq.s32.totalorder %s16, 0
      %p71 = por %p69, %p70
      %p72 = scmp.ne.s32.totalorder %s64, %s66
      %p73 = scmp.eq.s32.totalorder %s21, 3
      %p74 = por %p72, %p73
      %p75 = scmp.ne.s32.totalorder %s66, %s67
      %p76 = scmp.eq.s32.totalorder %s21, 0
      %p77 = por %p75, %p76
      %p78 = scmp.ne.s32.totalorder %s66, %s67
      %p79 = scmp.eq.s32.totalorder %s22, 3
      %p80 = por %p78, %p79
      %p82 = scmp.ne.s32.totalorder %s67, %s81
      %p83 = scmp.eq.s32.totalorder %s22, 0
      %p84 = por %p82, %p83
      %s86 = sadd.s32 %s85, 1
      %p89 = scmp.eq.s32.totalorder %s16, 3
      %p90 = scmp.ne.s32.totalorder %s85, %s87
      %p91 = scmp.eq.s32.totalorder %s16, 0
      %p92 = por %p90, %p91
      %p93 = scmp.ne.s32.totalorder %s85, %s87
      %p94 = scmp.eq.s32.totalorder %s21, 3
      %p95 = por %p93, %p94
      %p96 = scmp.ne.s32.totalorder %s87, %s88
      %p97 = scmp.eq.s32.totalorder %s21, 0
      %p98 = por %p96, %p97
      %p99 = scmp.ne.s32.totalorder %s87, %s88
      %p100 = scmp.eq.s32.totalorder %s22, 3
      %p101 = por %p99, %p100
      %p103 = scmp.ne.s32.totalorder %s88, %s102
      %p104 = scmp.eq.s32.totalorder %s22, 0
      %p105 = por %p103, %p104
      %s107 = sadd.s32 %s106, 1
      %p110 = scmp.eq.s32.totalorder %s16, 3
      %p111 = scmp.ne.s32.totalorder %s106, %s108
      %p112 = scmp.eq.s32.totalorder %s16, 0
      %p113 = por %p111, %p112
      %p114 = scmp.ne.s32.totalorder %s106, %s108
      %p115 = scmp.eq.s32.totalorder %s21, 3
      %p116 = por %p114, %p115
      %p117 = scmp.ne.s32.totalorder %s108, %s109
      %p118 = scmp.eq.s32.totalorder %s21, 0
      %p119 = por %p117, %p118
      %p120 = scmp.ne.s32.totalorder %s108, %s109
      %p121 = scmp.eq.s32.totalorder %s22, 3
      %p122 = por %p120, %p121
      %p124 = scmp.ne.s32.totalorder %s109, %s123
      %p125 = scmp.eq.s32.totalorder %s22, 0
      %p126 = por %p124, %p125
      %s128 = sadd.s32 %s127, 1
      %p131 = scmp.eq.s32.totalorder %s16, 3
      %p132 = scmp.ne.s32.totalorder %s127, %s129
      %p133 = scmp.eq.s32.totalorder %s16, 0
      %p134 = por %p132, %p133
      %p135 = scmp.ne.s32.totalorder %s127, %s129
      %p136 = scmp.eq.s32.totalorder %s21, 3
      %p137 = por %p135, %p136
      %p138 = scmp.ne.s32.totalorder %s129, %s130
      %p139 = scmp.eq.s32.totalorder %s21, 0
      %p140 = por %p138, %p139
      %p141 = scmp.ne.s32.totalorder %s129, %s130
      %p142 = scmp.eq.s32.totalorder %s22, 3
      %p143 = por %p141, %p142
      %p145 = scmp.ne.s32.totalorder %s130, %s144
      %p146 = scmp.eq.s32.totalorder %s22, 0
      %p147 = por %p145, %p146
      %s149 = sadd.s32 %s148, 1
      %p152 = scmp.eq.s32.totalorder %s16, 3
      %p153 = scmp.ne.s32.totalorder %s148, %s150
      %p154 = scmp.eq.s32.totalorder %s16, 0
      %p155 = por %p153, %p154
      %p156 = scmp.ne.s32.totalorder %s148, %s150
      %p157 = scmp.eq.s32.totalorder %s21, 3
      %p158 = por %p156, %p157
      %p159 = scmp.ne.s32.totalorder %s150, %s151
      %p160 = scmp.eq.s32.totalorder %s21, 0
      %p161 = por %p159, %p160
      %p162 = scmp.ne.s32.totalorder %s150, %s151
      %p163 = scmp.eq.s32.totalorder %s22, 3
      %p164 = por %p162, %p163
      %p166 = scmp.ne.s32.totalorder %s151, %s165
      %p167 = scmp.eq.s32.totalorder %s22, 0
      %p168 = por %p166, %p167
      %s170 = sadd.s32 %s169, 1
      %p173 = scmp.eq.s32.totalorder %s16, 3
      %p174 = scmp.ne.s32.totalorder %s169, %s171
      %p175 = scmp.eq.s32.totalorder %s16, 0
      %p176 = por %p174, %p175
      %p177 = scmp.ne.s32.totalorder %s169, %s171
      %p178 = scmp.eq.s32.totalorder %s21, 3
      %p179 = por %p177, %p178
      %p180 = scmp.ne.s32.totalorder %s171, %s172
      %p181 = scmp.eq.s32.totalorder %s21, 0
      %p182 = por %p180, %p181
      %p183 = scmp.ne.s32.totalorder %s171, %s172
      %p184 = scmp.eq.s32.totalorder %s22, 3
      %p185 = por %p183, %p184
      %p187 = scmp.ne.s32.totalorder %s172, %s186
      %p188 = scmp.eq.s32.totalorder %s22, 0
      %p189 = por %p187, %p188
      %s190 = ssub.s32 %s23, %s35
      %s191 = ssub.s32 %s24, %s31
      %s192 = sor.u32 %s190, %s191
      %p193 = scmp.eq.s32.totalorder %s192, 0
      %s195 = sadd.s32 %s194, 1
      %s196 = scalar_select %p193, %s194, %s195
      %p199 = pneg %p193
      %p200 = scmp.eq.s32.totalorder %s16, 3
      %p201 = por %p199, %p200
      %p202 = scmp.ne.s32.totalorder %s194, %s197
      %p203 = scmp.eq.s32.totalorder %s16, 0
      %p204 = por %p202, %p203
      %p205 = scmp.ne.s32.totalorder %s194, %s197
      %p206 = scmp.eq.s32.totalorder %s21, 3
      %p207 = por %p205, %p206
      %p208 = scmp.ne.s32.totalorder %s197, %s198
      %p209 = scmp.eq.s32.totalorder %s21, 0
      %p210 = por %p208, %p209
      %p211 = scmp.ne.s32.totalorder %s197, %s198
      %p212 = scmp.eq.s32.totalorder %s22, 3
      %p213 = por %p211, %p212
      %p215 = scmp.ne.s32.totalorder %s198, %s214
      %p216 = scmp.eq.s32.totalorder %s22, 0
      %p217 = por %p215, %p216
      %s218 = ssub.s32 %s23, %s35
      %s219 = ssub.s32 %s24, %s31
      %s220 = sor.u32 %s218, %s219
      %p221 = scmp.eq.s32.totalorder %s220, 0
      %s223 = sadd.s32 %s222, 1
      %s224 = scalar_select %p221, %s222, %s223
      %p227 = pneg %p221
      %p228 = scmp.eq.s32.totalorder %s16, 3
      %p229 = por %p227, %p228
      %p230 = scmp.ne.s32.totalorder %s222, %s225
      %p231 = scmp.eq.s32.totalorder %s16, 0
      %p232 = por %p230, %p231
      %p233 = scmp.ne.s32.totalorder %s222, %s225
      %p234 = scmp.eq.s32.totalorder %s21, 3
      %p235 = por %p233, %p234
      %p236 = scmp.ne.s32.totalorder %s225, %s226
      %p237 = scmp.eq.s32.totalorder %s21, 0
      %p238 = por %p236, %p237
      %p239 = scmp.ne.s32.totalorder %s225, %s226
      %p240 = scmp.eq.s32.totalorder %s22, 3
      %p241 = por %p239, %p240
      %p243 = scmp.ne.s32.totalorder %s226, %s242
      %p244 = scmp.eq.s32.totalorder %s22, 0
      %p245 = por %p243, %p244
      %s246 = ssub.s32 %s23, %s35
      %s247 = ssub.s32 %s24, %s31
      %s248 = sor.u32 %s246, %s247
      %p249 = scmp.eq.s32.totalorder %s248, 0
      %s251 = sadd.s32 %s250, 1
      %s252 = scalar_select %p249, %s250, %s251
      %p255 = pneg %p249
      %p256 = scmp.eq.s32.totalorder %s16, 3
      %p257 = por %p255, %p256
      %p258 = scmp.ne.s32.totalorder %s250, %s253
      %p259 = scmp.eq.s32.totalorder %s16, 0
      %p260 = por %p258, %p259
      %p261 = scmp.ne.s32.totalorder %s250, %s253
      %p262 = scmp.eq.s32.totalorder %s21, 3
      %p263 = por %p261, %p262
      %p264 = scmp.ne.s32.totalorder %s253, %s254
      %p265 = scmp.eq.s32.totalorder %s21, 0
      %p266 = por %p264, %p265
      %p267 = scmp.ne.s32.totalorder %s253, %s254
      %p268 = scmp.eq.s32.totalorder %s22, 3
      %p269 = por %p267, %p268
      %p271 = scmp.ne.s32.totalorder %s254, %s270
      %p272 = scmp.eq.s32.totalorder %s22, 0
      %p273 = por %p271, %p272
      %p274 = scmp.le.s32.totalorder 1, %s16
      %p275 = scmp.lt.s32.totalorder %s16, 5
      %p276 = pnand %p274, %p275
      %p277 = pneg %p276
      // Predicated region
      $region9: #{vae_attention_block.2} parent=5 // pred_check
        _
      $region10: #{vae_attention_block.2} parent=5 // pred_check_branch
        %279 = sbr.rel (%p276) target = $region12
      $region11: #{vae_attention_block.2} parent=5 // pred_region
        %s280 = ssub.s32 %s16, 1
        // Predicated region
        $region13: #{vae_attention_block.2} parent=11 // pred_check
          %p281 = pneg %p77
        $region14: #{vae_attention_block.2} parent=11 // pred_check_branch
          %283 = sbr.rel (%p281) target = $region16
        $region15: #{vae_attention_block.2} parent=11 // pred_region
          _
        $region16: #{vae_attention_block.2} parent=11 // pred_fallthru
          _
        // Predicated region
        $region17: #{vae_attention_block.2} parent=11 // pred_check
          %p284 = pneg %p98
        $region18: #{vae_attention_block.2} parent=11 // pred_check_branch
          %286 = sbr.rel (%p284) target = $region20
        $region19: #{vae_attention_block.2} parent=11 // pred_region
          _
        $region20: #{vae_attention_block.2} parent=11 // pred_fallthru
          _
        // Predicated region
        $region21: #{vae_attention_block.2} parent=11 // pred_check
          %p287 = pneg %p119
        $region22: #{vae_attention_block.2} parent=11 // pred_check_branch
          %289 = sbr.rel (%p287) target = $region24
        $region23: #{vae_attention_block.2} parent=11 // pred_region
          _
        $region24: #{vae_attention_block.2} parent=11 // pred_fallthru
          _
        // Predicated region
        $region25: #{vae_attention_block.2} parent=11 // pred_check
          %p290 = pneg %p140
        $region26: #{vae_attention_block.2} parent=11 // pred_check_branch
          %292 = sbr.rel (%p290) target = $region28
        $region27: #{vae_attention_block.2} parent=11 // pred_region
          _
        $region28: #{vae_attention_block.2} parent=11 // pred_fallthru
          _
        // Predicated region
        $region29: #{vae_attention_block.2} parent=11 // pred_check
          %p293 = pneg %p161
        $region30: #{vae_attention_block.2} parent=11 // pred_check_branch
          %295 = sbr.rel (%p293) target = $region32
        $region31: #{vae_attention_block.2} parent=11 // pred_region
          _
        $region32: #{vae_attention_block.2} parent=11 // pred_fallthru
          _
        // Predicated region
        $region33: #{vae_attention_block.2} parent=11 // pred_check
          %p296 = pneg %p182
        $region34: #{vae_attention_block.2} parent=11 // pred_check_branch
          %298 = sbr.rel (%p296) target = $region36
        $region35: #{vae_attention_block.2} parent=11 // pred_region
          _
        $region36: #{vae_attention_block.2} parent=11 // pred_fallthru
          _
      $region12: #{vae_attention_block.2} parent=5 // pred_fallthru
        _
      %p299 = scmp.lt.s32.totalorder %s16, 4
      // Predicated region
      $region37: #{vae_attention_block.2} parent=5 // pred_check
        %p300 = pneg %p299
      $region38: #{vae_attention_block.2} parent=5 // pred_check_branch
        %302 = sbr.rel (%p300) target = $region40
      $region39: #{vae_attention_block.2} parent=5 // pred_region
        // Predicated region
        $region41: #{vae_attention_block.2} parent=39 // pred_check
          %p303 = pneg %p50
        $region42: #{vae_attention_block.2} parent=39 // pred_check_branch
          %305 = sbr.rel (%p303) target = $region44
        $region43: #{vae_attention_block.2} parent=39 // pred_region
          %s306 = sand.u32 %s40, 1
          %s307 = sand.u32 %s40, 1
          %s308 = smul.addr %s307, 32
          %s309 = scalar_lea.vmem [#allocation2], %s308
          %s310 = smul.addr %s23, 8
          %s311 = sadd.s32 %s24, %s310
          %s312 = smul.addr %s311, 8
          %s313 = scalar_lea.vmem %s0, %s312
          // Predicated region
          $region45: #{vae_attention_block.2} parent=43 // pred_check
            _
          $region46: #{vae_attention_block.2} parent=43 // pred_check_branch
            %315 = sbr.rel (0) target = $region48
          $region47: #{vae_attention_block.2} parent=43 // pred_region
            // Predicated region
            $region49: #{vae_attention_block.2} parent=47 // pred_check
              _
            $region50: #{vae_attention_block.2} parent=47 // pred_check_branch
              %317 = sbr.rel (0) target = $region52
            $region51: #{vae_attention_block.2} parent=47 // pred_region
              // Predicated region
              $region64: #{vae_attention_block.2} parent=51 // pred_check
                _
              $region65: #{vae_attention_block.2} parent=51 // pred_check_branch
                %339 = sbr.rel (0) target = $region67
              $region66: #{vae_attention_block.2} parent=51 // pred_region
                loop: start=0, step=1, limit=1
                $region68: #{vae_attention_block.2} parent=66 // loop_pre_header
                  _
                $region69: #{vae_attention_block.2} parent=66 // loop_header
                  %s341 = sphi 0, %s345
                  %p342 = scmp.ge.s32.totalorder %s341, 1
                  %s346 = sphi %s313, %s313
                  %s347 = sphi %s309, %s309
                $region70: #{vae_attention_block.2} parent=66 // loop_header_branch
                  %344 = sbr.rel (%p342) target = $region74
                $region71: #{vae_attention_block.2} parent=66 // loop_body
                  %v348 = vld [vmem:[%s346] sm:$0xff]
                  %349 = vst [vmem:[%s347] sm:$0xff] %v348
                  %v350 = vld [vmem:[%s346 + $0x10] sm:$0xff]
                  %351 = vst [vmem:[%s347 + $0x8] sm:$0xff] %v350
                  %v352 = vld [vmem:[%s346 + $0x20] sm:$0xff]
                  %353 = vst [vmem:[%s347 + $0x10] sm:$0xff] %v352
                  %v354 = vld [vmem:[%s346 + $0x30] sm:$0xff]
                  %355 = vst [vmem:[%s347 + $0x18] sm:$0xff] %v354
                $region72: #{vae_attention_block.2} parent=66 // loop_footer
                  %s345 = sadd.s32 1, %s341
                $region73: #{vae_attention_block.2} parent=66 // loop_footer_branch
                  %340 = sbr.rel target = $region69
                $region74: #{vae_attention_block.2} parent=66 // loop_exit
                  _
              $region67: #{vae_attention_block.2} parent=51 // pred_fallthru
                _
              // Predicated region
              $region75: #{vae_attention_block.2} parent=51 // pred_check
                _
              $region76: #{vae_attention_block.2} parent=51 // pred_check_branch
                %357 = sbr.rel target = $region78
              $region77: #{vae_attention_block.2} parent=51 // pred_region
                _
              $region78: #{vae_attention_block.2} parent=51 // pred_fallthru
                _
            $region52: #{vae_attention_block.2} parent=47 // pred_fallthru
              _
            // Predicated region
            $region53: #{vae_attention_block.2} parent=47 // pred_check
              _
            $region54: #{vae_attention_block.2} parent=47 // pred_check_branch
              %319 = sbr.rel target = $region56
            $region55: #{vae_attention_block.2} parent=47 // pred_region
              %s321 = ssub.s32 256, 1
              loop: start=0, step=1, limit=1
              $region57: #{vae_attention_block.2} parent=55 // loop_pre_header
                _
              $region58: #{vae_attention_block.2} parent=55 // loop_header
                %s323 = sphi 0, %s327
                %p324 = scmp.ge.s32.totalorder %s323, 1
                %s328 = sphi %s313, %s313
                %s329 = sphi %s309, %s309
              $region59: #{vae_attention_block.2} parent=55 // loop_header_branch
                %326 = sbr.rel (%p324) target = $region63
              $region60: #{vae_attention_block.2} parent=55 // loop_body
                %v330 = vld [vmem:[%s328] sm:%s321]
                %331 = vst [vmem:[%s329] sm:%s321] %v330
                %v332 = vld [vmem:[%s328 + $0x10] sm:%s321]
                %333 = vst [vmem:[%s329 + $0x8] sm:%s321] %v332
                %v334 = vld [vmem:[%s328 + $0x20] sm:%s321]
                %335 = vst [vmem:[%s329 + $0x10] sm:%s321] %v334
                %v336 = vld [vmem:[%s328 + $0x30] sm:%s321]
                %337 = vst [vmem:[%s329 + $0x18] sm:%s321] %v336
              $region61: #{vae_attention_block.2} parent=55 // loop_footer
                %s327 = sadd.s32 1, %s323
              $region62: #{vae_attention_block.2} parent=55 // loop_footer_branch
                %322 = sbr.rel target = $region58
              $region63: #{vae_attention_block.2} parent=55 // loop_exit
                _
            $region56: #{vae_attention_block.2} parent=47 // pred_fallthru
              _
          $region48: #{vae_attention_block.2} parent=43 // pred_fallthru
            _
          %358 = vnop
        $region44: #{vae_attention_block.2} parent=39 // pred_fallthru
          _
      $region40: #{vae_attention_block.2} parent=5 // pred_fallthru
        _
      %p359 = scmp.le.s32.totalorder 1, %s16
      %p360 = scmp.lt.s32.totalorder %s16, 5
      %p361 = pnand %p359, %p360
      %p362 = pneg %p361
      // Predicated region
      $region79: #{vae_attention_block.2} parent=5 // pred_check
        _
      $region80: #{vae_attention_block.2} parent=5 // pred_check_branch
        %364 = sbr.rel (%p361) target = $region82
      $region81: #{vae_attention_block.2} parent=5 // pred_region
        %s365 = ssub.s32 %s16, 1
        %s366 = sand.u32 %s43, 1
        %s367 = sand.u32 %s43, 1
        %s368 = smul.addr %s367, 32
        %s369 = scalar_lea.vmem [#allocation2], %s368
        // Predicated region
        $region83: #{vae_attention_block.2} parent=81 // pred_check
          %p370 = pneg %p56
        $region84: #{vae_attention_block.2} parent=81 // pred_check_branch
          %372 = sbr.rel (%p370) target = $region86
        $region85: #{vae_attention_block.2} parent=81 // pred_region
          _
        $region86: #{vae_attention_block.2} parent=81 // pred_fallthru
          _
        %s373 = sand.u32 %s43, 1
        %s374 = sand.u32 %s43, 1
        %s375 = smul.addr %s374, 32
        %s376 = scalar_lea.vmem [#allocation2], %s375
        %p377 = pneg %p56
        %p378 = pneg %p53
        %p379 = pneg %p77
        %p380 = pneg %p74
        %p381 = pneg %p98
        %p382 = pneg %p95
        %p383 = pneg %p119
        %p384 = pneg %p116
        %p385 = pneg %p140
        %p386 = pneg %p137
        %p387 = pneg %p161
        %p388 = pneg %p158
        %p389 = pneg %p182
        %p390 = pneg %p179
        %p391 = pneg %p210
        %p392 = pneg %p207
        %s393 = smul.u32 16, %s26
        %p394 = scmp.lt.s32.totalorder %s25, 1
        %s395 = scalar_select %p394, %s25, 1
        %p396 = scmp.lt.s32.totalorder %s393, 31
        %s397 = scalar_select %p396, %s393, 31
        %s398 = smul.addr %s395, 32
        %s399 = sadd.s32 %s397, %s398
        %s400 = smul.addr %s399, 4
        %s401 = scalar_lea.vmem %s7, %s400
        %p402 = pneg %p238
        %p403 = pneg %p235
        %s404 = sand.u32 %s225, 1
        %s405 = sand.u32 %s225, 1
        %s406 = smul.addr %s405, 16
        %s407 = scalar_lea.vmem [#allocation3], %s406
        %p408 = pneg %p266
        %p409 = pneg %p263
        %s410 = smul.u32 16, %s26
        %p411 = scmp.lt.s32.totalorder %s25, 1
        %s412 = scalar_select %p411, %s25, 1
        %p413 = scmp.lt.s32.totalorder %s410, 31
        %s414 = scalar_select %p413, %s410, 31
        %s415 = smul.addr %s412, 32
        %s416 = sadd.s32 %s414, %s415
        %s417 = smul.addr %s416, 4
        %s418 = scalar_lea.vmem %s9, %s417
        %s419 = smul.u32 16, %s26
        %p420 = scmp.lt.s32.totalorder %s25, 1
        %s421 = scalar_select %p420, %s25, 1
        %p422 = scmp.lt.s32.totalorder %s419, 31
        %s423 = scalar_select %p422, %s419, 31
        %s424 = smul.addr %s421, 32
        %s425 = sadd.s32 %s423, %s424
        %s426 = smul.addr %s425, 4
        %s427 = scalar_lea.vmem %s7, %s426
        %s428 = smul.u32 16, %s26
        %s429 = smul.u32 16, %s26
        %p430 = scmp.lt.s32.totalorder %s25, 1
        %s431 = scalar_select %p430, %s25, 1
        %p432 = scmp.lt.s32.totalorder %s429, 31
        %s433 = scalar_select %p432, %s429, 31
        %s434 = smul.addr %s431, 32
        %s435 = sadd.s32 %s433, %s434
        %s436 = smul.addr %s435, 4
        %s437 = scalar_lea.vmem %s9, %s436
        %s438 = smul.u32 16, %s26
        %v440 = vld [vmem:[%s369] sm:$0xff]
        %v441 = vld [vmem:[%s369 + $0x8] sm:$0xff]
        %v442 = vld [vmem:[%s369 + $0x10] sm:$0xff]
        %v443 = vld [vmem:[%s369 + $0x18] sm:$0xff]
        %v444 = vpack.c.bf16 %v441, %v440
        %v445 = vpack.c.bf16 %v443, %v442
        %v446 = vld [vmem:[%s1] sm:$0xf]
        %v447 = vld [vmem:[%s1 + $0x4] sm:$0xf]
        %v448 = vld [vmem:[%s1 + $0x8] sm:$0xf]
        %v449 = vld [vmem:[%s1 + $0xc] sm:$0xf]
        %v450 = vld [vmem:[%s4] sm:$0x1]
        %v452 = vlaneseq
        %v453 = vshrl.u32 %v452, 7
        %v454 = vsub.s32 0, %v453
        %v455 = vrot.slane %v450, %v454
        %457 = vxpose.xlu0.c.b16.start [1/8] %v444, 128
        %458 = vxpose.xlu0.c.b16.cont [2/8] %v445, 128
        %459 = vxpose.xlu0.c.b16.cont [3/8] 0, 128
        %460 = vxpose.xlu0.c.b16.cont [4/8] 0, 128
        %461 = vxpose.xlu0.c.b16.cont [5/8] 0, 128
        %462 = vxpose.xlu0.c.b16.cont [6/8] 0, 128
        %463 = vxpose.xlu0.c.b16.cont [7/8] 0, 128
        %464 = vxpose.xlu0.c.b16.end [8/8] 0, 128
        %v465 = vpop.trf.xlu0
        %v466 = vpop.trf.xlu0
        %v467 = vpop.trf.xlu0
        %v468 = vpop.trf.xlu0
        %v469 = vpop.trf.xlu0
        %v470 = vpop.trf.xlu0
        %v471 = vpop.trf.xlu0
        %v472 = vpop.trf.xlu0
        %v477 = vunpack.c.l.b16 %v446
        %v478 = vunpack.c.l.b16 %v447
        %v479 = vunpack.c.l.b16 %v448
        %v480 = vunpack.c.l.b16 %v449
        %v481 = vpack.c.b16 %v478, %v477
        %v482 = vpack.c.b16 %v480, %v479
        %vm485 = vcmask 261120
        %v487 = vsel %vm485, %v465, 0
        %v490 = vsel %vm485, %v466, 0
        %v493 = vsel %vm485, %v467, 0
        %v496 = vsel %vm485, %v468, 0
        %v499 = vsel %vm485, %v469, 0
        %v502 = vsel %vm485, %v470, 0
        %v505 = vsel %vm485, %v471, 0
        %v508 = vsel %vm485, %v472, 0
        %510 = vmatprep.subr.bf16.mxu0 0
        %511 = vmatpush1.bf16.msra.mxu0 0
        %512 = vmatprep.subr.bf16.mxu0 0
        %513 = vmatpush1.bf16.msra.mxu0 0
        %514 = vmatprep.subr.bf16.mxu0 0
        %515 = vmatpush1.bf16.msra.mxu0 0
        %516 = vmatprep.subr.bf16.mxu0 0
        %517 = vmatpush1.bf16.msra.mxu0 0
        %518 = vmatprep.subr.bf16.mxu0 0
        %519 = vmatpush1.bf16.msra.mxu0 0
        %520 = vmatprep.subr.bf16.mxu0 0
        %521 = vmatpush1.bf16.msra.mxu0 0
        %522 = vmatprep.subr.bf16.mxu0 0
        %523 = vmatpush1.bf16.msra.mxu0 %v482
        %524 = vmatprep.subr.bf16.mxu0 0
        %525 = vmatpush1.bf16.msra.mxu0 %v481
        %526 = vmatprep.subr.bf16.mxu0 0
        %527 = vmatpush2.bf16.msra.mxu0 0
        %528 = vmatprep.subr.bf16.mxu0 0
        %529 = vmatpush2.bf16.msra.mxu0 0
        %530 = vmatprep.subr.bf16.mxu0 0
        %531 = vmatpush2.bf16.msra.mxu0 0
        %532 = vmatprep.subr.bf16.mxu0 0
        %533 = vmatpush2.bf16.msra.mxu0 0
        %534 = vmatprep.subr.bf16.mxu0 0
        %535 = vmatpush2.bf16.msra.mxu0 0
        %536 = vmatprep.subr.bf16.mxu0 0
        %537 = vmatpush2.bf16.msra.mxu0 0
        %538 = vmatprep.subr.bf16.mxu0 0
        %539 = vmatpush2.bf16.msra.mxu0 0
        %540 = vmatprep.subr.bf16.mxu0 0
        %541 = vmatpush2.bf16.msra.mxu0 0
        %542 = vmatprep.mubr.bf16.mxu0 0
        %543 = vmatmul.mubr.bf16.gmra.mxu0 %v487
        %v544 = vpop.f32.mrf.mxu0
        %v545 = vadd.f32 %v455, %v544
        %v546 = vpop.f32.mrf.mxu0
        %v547 = vpop.f32.mrf.mxu0
        %v548 = vadd.f32 %v455, %v547
        %v549 = vpop.f32.mrf.mxu0
        %550 = vmatprep.mubr.bf16.mxu0 0
        %551 = vmatmul.mubr.bf16.gmra.mxu0 %v490
        %v552 = vpop.f32.mrf.mxu0
        %v553 = vadd.f32 %v455, %v552
        %v554 = vpop.f32.mrf.mxu0
        %v555 = vpop.f32.mrf.mxu0
        %v556 = vadd.f32 %v455, %v555
        %v557 = vpop.f32.mrf.mxu0
        %558 = vmatprep.mubr.bf16.mxu0 0
        %559 = vmatmul.mubr.bf16.gmra.mxu0 %v493
        %v560 = vpop.f32.mrf.mxu0
        %v561 = vadd.f32 %v455, %v560
        %v562 = vpop.f32.mrf.mxu0
        %v563 = vpop.f32.mrf.mxu0
        %v564 = vadd.f32 %v455, %v563
        %v565 = vpop.f32.mrf.mxu0
        %566 = vmatprep.mubr.bf16.mxu0 0
        %567 = vmatmul.mubr.bf16.gmra.mxu0 %v496
        %v568 = vpop.f32.mrf.mxu0
        %v569 = vadd.f32 %v455, %v568
        %v570 = vpop.f32.mrf.mxu0
        %v571 = vpop.f32.mrf.mxu0
        %v572 = vadd.f32 %v455, %v571
        %v573 = vpop.f32.mrf.mxu0
        %574 = vmatprep.mubr.bf16.mxu0 0
        %575 = vmatmul.mubr.bf16.gmra.mxu0 %v499
        %v576 = vpop.f32.mrf.mxu0
        %v577 = vadd.f32 %v455, %v576
        %v578 = vpop.f32.mrf.mxu0
        %v579 = vpop.f32.mrf.mxu0
        %v580 = vadd.f32 %v455, %v579
        %v581 = vpop.f32.mrf.mxu0
        %582 = vmatprep.mubr.bf16.mxu0 0
        %583 = vmatmul.mubr.bf16.gmra.mxu0 %v502
        %v584 = vpop.f32.mrf.mxu0
        %v585 = vadd.f32 %v455, %v584
        %v586 = vpop.f32.mrf.mxu0
        %v587 = vpop.f32.mrf.mxu0
        %v588 = vadd.f32 %v455, %v587
        %v589 = vpop.f32.mrf.mxu0
        %590 = vmatprep.mubr.bf16.mxu0 0
        %591 = vmatmul.mubr.bf16.gmra.mxu0 %v505
        %v592 = vpop.f32.mrf.mxu0
        %v593 = vadd.f32 %v455, %v592
        %v594 = vpop.f32.mrf.mxu0
        %v595 = vpop.f32.mrf.mxu0
        %v596 = vadd.f32 %v455, %v595
        %v597 = vpop.f32.mrf.mxu0
        %598 = vmatprep.mubr.bf16.mxu0 0
        %599 = vmatmul.mubr.bf16.gmra.mxu0 %v508
        %v600 = vpop.f32.mrf.mxu0
        %v601 = vadd.f32 %v455, %v600
        %v602 = vpop.f32.mrf.mxu0
        %v603 = vpop.f32.mrf.mxu0
        %v604 = vadd.f32 %v455, %v603
        %v605 = vpop.f32.mrf.mxu0
        %606 = vdwg.mxu0
        %v607 = vpack.c.bf16 %v548, %v545
        %v608 = vpack.c.bf16 %v556, %v553
        %v609 = vpack.c.bf16 %v564, %v561
        %v610 = vpack.c.bf16 %v572, %v569
        %v611 = vpack.c.bf16 %v580, %v577
        %v612 = vpack.c.bf16 %v588, %v585
        %v613 = vpack.c.bf16 %v596, %v593
        %v614 = vpack.c.bf16 %v604, %v601
        %v623 = vunpack.c.l.b16 %v607
        %v624 = vunpack.c.h.b16 %v607
        %v625 = vunpack.c.l.b16 %v608
        %v626 = vunpack.c.h.b16 %v608
        %v627 = vunpack.c.l.b16 %v609
        %v628 = vunpack.c.h.b16 %v609
        %v629 = vunpack.c.l.b16 %v610
        %v630 = vunpack.c.h.b16 %v610
        %v631 = vunpack.c.l.b16 %v611
        %v632 = vunpack.c.h.b16 %v611
        %v633 = vunpack.c.l.b16 %v612
        %v634 = vunpack.c.h.b16 %v612
        %v635 = vunpack.c.l.b16 %v613
        %v636 = vunpack.c.h.b16 %v613
        %v637 = vunpack.c.l.b16 %v614
        %v638 = vunpack.c.h.b16 %v614
        %v639 = vpack.c.b16 %v623, %v623
        %v640 = vpack.c.b16 %v624, %v624
        %v641 = vpack.c.b16 %v625, %v625
        %v642 = vpack.c.b16 %v626, %v626
        %v643 = vpack.c.b16 %v627, %v627
        %v644 = vpack.c.b16 %v628, %v628
        %v645 = vpack.c.b16 %v629, %v629
        %v646 = vpack.c.b16 %v630, %v630
        %v647 = vpack.c.b16 %v631, %v631
        %v648 = vpack.c.b16 %v632, %v632
        %v649 = vpack.c.b16 %v633, %v633
        %v650 = vpack.c.b16 %v634, %v634
        %v651 = vpack.c.b16 %v635, %v635
        %v652 = vpack.c.b16 %v636, %v636
        %v653 = vpack.c.b16 %v637, %v637
        %v654 = vpack.c.b16 %v638, %v638
        %vm671 = vcmask 257024
        %672 = vst.msk [vmem:[%s427] sm:$0xf] %vm671, %v639
        %673 = vst.msk [vmem:[%s427 + $0x4] sm:$0xf] %vm671, %v640
        %674 = vst.msk [vmem:[%s427 + $0x8] sm:$0xf] %vm671, %v641
        %675 = vst.msk [vmem:[%s427 + $0xc] sm:$0xf] %vm671, %v642
        %676 = vst.msk [vmem:[%s427 + $0x10] sm:$0xf] %vm671, %v643
        %677 = vst.msk [vmem:[%s427 + $0x14] sm:$0xf] %vm671, %v644
        %678 = vst.msk [vmem:[%s427 + $0x18] sm:$0xf] %vm671, %v645
        %679 = vst.msk [vmem:[%s427 + $0x1c] sm:$0xf] %vm671, %v646
        %680 = vst.msk [vmem:[%s427 + $0x20] sm:$0xf] %vm671, %v647
        %681 = vst.msk [vmem:[%s427 + $0x24] sm:$0xf] %vm671, %v648
        %682 = vst.msk [vmem:[%s427 + $0x28] sm:$0xf] %vm671, %v649
        %683 = vst.msk [vmem:[%s427 + $0x2c] sm:$0xf] %vm671, %v650
        %684 = vst.msk [vmem:[%s427 + $0x30] sm:$0xf] %vm671, %v651
        %685 = vst.msk [vmem:[%s427 + $0x34] sm:$0xf] %vm671, %v652
        %686 = vst.msk [vmem:[%s427 + $0x38] sm:$0xf] %vm671, %v653
        %687 = vst.msk [vmem:[%s427 + $0x3c] sm:$0xf] %vm671, %v654
        %v688 = vld [vmem:[%s3] sm:$0xf]
        %v689 = vld [vmem:[%s3 + $0x4] sm:$0xf]
        %v690 = vld [vmem:[%s3 + $0x8] sm:$0xf]
        %v691 = vld [vmem:[%s3 + $0xc] sm:$0xf]
        %v692 = vld [vmem:[%s6] sm:$0x1]
        %v694 = vlaneseq
        %v695 = vshrl.u32 %v694, 7
        %v696 = vsub.s32 0, %v695
        %v697 = vrot.slane %v692, %v696
        %v703 = vunpack.c.l.b16 %v688
        %v704 = vunpack.c.l.b16 %v689
        %v705 = vunpack.c.l.b16 %v690
        %v706 = vunpack.c.l.b16 %v691
        %v707 = vpack.c.b16 %v704, %v703
        %v708 = vpack.c.b16 %v706, %v705
        %711 = vmatprep.subr.bf16.mxu0 0
        %712 = vmatpush1.bf16.msra.mxu0 0
        %713 = vmatprep.subr.bf16.mxu0 0
        %714 = vmatpush1.bf16.msra.mxu0 0
        %715 = vmatprep.subr.bf16.mxu0 0
        %716 = vmatpush1.bf16.msra.mxu0 0
        %717 = vmatprep.subr.bf16.mxu0 0
        %718 = vmatpush1.bf16.msra.mxu0 0
        %719 = vmatprep.subr.bf16.mxu0 0
        %720 = vmatpush1.bf16.msra.mxu0 0
        %721 = vmatprep.subr.bf16.mxu0 0
        %722 = vmatpush1.bf16.msra.mxu0 0
        %723 = vmatprep.subr.bf16.mxu0 0
        %724 = vmatpush1.bf16.msra.mxu0 %v708
        %725 = vmatprep.subr.bf16.mxu0 0
        %726 = vmatpush1.bf16.msra.mxu0 %v707
        %727 = vmatprep.subr.bf16.mxu0 0
        %728 = vmatpush2.bf16.msra.mxu0 0
        %729 = vmatprep.subr.bf16.mxu0 0
        %730 = vmatpush2.bf16.msra.mxu0 0
        %731 = vmatprep.subr.bf16.mxu0 0
        %732 = vmatpush2.bf16.msra.mxu0 0
        %733 = vmatprep.subr.bf16.mxu0 0
        %734 = vmatpush2.bf16.msra.mxu0 0
        %735 = vmatprep.subr.bf16.mxu0 0
        %736 = vmatpush2.bf16.msra.mxu0 0
        %737 = vmatprep.subr.bf16.mxu0 0
        %738 = vmatpush2.bf16.msra.mxu0 0
        %739 = vmatprep.subr.bf16.mxu0 0
        %740 = vmatpush2.bf16.msra.mxu0 0
        %741 = vmatprep.subr.bf16.mxu0 0
        %742 = vmatpush2.bf16.msra.mxu0 0
        %743 = vmatprep.mubr.bf16.mxu0 0
        %744 = vmatmul.mubr.bf16.gmra.mxu0 %v487
        %v745 = vpop.f32.mrf.mxu0
        %v746 = vadd.f32 %v697, %v745
        %v747 = vpop.f32.mrf.mxu0
        %v748 = vpop.f32.mrf.mxu0
        %v749 = vadd.f32 %v697, %v748
        %v750 = vpop.f32.mrf.mxu0
        %751 = vmatprep.mubr.bf16.mxu0 0
        %752 = vmatmul.mubr.bf16.gmra.mxu0 %v490
        %v753 = vpop.f32.mrf.mxu0
        %v754 = vadd.f32 %v697, %v753
        %v755 = vpop.f32.mrf.mxu0
        %v756 = vpop.f32.mrf.mxu0
        %v757 = vadd.f32 %v697, %v756
        %v758 = vpop.f32.mrf.mxu0
        %759 = vmatprep.mubr.bf16.mxu0 0
        %760 = vmatmul.mubr.bf16.gmra.mxu0 %v493
        %v761 = vpop.f32.mrf.mxu0
        %v762 = vadd.f32 %v697, %v761
        %v763 = vpop.f32.mrf.mxu0
        %v764 = vpop.f32.mrf.mxu0
        %v765 = vadd.f32 %v697, %v764
        %v766 = vpop.f32.mrf.mxu0
        %767 = vmatprep.mubr.bf16.mxu0 0
        %768 = vmatmul.mubr.bf16.gmra.mxu0 %v496
        %v769 = vpop.f32.mrf.mxu0
        %v770 = vadd.f32 %v697, %v769
        %v771 = vpop.f32.mrf.mxu0
        %v772 = vpop.f32.mrf.mxu0
        %v773 = vadd.f32 %v697, %v772
        %v774 = vpop.f32.mrf.mxu0
        %775 = vmatprep.mubr.bf16.mxu0 0
        %776 = vmatmul.mubr.bf16.gmra.mxu0 %v499
        %v777 = vpop.f32.mrf.mxu0
        %v778 = vadd.f32 %v697, %v777
        %v779 = vpop.f32.mrf.mxu0
        %v780 = vpop.f32.mrf.mxu0
        %v781 = vadd.f32 %v697, %v780
        %v782 = vpop.f32.mrf.mxu0
        %783 = vmatprep.mubr.bf16.mxu0 0
        %784 = vmatmul.mubr.bf16.gmra.mxu0 %v502
        %v785 = vpop.f32.mrf.mxu0
        %v786 = vadd.f32 %v697, %v785
        %v787 = vpop.f32.mrf.mxu0
        %v788 = vpop.f32.mrf.mxu0
        %v789 = vadd.f32 %v697, %v788
        %v790 = vpop.f32.mrf.mxu0
        %791 = vmatprep.mubr.bf16.mxu0 0
        %792 = vmatmul.mubr.bf16.gmra.mxu0 %v505
        %v793 = vpop.f32.mrf.mxu0
        %v794 = vadd.f32 %v697, %v793
        %v795 = vpop.f32.mrf.mxu0
        %v796 = vpop.f32.mrf.mxu0
        %v797 = vadd.f32 %v697, %v796
        %v798 = vpop.f32.mrf.mxu0
        %799 = vmatprep.mubr.bf16.mxu0 0
        %800 = vmatmul.mubr.bf16.gmra.mxu0 %v508
        %v801 = vpop.f32.mrf.mxu0
        %v802 = vadd.f32 %v697, %v801
        %v803 = vpop.f32.mrf.mxu0
        %v804 = vpop.f32.mrf.mxu0
        %v805 = vadd.f32 %v697, %v804
        %v806 = vpop.f32.mrf.mxu0
        %807 = vdwg.mxu0
        %v808 = vpack.c.bf16 %v749, %v746
        %v809 = vpack.c.bf16 %v757, %v754
        %v810 = vpack.c.bf16 %v765, %v762
        %v811 = vpack.c.bf16 %v773, %v770
        %v812 = vpack.c.bf16 %v781, %v778
        %v813 = vpack.c.bf16 %v789, %v786
        %v814 = vpack.c.bf16 %v797, %v794
        %v815 = vpack.c.bf16 %v805, %v802
        %v824 = vunpack.c.l.b16 %v808
        %v825 = vunpack.c.h.b16 %v808
        %v826 = vunpack.c.l.b16 %v809
        %v827 = vunpack.c.h.b16 %v809
        %v828 = vunpack.c.l.b16 %v810
        %v829 = vunpack.c.h.b16 %v810
        %v830 = vunpack.c.l.b16 %v811
        %v831 = vunpack.c.h.b16 %v811
        %v832 = vunpack.c.l.b16 %v812
        %v833 = vunpack.c.h.b16 %v812
        %v834 = vunpack.c.l.b16 %v813
        %v835 = vunpack.c.h.b16 %v813
        %v836 = vunpack.c.l.b16 %v814
        %v837 = vunpack.c.h.b16 %v814
        %v838 = vunpack.c.l.b16 %v815
        %v839 = vunpack.c.h.b16 %v815
        %v840 = vpack.c.b16 %v824, %v824
        %v841 = vpack.c.b16 %v825, %v825
        %v842 = vpack.c.b16 %v826, %v826
        %v843 = vpack.c.b16 %v827, %v827
        %v844 = vpack.c.b16 %v828, %v828
        %v845 = vpack.c.b16 %v829, %v829
        %v846 = vpack.c.b16 %v830, %v830
        %v847 = vpack.c.b16 %v831, %v831
        %v848 = vpack.c.b16 %v832, %v832
        %v849 = vpack.c.b16 %v833, %v833
        %v850 = vpack.c.b16 %v834, %v834
        %v851 = vpack.c.b16 %v835, %v835
        %v852 = vpack.c.b16 %v836, %v836
        %v853 = vpack.c.b16 %v837, %v837
        %v854 = vpack.c.b16 %v838, %v838
        %v855 = vpack.c.b16 %v839, %v839
        %872 = vst.msk [vmem:[%s437] sm:$0xf] %vm671, %v840
        %873 = vst.msk [vmem:[%s437 + $0x4] sm:$0xf] %vm671, %v841
        %874 = vst.msk [vmem:[%s437 + $0x8] sm:$0xf] %vm671, %v842
        %875 = vst.msk [vmem:[%s437 + $0xc] sm:$0xf] %vm671, %v843
        %876 = vst.msk [vmem:[%s437 + $0x10] sm:$0xf] %vm671, %v844
        %877 = vst.msk [vmem:[%s437 + $0x14] sm:$0xf] %vm671, %v845
        %878 = vst.msk [vmem:[%s437 + $0x18] sm:$0xf] %vm671, %v846
        %879 = vst.msk [vmem:[%s437 + $0x1c] sm:$0xf] %vm671, %v847
        %880 = vst.msk [vmem:[%s437 + $0x20] sm:$0xf] %vm671, %v848
        %881 = vst.msk [vmem:[%s437 + $0x24] sm:$0xf] %vm671, %v849
        %882 = vst.msk [vmem:[%s437 + $0x28] sm:$0xf] %vm671, %v850
        %883 = vst.msk [vmem:[%s437 + $0x2c] sm:$0xf] %vm671, %v851
        %884 = vst.msk [vmem:[%s437 + $0x30] sm:$0xf] %vm671, %v852
        %885 = vst.msk [vmem:[%s437 + $0x34] sm:$0xf] %vm671, %v853
        %886 = vst.msk [vmem:[%s437 + $0x38] sm:$0xf] %vm671, %v854
        %887 = vst.msk [vmem:[%s437 + $0x3c] sm:$0xf] %vm671, %v855
        %v888 = vld [vmem:[%s2] sm:$0xf]
        %v889 = vld [vmem:[%s2 + $0x4] sm:$0xf]
        %v890 = vld [vmem:[%s2 + $0x8] sm:$0xf]
        %v891 = vld [vmem:[%s2 + $0xc] sm:$0xf]
        %v892 = vld [vmem:[%s5] sm:$0xff]
        %v893 = vld [vmem:[%s5 + $0x8] sm:$0xff]
        %v894 = vld [vmem:[%s5 + $0x10] sm:$0xff]
        %v895 = vld [vmem:[%s5 + $0x18] sm:$0xff]
        %897 = vset.pattern.permute.xlu0 0
        %898 = vperm.xlu0 %897, %v892
        %v899 = vpop.permute.xlu0 %898
        %902 = vset.pattern.permute.xlu0 0
        %903 = vperm.xlu0 %902, %v893
        %v904 = vpop.permute.xlu0 %903
        %907 = vset.pattern.permute.xlu0 0
        %908 = vperm.xlu0 %907, %v894
        %v909 = vpop.permute.xlu0 %908
        %912 = vset.pattern.permute.xlu0 0
        %913 = vperm.xlu0 %912, %v895
        %v914 = vpop.permute.xlu0 %913
        %v920 = vunpack.c.l.b16 %v888
        %v921 = vunpack.c.l.b16 %v889
        %v922 = vunpack.c.l.b16 %v890
        %v923 = vunpack.c.l.b16 %v891
        %v924 = vpack.c.b16 %v921, %v920
        %v925 = vpack.c.b16 %v923, %v922
        %928 = vxpose.xlu0.c.b16.start [1/8] %v924, 128
        %929 = vxpose.xlu0.c.b16.cont [2/8] %v925, 128
        %930 = vxpose.xlu0.c.b16.cont [3/8] 0, 128
        %931 = vxpose.xlu0.c.b16.cont [4/8] 0, 128
        %932 = vxpose.xlu0.c.b16.cont [5/8] 0, 128
        %933 = vxpose.xlu0.c.b16.cont [6/8] 0, 128
        %934 = vxpose.xlu0.c.b16.cont [7/8] 0, 128
        %935 = vxpose.xlu0.c.b16.end [8/8] 0, 128
        %v936 = vpop.trf.xlu0
        %v937 = vpop.trf.xlu0
        %v938 = vpop.trf.xlu0
        %v939 = vpop.trf.xlu0
        %v940 = vpop.trf.xlu0
        %v941 = vpop.trf.xlu0
        %v942 = vpop.trf.xlu0
        %v943 = vpop.trf.xlu0
        %v945 = vsel %vm485, %v936, 0
        %v948 = vsel %vm485, %v937, 0
        %950 = vmatprep.subr.bf16.mxu0 0
        %951 = vmatpush1.bf16.msra.mxu0 0
        %952 = vmatprep.subr.bf16.mxu0 0
        %953 = vmatpush1.bf16.msra.mxu0 0
        %954 = vmatprep.subr.bf16.mxu0 0
        %955 = vmatpush1.bf16.msra.mxu0 0
        %956 = vmatprep.subr.bf16.mxu0 0
        %957 = vmatpush1.bf16.msra.mxu0 0
        %958 = vmatprep.subr.bf16.mxu0 0
        %959 = vmatpush1.bf16.msra.mxu0 0
        %960 = vmatprep.subr.bf16.mxu0 0
        %961 = vmatpush1.bf16.msra.mxu0 0
        %962 = vmatprep.subr.bf16.mxu0 0
        %963 = vmatpush1.bf16.msra.mxu0 %v445
        %964 = vmatprep.subr.bf16.mxu0 0
        %965 = vmatpush1.bf16.msra.mxu0 %v444
        %966 = vmatprep.subr.bf16.mxu0 0
        %967 = vmatpush2.bf16.msra.mxu0 0
        %968 = vmatprep.subr.bf16.mxu0 0
        %969 = vmatpush2.bf16.msra.mxu0 0
        %970 = vmatprep.subr.bf16.mxu0 0
        %971 = vmatpush2.bf16.msra.mxu0 0
        %972 = vmatprep.subr.bf16.mxu0 0
        %973 = vmatpush2.bf16.msra.mxu0 0
        %974 = vmatprep.subr.bf16.mxu0 0
        %975 = vmatpush2.bf16.msra.mxu0 0
        %976 = vmatprep.subr.bf16.mxu0 0
        %977 = vmatpush2.bf16.msra.mxu0 0
        %978 = vmatprep.subr.bf16.mxu0 0
        %979 = vmatpush2.bf16.msra.mxu0 0
        %980 = vmatprep.subr.bf16.mxu0 0
        %981 = vmatpush2.bf16.msra.mxu0 0
        %982 = vmatprep.mubr.bf16.mxu0 0
        %983 = vmatmul.mubr.bf16.gmra.mxu0 %v945
        %v984 = vpop.f32.mrf.mxu0
        %v985 = vadd.f32 %v899, %v984
        %v986 = vpop.f32.mrf.mxu0
        %v987 = vpop.f32.mrf.mxu0
        %v988 = vadd.f32 %v904, %v987
        %v989 = vpop.f32.mrf.mxu0
        %990 = vmatprep.mubr.bf16.mxu0 0
        %991 = vmatmul.mubr.bf16.gmra.mxu0 %v948
        %v992 = vpop.f32.mrf.mxu0
        %v993 = vadd.f32 %v909, %v992
        %v994 = vpop.f32.mrf.mxu0
        %v995 = vpop.f32.mrf.mxu0
        %v996 = vadd.f32 %v914, %v995
        %v997 = vpop.f32.mrf.mxu0
        %998 = vdwg.mxu0
        %v999 = vpack.c.bf16 %v988, %v985
        %v1000 = vpack.c.bf16 %v996, %v993
        %v1003 = vunpack.c.l.b16 %v999
        %v1004 = vunpack.c.h.b16 %v999
        %v1005 = vunpack.c.l.b16 %v1000
        %v1006 = vunpack.c.h.b16 %v1000
        %v1007 = vpack.c.b16 %v1003, %v1003
        %v1008 = vpack.c.b16 %v1004, %v1004
        %v1009 = vpack.c.b16 %v1005, %v1005
        %v1010 = vpack.c.b16 %v1006, %v1006
        %1015 = vst [vmem:[%s407] sm:$0xf] %v1007
        %1016 = vst [vmem:[%s407 + $0x4] sm:$0xf] %v1008
        %1017 = vst [vmem:[%s407 + $0x8] sm:$0xf] %v1009
        %1018 = vst [vmem:[%s407 + $0xc] sm:$0xf] %v1010
        %s1019 = smul.u32 16, %s26
        %p1020 = scmp.lt.s32.totalorder %s25, 1
        %s1021 = scalar_select %p1020, %s25, 1
        %p1022 = scmp.lt.s32.totalorder %s1019, 31
        %s1023 = scalar_select %p1022, %s1019, 31
        %s1024 = smul.addr %s1021, 32
        %s1025 = sadd.s32 %s1023, %s1024
        %s1026 = smul.addr %s1025, 4
        %s1027 = scalar_lea.vmem %s7, %s1026
        %s1028 = sand.u32 %s225, 1
        %s1029 = sand.u32 %s225, 1
        %s1030 = smul.addr %s1029, 16
        %s1031 = scalar_lea.vmem [#allocation3], %s1030
        %s1032 = smul.u32 16, %s26
        %p1033 = scmp.lt.s32.totalorder %s25, 1
        %s1034 = scalar_select %p1033, %s25, 1
        %p1035 = scmp.lt.s32.totalorder %s1032, 31
        %s1036 = scalar_select %p1035, %s1032, 31
        %s1037 = smul.addr %s1034, 32
        %s1038 = sadd.s32 %s1036, %s1037
        %s1039 = smul.addr %s1038, 4
        %s1040 = scalar_lea.vmem %s9, %s1039
        // Predicated region
        $region87: #{vae_attention_block.2} parent=81 // pred_check
          %p1041 = pneg %p207
        $region88: #{vae_attention_block.2} parent=81 // pred_check_branch
          %1043 = sbr.rel (%p1041) target = $region90
        $region89: #{vae_attention_block.2} parent=81 // pred_region
          %s1044 = smul.u32 16, %s26
        $region90: #{vae_attention_block.2} parent=81 // pred_fallthru
          _
        // Predicated region
        $region91: #{vae_attention_block.2} parent=81 // pred_check
          %p1045 = pneg %p235
        $region92: #{vae_attention_block.2} parent=81 // pred_check_branch
          %1047 = sbr.rel (%p1045) target = $region94
        $region93: #{vae_attention_block.2} parent=81 // pred_region
          %s1048 = smul.addr %s25, 8
          %s1049 = sadd.s32 %s26, %s1048
          %s1050 = smul.addr %s1049, 4
          %s1051 = scalar_lea.vmem %s8, %s1050
          // Predicated region
          $region95: #{vae_attention_block.2} parent=93 // pred_check
            _
          $region96: #{vae_attention_block.2} parent=93 // pred_check_branch
            %1053 = sbr.rel (0) target = $region98
          $region97: #{vae_attention_block.2} parent=93 // pred_region
            // Predicated region
            $region99: #{vae_attention_block.2} parent=97 // pred_check
              _
            $region100: #{vae_attention_block.2} parent=97 // pred_check_branch
              %1055 = sbr.rel target = $region102
            $region101: #{vae_attention_block.2} parent=97 // pred_region
              // Predicated region
              $region114: #{vae_attention_block.2} parent=101 // pred_check
                _
              $region115: #{vae_attention_block.2} parent=101 // pred_check_branch
                %1077 = sbr.rel (0) target = $region117
              $region116: #{vae_attention_block.2} parent=101 // pred_region
                loop: start=0, step=1, limit=1
                $region118: #{vae_attention_block.2} parent=116 // loop_pre_header
                  _
                $region119: #{vae_attention_block.2} parent=116 // loop_header
                  %s1079 = sphi 0, %s1083
                  %p1080 = scmp.ge.s32.totalorder %s1079, 1
                  %s1084 = sphi %s1031, %s1031
                  %s1085 = sphi %s1051, %s1051
                $region120: #{vae_attention_block.2} parent=116 // loop_header_branch
                  %1082 = sbr.rel (%p1080) target = $region124
                $region121: #{vae_attention_block.2} parent=116 // loop_body
                  _
                $region122: #{vae_attention_block.2} parent=116 // loop_footer
                  %s1083 = sadd.s32 1, %s1079
                $region123: #{vae_attention_block.2} parent=116 // loop_footer_branch
                  %1078 = sbr.rel target = $region119
                $region124: #{vae_attention_block.2} parent=116 // loop_exit
                  _
                %s1087 = ssub.s32 16, 1
                loop: start=0, step=1, limit=1
                $region125: #{vae_attention_block.2} parent=116 // loop_pre_header
                  _
                $region126: #{vae_attention_block.2} parent=116 // loop_header
                  %s1089 = sphi 0, %s1093
                  %p1090 = scmp.ge.s32.totalorder %s1089, 1
                  %s1094 = sphi %s1031, %s1031
                  %s1095 = sphi %s1051, %s1051
                $region127: #{vae_attention_block.2} parent=116 // loop_header_branch
                  %1092 = sbr.rel (%p1090) target = $region131
                $region128: #{vae_attention_block.2} parent=116 // loop_body
                  %v1096 = vld [vmem:[%s1094] sm:%s1087]
                  %1097 = vst [vmem:[%s1095] sm:%s1087] %v1096
                  %v1098 = vld [vmem:[%s1094 + $0x4] sm:%s1087]
                  %1099 = vst [vmem:[%s1095 + $0x8] sm:%s1087] %v1098
                  %v1100 = vld [vmem:[%s1094 + $0x8] sm:%s1087]
                  %1101 = vst [vmem:[%s1095 + $0x10] sm:%s1087] %v1100
                  %v1102 = vld [vmem:[%s1094 + $0xc] sm:%s1087]
                  %1103 = vst [vmem:[%s1095 + $0x18] sm:%s1087] %v1102
                $region129: #{vae_attention_block.2} parent=116 // loop_footer
                  %s1093 = sadd.s32 1, %s1089
                $region130: #{vae_attention_block.2} parent=116 // loop_footer_branch
                  %1088 = sbr.rel target = $region126
                $region131: #{vae_attention_block.2} parent=116 // loop_exit
                  _
              $region117: #{vae_attention_block.2} parent=101 // pred_fallthru
                _
            $region102: #{vae_attention_block.2} parent=97 // pred_fallthru
              _
            // Predicated region
            $region103: #{vae_attention_block.2} parent=97 // pred_check
              _
            $region104: #{vae_attention_block.2} parent=97 // pred_check_branch
              %1057 = sbr.rel (0) target = $region106
            $region105: #{vae_attention_block.2} parent=97 // pred_region
              %s1059 = ssub.s32 16, 1
              loop: start=0, step=1, limit=1
              $region107: #{vae_attention_block.2} parent=105 // loop_pre_header
                _
              $region108: #{vae_attention_block.2} parent=105 // loop_header
                %s1061 = sphi 0, %s1065
                %p1062 = scmp.ge.s32.totalorder %s1061, 1
                %s1066 = sphi %s1031, %s1031
                %s1067 = sphi %s1051, %s1051
              $region109: #{vae_attention_block.2} parent=105 // loop_header_branch
                %1064 = sbr.rel (%p1062) target = $region113
              $region110: #{vae_attention_block.2} parent=105 // loop_body
                %v1068 = vld [vmem:[%s1066] sm:%s1059]
                %1069 = vst [vmem:[%s1067] sm:%s1059] %v1068
                %v1070 = vld [vmem:[%s1066 + $0x4] sm:%s1059]
                %1071 = vst [vmem:[%s1067 + $0x8] sm:%s1059] %v1070
                %v1072 = vld [vmem:[%s1066 + $0x8] sm:%s1059]
                %1073 = vst [vmem:[%s1067 + $0x10] sm:%s1059] %v1072
                %v1074 = vld [vmem:[%s1066 + $0xc] sm:%s1059]
                %1075 = vst [vmem:[%s1067 + $0x18] sm:%s1059] %v1074
              $region111: #{vae_attention_block.2} parent=105 // loop_footer
                %s1065 = sadd.s32 1, %s1061
              $region112: #{vae_attention_block.2} parent=105 // loop_footer_branch
                %1060 = sbr.rel target = $region108
              $region113: #{vae_attention_block.2} parent=105 // loop_exit
                _
            $region106: #{vae_attention_block.2} parent=97 // pred_fallthru
              _
          $region98: #{vae_attention_block.2} parent=93 // pred_fallthru
            _
          %1104 = vnop
        $region94: #{vae_attention_block.2} parent=81 // pred_fallthru
          _
        // Predicated region
        $region132: #{vae_attention_block.2} parent=81 // pred_check
          %p1105 = pneg %p263
        $region133: #{vae_attention_block.2} parent=81 // pred_check_branch
          %1107 = sbr.rel (%p1105) target = $region135
        $region134: #{vae_attention_block.2} parent=81 // pred_region
          %s1108 = smul.u32 16, %s26
        $region135: #{vae_attention_block.2} parent=81 // pred_fallthru
          _
      $region82: #{vae_attention_block.2} parent=5 // pred_fallthru
        _
      %p1109 = scmp.le.s32.totalorder 2, %s16
      // Predicated region
      $region136: #{vae_attention_block.2} parent=5 // pred_check
        %p1110 = pneg %p1109
      $region137: #{vae_attention_block.2} parent=5 // pred_check_branch
        %1112 = sbr.rel (%p1110) target = $region139
      $region138: #{vae_attention_block.2} parent=5 // pred_region
        %s1113 = ssub.s32 %s16, 2
        // Predicated region
        $region140: #{vae_attention_block.2} parent=138 // pred_check
          %p1114 = pneg %p213
        $region141: #{vae_attention_block.2} parent=138 // pred_check_branch
          %1116 = sbr.rel (%p1114) target = $region143
        $region142: #{vae_attention_block.2} parent=138 // pred_region
          %s1117 = smul.u32 16, %s28
          %p1118 = scmp.lt.s32.totalorder %s27, 1
          %s1119 = scalar_select %p1118, %s27, 1
          %p1120 = scmp.lt.s32.totalorder %s1117, 31
          %s1121 = scalar_select %p1120, %s1117, 31
          %s1122 = smul.addr %s1119, 32
          %s1123 = sadd.s32 %s1121, %s1122
          %s1124 = smul.addr %s1123, 4
          %s1125 = scalar_lea.vmem %s7, %s1124
        $region143: #{vae_attention_block.2} parent=138 // pred_fallthru
          _
        // Predicated region
        $region144: #{vae_attention_block.2} parent=138 // pred_check
          %p1126 = pneg %p241
        $region145: #{vae_attention_block.2} parent=138 // pred_check_branch
          %1128 = sbr.rel (%p1126) target = $region147
        $region146: #{vae_attention_block.2} parent=138 // pred_region
          %s1129 = sand.u32 %s226, 1
          %s1130 = sand.u32 %s226, 1
          %s1131 = smul.addr %s1130, 16
          %s1132 = scalar_lea.vmem [#allocation3], %s1131
        $region147: #{vae_attention_block.2} parent=138 // pred_fallthru
          _
        // Predicated region
        $region148: #{vae_attention_block.2} parent=138 // pred_check
          %p1133 = pneg %p269
        $region149: #{vae_attention_block.2} parent=138 // pred_check_branch
          %1135 = sbr.rel (%p1133) target = $region151
        $region150: #{vae_attention_block.2} parent=138 // pred_region
          %s1136 = smul.u32 16, %s28
          %p1137 = scmp.lt.s32.totalorder %s27, 1
          %s1138 = scalar_select %p1137, %s27, 1
          %p1139 = scmp.lt.s32.totalorder %s1136, 31
          %s1140 = scalar_select %p1139, %s1136, 31
          %s1141 = smul.addr %s1138, 32
          %s1142 = sadd.s32 %s1140, %s1141
          %s1143 = smul.addr %s1142, 4
          %s1144 = scalar_lea.vmem %s9, %s1143
        $region151: #{vae_attention_block.2} parent=138 // pred_fallthru
          _
      $region139: #{vae_attention_block.2} parent=5 // pred_fallthru
        _
    $region6: #{vae_attention_block.2} parent=1 // loop_footer
      %s20 = sadd.s32 1, %s16
    $region7: #{vae_attention_block.2} parent=1 // loop_footer_branch
      %15 = sbr.rel target = $region3
    $region8: #{vae_attention_block.2} parent=1 // loop_exit
      _

// kernel: vae_attention_block.3
$region0: #{vae_attention_block.3}
  #allocation0 [shape = 'u32[]', space=smem, size = 0x4, offset = 0x4, fixed_abs, tag = 'smem constant byte address 0x4 - core index']
  #allocation1 [shape = 'u32[144,128]{1,0:T(1,128)}', space=vmem, size = 0x12000, scoped, tag = 'internal scratch']
  #allocation2 [shape = 'f32[128,1]{1,0:T(8,128)}', space=vmem, size = 0x10000, scoped, tag = 'scratch operand']
  #allocation3 [shape = 'f32[128,1]{1,0:T(8,128)}', space=vmem, size = 0x10000, scoped, tag = 'scratch operand']
  #allocation4 [shape = 'f32[128,32]{1,0:T(8,128)}', space=vmem, size = 0x10000, scoped, tag = 'scratch operand']
  %s0 = inlined_call_operand.vmem [shape: bf16[2,256,32], index: 0, kind: input, shape index: {}]
  %s1 = inlined_call_operand.vmem [shape: bf16[2,32,256], index: 1, kind: input, shape index: {}]
  %s2 = inlined_call_operand.vmem [shape: bf16[2,256,32], index: 2, kind: input, shape index: {}]
  %s3 = inlined_call_operand.vmem [shape: f32[2,32,256], index: 3, kind: input, shape index: {}]
  %s4 = inlined_call_operand.vmem [shape: bf16[32,32], index: 4, kind: input, shape index: {}]
  %s5 = inlined_call_operand.vmem [shape: f32[32,1], index: 5, kind: input, shape index: {}]
  %s6 = inlined_call_operand.vmem [shape: f32[2,32,256], index: 6, kind: output, shape index: {}]
  %s7 = sld [smem:[#allocation0]]
  $region178: #{vae_attention_block.3} parent=0
    _
  %s9 = ssub.s32 1, %s7
  %s10 = scalar_select 0, %s9, %s7
  $region1: #{vae_attention_block.3} parent=0
    #allocation5 [shape = 'u8[16384]{0}', space=vmem, size = 0x4000, scoped, tag = 'input window, operand 1']
    #allocation6 [shape = 'u8[32768]{0}', space=vmem, size = 0x8000, scoped, tag = 'input window, operand 3']
    #allocation7 [shape = 'u8[32768]{0}', space=vmem, size = 0x8000, scoped, tag = 'output window, operand 0']
    loop: start=0, step=1, limit=10
    $region2: #{vae_attention_block.3} parent=1 // loop_pre_header
      _
    $region3: #{vae_attention_block.3} parent=1 // loop_header
      %s12 = sphi 0, %s16
      %p13 = scmp.ge.s32.totalorder %s12, 10
      %s19 = sphi 0, %s38
      %s20 = sphi 0, %s34
      %s21 = sphi 0, %s30
      %s22 = sphi 0, %s19
      %s23 = sphi 0, %s20
      %s24 = sphi 0, %s21
      %s25 = sphi 0, %s22
      %s26 = sphi 0, %s23
      %s27 = sphi 0, %s24
      %s43 = sphi 0, %s45
      %s46 = sphi 0, %s43
      %s47 = sphi 0, %s46
      %s63 = sphi 0, %s47
      %s71 = sphi 0, %s73
      %s74 = sphi 0, %s71
      %s75 = sphi 0, %s74
      %s91 = sphi 0, %s75
      %s99 = sphi 0, %s101
      %s102 = sphi 0, %s99
      %s103 = sphi 0, %s102
      %s119 = sphi 0, %s103
      %s127 = sphi 0, %s129
      %s130 = sphi 0, %s127
      %s131 = sphi 0, %s130
      %s147 = sphi 0, %s131
      %s151 = sphi 0, %s151
      %s153 = sphi 0, %s151
      %s154 = sphi 0, %s153
      %s168 = sphi 0, %s154
      %s172 = sphi 0, %s172
      %s174 = sphi 0, %s172
      %s175 = sphi 0, %s174
      %s189 = sphi 0, %s175
      %s197 = sphi 0, %s199
      %s200 = sphi 0, %s197
      %s201 = sphi 0, %s200
      %s217 = sphi 0, %s201
    $region4: #{vae_attention_block.3} parent=1 // loop_header_branch
      %15 = sbr.rel (%p13) target = $region8
    $region5: #{vae_attention_block.3} parent=1 // loop_body
      %s17 = ssub.s32 %s12, 1
      %s18 = ssub.s32 %s12, 2
      %s28 = sadd.s32 1, %s21
      %p29 = scmp.ge.s32.totalorder %s28, 2
      %s30 = scalar_select %p29, 0, %s28
      %s31 = sadd.s32 1, %s20
      %s32 = scalar_select %p29, %s31, %s20
      %p33 = scmp.ge.s32.totalorder %s32, 2
      %s34 = scalar_select %p33, 0, %s32
      %s35 = sadd.s32 1, %s19
      %s36 = scalar_select %p33, %s35, %s19
      %p37 = scmp.ge.s32.totalorder %s36, 2
      %s38 = scalar_select %p37, 0, %s36
      %s39 = ssub.s32 %s19, %s38
      %s40 = ssub.s32 %s20, %s34
      %s41 = sor.u32 %s39, %s40
      %p42 = scmp.eq.s32.totalorder %s41, 0
      %s44 = sadd.s32 %s43, 1
      %s45 = scalar_select %p42, %s43, %s44
      %p48 = pneg %p42
      %p49 = scmp.eq.s32.totalorder %s12, 7
      %p50 = por %p48, %p49
      %p51 = scmp.ne.s32.totalorder %s43, %s46
      %p52 = scmp.eq.s32.totalorder %s12, 0
      %p53 = por %p51, %p52
      %p54 = scmp.ne.s32.totalorder %s43, %s46
      %p55 = scmp.eq.s32.totalorder %s17, 7
      %p56 = por %p54, %p55
      %p57 = scmp.ne.s32.totalorder %s46, %s47
      %p58 = scmp.eq.s32.totalorder %s17, 0
      %p59 = por %p57, %p58
      %p60 = scmp.ne.s32.totalorder %s46, %s47
      %p61 = scmp.eq.s32.totalorder %s18, 7
      %p62 = por %p60, %p61
      %p64 = scmp.ne.s32.totalorder %s47, %s63
      %p65 = scmp.eq.s32.totalorder %s18, 0
      %p66 = por %p64, %p65
      %s67 = ssub.s32 %s19, %s38
      %s68 = ssub.s32 %s21, %s30
      %s69 = sor.u32 %s67, %s68
      %p70 = scmp.eq.s32.totalorder %s69, 0
      %s72 = sadd.s32 %s71, 1
      %s73 = scalar_select %p70, %s71, %s72
      %p76 = pneg %p70
      %p77 = scmp.eq.s32.totalorder %s12, 7
      %p78 = por %p76, %p77
      %p79 = scmp.ne.s32.totalorder %s71, %s74
      %p80 = scmp.eq.s32.totalorder %s12, 0
      %p81 = por %p79, %p80
      %p82 = scmp.ne.s32.totalorder %s71, %s74
      %p83 = scmp.eq.s32.totalorder %s17, 7
      %p84 = por %p82, %p83
      %p85 = scmp.ne.s32.totalorder %s74, %s75
      %p86 = scmp.eq.s32.totalorder %s17, 0
      %p87 = por %p85, %p86
      %p88 = scmp.ne.s32.totalorder %s74, %s75
      %p89 = scmp.eq.s32.totalorder %s18, 7
      %p90 = por %p88, %p89
      %p92 = scmp.ne.s32.totalorder %s75, %s91
      %p93 = scmp.eq.s32.totalorder %s18, 0
      %p94 = por %p92, %p93
      %s95 = ssub.s32 %s19, %s38
      %s96 = ssub.s32 %s21, %s30
      %s97 = sor.u32 %s95, %s96
      %p98 = scmp.eq.s32.totalorder %s97, 0
      %s100 = sadd.s32 %s99, 1
      %s101 = scalar_select %p98, %s99, %s100
      %p104 = pneg %p98
      %p105 = scmp.eq.s32.totalorder %s12, 7
      %p106 = por %p104, %p105
      %p107 = scmp.ne.s32.totalorder %s99, %s102
      %p108 = scmp.eq.s32.totalorder %s12, 0
      %p109 = por %p107, %p108
      %p110 = scmp.ne.s32.totalorder %s99, %s102
      %p111 = scmp.eq.s32.totalorder %s17, 7
      %p112 = por %p110, %p111
      %p113 = scmp.ne.s32.totalorder %s102, %s103
      %p114 = scmp.eq.s32.totalorder %s17, 0
      %p115 = por %p113, %p114
      %p116 = scmp.ne.s32.totalorder %s102, %s103
      %p117 = scmp.eq.s32.totalorder %s18, 7
      %p118 = por %p116, %p117
      %p120 = scmp.ne.s32.totalorder %s103, %s119
      %p121 = scmp.eq.s32.totalorder %s18, 0
      %p122 = por %p120, %p121
      %s123 = ssub.s32 %s19, %s38
      %s124 = ssub.s32 %s20, %s34
      %s125 = sor.u32 %s123, %s124
      %p126 = scmp.eq.s32.totalorder %s125, 0
      %s128 = sadd.s32 %s127, 1
      %s129 = scalar_select %p126, %s127, %s128
      %p132 = pneg %p126
      %p133 = scmp.eq.s32.totalorder %s12, 7
      %p134 = por %p132, %p133
      %p135 = scmp.ne.s32.totalorder %s127, %s130
      %p136 = scmp.eq.s32.totalorder %s12, 0
      %p137 = por %p135, %p136
      %p138 = scmp.ne.s32.totalorder %s127, %s130
      %p139 = scmp.eq.s32.totalorder %s17, 7
      %p140 = por %p138, %p139
      %p141 = scmp.ne.s32.totalorder %s130, %s131
      %p142 = scmp.eq.s32.totalorder %s17, 0
      %p143 = por %p141, %p142
      %p144 = scmp.ne.s32.totalorder %s130, %s131
      %p145 = scmp.eq.s32.totalorder %s18, 7
      %p146 = por %p144, %p145
      %p148 = scmp.ne.s32.totalorder %s131, %s147
      %p149 = scmp.eq.s32.totalorder %s18, 0
      %p150 = por %p148, %p149
      %s152 = sadd.s32 %s151, 1
      %p155 = scmp.eq.s32.totalorder %s12, 7
      %p156 = scmp.ne.s32.totalorder %s151, %s153
      %p157 = scmp.eq.s32.totalorder %s12, 0
      %p158 = por %p156, %p157
      %p159 = scmp.ne.s32.totalorder %s151, %s153
      %p160 = scmp.eq.s32.totalorder %s17, 7
      %p161 = por %p159, %p160
      %p162 = scmp.ne.s32.totalorder %s153, %s154
      %p163 = scmp.eq.s32.totalorder %s17, 0
      %p164 = por %p162, %p163
      %p165 = scmp.ne.s32.totalorder %s153, %s154
      %p166 = scmp.eq.s32.totalorder %s18, 7
      %p167 = por %p165, %p166
      %p169 = scmp.ne.s32.totalorder %s154, %s168
      %p170 = scmp.eq.s32.totalorder %s18, 0
      %p171 = por %p169, %p170
      %s173 = sadd.s32 %s172, 1
      %p176 = scmp.eq.s32.totalorder %s12, 7
      %p177 = scmp.ne.s32.totalorder %s172, %s174
      %p178 = scmp.eq.s32.totalorder %s12, 0
      %p179 = por %p177, %p178
      %p180 = scmp.ne.s32.totalorder %s172, %s174
      %p181 = scmp.eq.s32.totalorder %s17, 7
      %p182 = por %p180, %p181
      %p183 = scmp.ne.s32.totalorder %s174, %s175
      %p184 = scmp.eq.s32.totalorder %s17, 0
      %p185 = por %p183, %p184
      %p186 = scmp.ne.s32.totalorder %s174, %s175
      %p187 = scmp.eq.s32.totalorder %s18, 7
      %p188 = por %p186, %p187
      %p190 = scmp.ne.s32.totalorder %s175, %s189
      %p191 = scmp.eq.s32.totalorder %s18, 0
      %p192 = por %p190, %p191
      %s193 = ssub.s32 %s19, %s38
      %s194 = ssub.s32 %s20, %s34
      %s195 = sor.u32 %s193, %s194
      %p196 = scmp.eq.s32.totalorder %s195, 0
      %s198 = sadd.s32 %s197, 1
      %s199 = scalar_select %p196, %s197, %s198
      %p202 = pneg %p196
      %p203 = scmp.eq.s32.totalorder %s12, 7
      %p204 = por %p202, %p203
      %p205 = scmp.ne.s32.totalorder %s197, %s200
      %p206 = scmp.eq.s32.totalorder %s12, 0
      %p207 = por %p205, %p206
      %p208 = scmp.ne.s32.totalorder %s197, %s200
      %p209 = scmp.eq.s32.totalorder %s17, 7
      %p210 = por %p208, %p209
      %p211 = scmp.ne.s32.totalorder %s200, %s201
      %p212 = scmp.eq.s32.totalorder %s17, 0
      %p213 = por %p211, %p212
      %p214 = scmp.ne.s32.totalorder %s200, %s201
      %p215 = scmp.eq.s32.totalorder %s18, 7
      %p216 = por %p214, %p215
      %p218 = scmp.ne.s32.totalorder %s201, %s217
      %p219 = scmp.eq.s32.totalorder %s18, 0
      %p220 = por %p218, %p219
      %p221 = scmp.le.s32.totalorder 1, %s12
      %p222 = scmp.lt.s32.totalorder %s12, 9
      %p223 = pnand %p221, %p222
      %p224 = pneg %p223
      // Predicated region
      $region9: #{vae_attention_block.3} parent=5 // pred_check
        _
      $region10: #{vae_attention_block.3} parent=5 // pred_check_branch
        %226 = sbr.rel (%p223) target = $region12
      $region11: #{vae_attention_block.3} parent=5 // pred_region
        %s227 = ssub.s32 %s12, 1
        // Predicated region
        $region13: #{vae_attention_block.3} parent=11 // pred_check
          %p228 = pneg %p164
        $region14: #{vae_attention_block.3} parent=11 // pred_check_branch
          %230 = sbr.rel (%p228) target = $region16
        $region15: #{vae_attention_block.3} parent=11 // pred_region
          _
        $region16: #{vae_attention_block.3} parent=11 // pred_fallthru
          _
        // Predicated region
        $region17: #{vae_attention_block.3} parent=11 // pred_check
          %p231 = pneg %p185
        $region18: #{vae_attention_block.3} parent=11 // pred_check_branch
          %233 = sbr.rel (%p231) target = $region20
        $region19: #{vae_attention_block.3} parent=11 // pred_region
          _
        $region20: #{vae_attention_block.3} parent=11 // pred_fallthru
          _
      $region12: #{vae_attention_block.3} parent=5 // pred_fallthru
        _
      %p234 = scmp.lt.s32.totalorder %s12, 8
      // Predicated region
      $region21: #{vae_attention_block.3} parent=5 // pred_check
        %p235 = pneg %p234
      $region22: #{vae_attention_block.3} parent=5 // pred_check_branch
        %237 = sbr.rel (%p235) target = $region24
      $region23: #{vae_attention_block.3} parent=5 // pred_region
        // Predicated region
        $region25: #{vae_attention_block.3} parent=23 // pred_check
          %p238 = pneg %p53
        $region26: #{vae_attention_block.3} parent=23 // pred_check_branch
          %240 = sbr.rel (%p238) target = $region28
        $region27: #{vae_attention_block.3} parent=23 // pred_region
          %s241 = smul.u32 16, %s20
          %p242 = scmp.lt.s32.totalorder %s19, 1
          %s243 = scalar_select %p242, %s19, 1
          %p244 = scmp.lt.s32.totalorder %s241, 31
          %s245 = scalar_select %p244, %s241, 31
          %s246 = smul.addr %s243, 32
          %s247 = sadd.s32 %s245, %s246
          %s248 = smul.addr %s247, 4
          %s249 = scalar_lea.vmem %s0, %s248
          %s250 = smul.u32 16, %s20
        $region28: #{vae_attention_block.3} parent=23 // pred_fallthru
          _
        // Predicated region
        $region29: #{vae_attention_block.3} parent=23 // pred_check
          %p251 = pneg %p81
        $region30: #{vae_attention_block.3} parent=23 // pred_check_branch
          %253 = sbr.rel (%p251) target = $region32
        $region31: #{vae_attention_block.3} parent=23 // pred_region
          %s254 = sand.u32 %s71, 1
          %s255 = sand.u32 %s71, 1
          %s256 = smul.addr %s255, 16
          %s257 = scalar_lea.vmem [#allocation5], %s256
          %s258 = smul.addr %s19, 8
          %s259 = sadd.s32 %s21, %s258
          %s260 = smul.addr %s259, 4
          %s261 = scalar_lea.vmem %s1, %s260
          // Predicated region
          $region33: #{vae_attention_block.3} parent=31 // pred_check
            _
          $region34: #{vae_attention_block.3} parent=31 // pred_check_branch
            %263 = sbr.rel (0) target = $region36
          $region35: #{vae_attention_block.3} parent=31 // pred_region
            // Predicated region
            $region37: #{vae_attention_block.3} parent=35 // pred_check
              _
            $region38: #{vae_attention_block.3} parent=35 // pred_check_branch
              %265 = sbr.rel target = $region40
            $region39: #{vae_attention_block.3} parent=35 // pred_region
              // Predicated region
              $region52: #{vae_attention_block.3} parent=39 // pred_check
                _
              $region53: #{vae_attention_block.3} parent=39 // pred_check_branch
                %287 = sbr.rel (0) target = $region55
              $region54: #{vae_attention_block.3} parent=39 // pred_region
                loop: start=0, step=1, limit=1
                $region56: #{vae_attention_block.3} parent=54 // loop_pre_header
                  _
                $region57: #{vae_attention_block.3} parent=54 // loop_header
                  %s289 = sphi 0, %s293
                  %p290 = scmp.ge.s32.totalorder %s289, 1
                  %s294 = sphi %s261, %s261
                  %s295 = sphi %s257, %s257
                $region58: #{vae_attention_block.3} parent=54 // loop_header_branch
                  %292 = sbr.rel (%p290) target = $region62
                $region59: #{vae_attention_block.3} parent=54 // loop_body
                  _
                $region60: #{vae_attention_block.3} parent=54 // loop_footer
                  %s293 = sadd.s32 1, %s289
                $region61: #{vae_attention_block.3} parent=54 // loop_footer_branch
                  %288 = sbr.rel target = $region57
                $region62: #{vae_attention_block.3} parent=54 // loop_exit
                  _
                %s297 = ssub.s32 16, 1
                loop: start=0, step=1, limit=1
                $region63: #{vae_attention_block.3} parent=54 // loop_pre_header
                  _
                $region64: #{vae_attention_block.3} parent=54 // loop_header
                  %s299 = sphi 0, %s303
                  %p300 = scmp.ge.s32.totalorder %s299, 1
                  %s304 = sphi %s261, %s261
                  %s305 = sphi %s257, %s257
                $region65: #{vae_attention_block.3} parent=54 // loop_header_branch
                  %302 = sbr.rel (%p300) target = $region69
                $region66: #{vae_attention_block.3} parent=54 // loop_body
                  %v306 = vld [vmem:[%s304] sm:%s297]
                  %307 = vst [vmem:[%s305] sm:%s297] %v306
                  %v308 = vld [vmem:[%s304 + $0x8] sm:%s297]
                  %309 = vst [vmem:[%s305 + $0x4] sm:%s297] %v308
                  %v310 = vld [vmem:[%s304 + $0x10] sm:%s297]
                  %311 = vst [vmem:[%s305 + $0x8] sm:%s297] %v310
                  %v312 = vld [vmem:[%s304 + $0x18] sm:%s297]
                  %313 = vst [vmem:[%s305 + $0xc] sm:%s297] %v312
                $region67: #{vae_attention_block.3} parent=54 // loop_footer
                  %s303 = sadd.s32 1, %s299
                $region68: #{vae_attention_block.3} parent=54 // loop_footer_branch
                  %298 = sbr.rel target = $region64
                $region69: #{vae_attention_block.3} parent=54 // loop_exit
                  _
              $region55: #{vae_attention_block.3} parent=39 // pred_fallthru
                _
            $region40: #{vae_attention_block.3} parent=35 // pred_fallthru
              _
            // Predicated region
            $region41: #{vae_attention_block.3} parent=35 // pred_check
              _
            $region42: #{vae_attention_block.3} parent=35 // pred_check_branch
              %267 = sbr.rel (0) target = $region44
            $region43: #{vae_attention_block.3} parent=35 // pred_region
              %s269 = ssub.s32 16, 1
              loop: start=0, step=1, limit=1
              $region45: #{vae_attention_block.3} parent=43 // loop_pre_header
                _
              $region46: #{vae_attention_block.3} parent=43 // loop_header
                %s271 = sphi 0, %s275
                %p272 = scmp.ge.s32.totalorder %s271, 1
                %s276 = sphi %s261, %s261
                %s277 = sphi %s257, %s257
              $region47: #{vae_attention_block.3} parent=43 // loop_header_branch
                %274 = sbr.rel (%p272) target = $region51
              $region48: #{vae_attention_block.3} parent=43 // loop_body
                %v278 = vld [vmem:[%s276] sm:%s269]
                %279 = vst [vmem:[%s277] sm:%s269] %v278
                %v280 = vld [vmem:[%s276 + $0x8] sm:%s269]
                %281 = vst [vmem:[%s277 + $0x4] sm:%s269] %v280
                %v282 = vld [vmem:[%s276 + $0x10] sm:%s269]
                %283 = vst [vmem:[%s277 + $0x8] sm:%s269] %v282
                %v284 = vld [vmem:[%s276 + $0x18] sm:%s269]
                %285 = vst [vmem:[%s277 + $0xc] sm:%s269] %v284
              $region49: #{vae_attention_block.3} parent=43 // loop_footer
                %s275 = sadd.s32 1, %s271
              $region50: #{vae_attention_block.3} parent=43 // loop_footer_branch
                %270 = sbr.rel target = $region46
              $region51: #{vae_attention_block.3} parent=43 // loop_exit
                _
            $region44: #{vae_attention_block.3} parent=35 // pred_fallthru
              _
          $region36: #{vae_attention_block.3} parent=31 // pred_fallthru
            _
          %314 = vnop
        $region32: #{vae_attention_block.3} parent=23 // pred_fallthru
          _
        // Predicated region
        $region70: #{vae_attention_block.3} parent=23 // pred_check
          %p315 = pneg %p109
        $region71: #{vae_attention_block.3} parent=23 // pred_check_branch
          %317 = sbr.rel (%p315) target = $region73
        $region72: #{vae_attention_block.3} parent=23 // pred_region
          %s318 = smul.u32 16, %s21
          %p319 = scmp.lt.s32.totalorder %s19, 1
          %s320 = scalar_select %p319, %s19, 1
          %p321 = scmp.lt.s32.totalorder %s318, 31
          %s322 = scalar_select %p321, %s318, 31
          %s323 = smul.addr %s320, 32
          %s324 = sadd.s32 %s322, %s323
          %s325 = smul.addr %s324, 4
          %s326 = scalar_lea.vmem %s2, %s325
          %s327 = smul.u32 16, %s21
        $region73: #{vae_attention_block.3} parent=23 // pred_fallthru
          _
        // Predicated region
        $region74: #{vae_attention_block.3} parent=23 // pred_check
          %p328 = pneg %p137
        $region75: #{vae_attention_block.3} parent=23 // pred_check_branch
          %330 = sbr.rel (%p328) target = $region77
        $region76: #{vae_attention_block.3} parent=23 // pred_region
          %s331 = sand.u32 %s127, 1
          %s332 = sand.u32 %s127, 1
          %s333 = smul.addr %s332, 32
          %s334 = scalar_lea.vmem [#allocation6], %s333
          %s335 = smul.addr %s19, 8
          %s336 = sadd.s32 %s20, %s335
          %s337 = smul.addr %s336, 8
          %s338 = scalar_lea.vmem %s3, %s337
          // Predicated region
          $region78: #{vae_attention_block.3} parent=76 // pred_check
            _
          $region79: #{vae_attention_block.3} parent=76 // pred_check_branch
            %340 = sbr.rel (0) target = $region81
          $region80: #{vae_attention_block.3} parent=76 // pred_region
            // Predicated region
            $region82: #{vae_attention_block.3} parent=80 // pred_check
              _
            $region83: #{vae_attention_block.3} parent=80 // pred_check_branch
              %342 = sbr.rel (0) target = $region85
            $region84: #{vae_attention_block.3} parent=80 // pred_region
              // Predicated region
              $region97: #{vae_attention_block.3} parent=84 // pred_check
                _
              $region98: #{vae_attention_block.3} parent=84 // pred_check_branch
                %364 = sbr.rel (0) target = $region100
              $region99: #{vae_attention_block.3} parent=84 // pred_region
                loop: start=0, step=1, limit=1
                $region101: #{vae_attention_block.3} parent=99 // loop_pre_header
                  _
                $region102: #{vae_attention_block.3} parent=99 // loop_header
                  %s366 = sphi 0, %s370
                  %p367 = scmp.ge.s32.totalorder %s366, 1
                  %s371 = sphi %s338, %s338
                  %s372 = sphi %s334, %s334
                $region103: #{vae_attention_block.3} parent=99 // loop_header_branch
                  %369 = sbr.rel (%p367) target = $region107
                $region104: #{vae_attention_block.3} parent=99 // loop_body
                  %v373 = vld [vmem:[%s371] sm:$0xff]
                  %374 = vst [vmem:[%s372] sm:$0xff] %v373
                  %v375 = vld [vmem:[%s371 + $0x10] sm:$0xff]
                  %376 = vst [vmem:[%s372 + $0x8] sm:$0xff] %v375
                  %v377 = vld [vmem:[%s371 + $0x20] sm:$0xff]
                  %378 = vst [vmem:[%s372 + $0x10] sm:$0xff] %v377
                  %v379 = vld [vmem:[%s371 + $0x30] sm:$0xff]
                  %380 = vst [vmem:[%s372 + $0x18] sm:$0xff] %v379
                $region105: #{vae_attention_block.3} parent=99 // loop_footer
                  %s370 = sadd.s32 1, %s366
                $region106: #{vae_attention_block.3} parent=99 // loop_footer_branch
                  %365 = sbr.rel target = $region102
                $region107: #{vae_attention_block.3} parent=99 // loop_exit
                  _
              $region100: #{vae_attention_block.3} parent=84 // pred_fallthru
                _
              // Predicated region
              $region108: #{vae_attention_block.3} parent=84 // pred_check
                _
              $region109: #{vae_attention_block.3} parent=84 // pred_check_branch
                %382 = sbr.rel target = $region111
              $region110: #{vae_attention_block.3} parent=84 // pred_region
                _
              $region111: #{vae_attention_block.3} parent=84 // pred_fallthru
                _
            $region85: #{vae_attention_block.3} parent=80 // pred_fallthru
              _
            // Predicated region
            $region86: #{vae_attention_block.3} parent=80 // pred_check
              _
            $region87: #{vae_attention_block.3} parent=80 // pred_check_branch
              %344 = sbr.rel target = $region89
            $region88: #{vae_attention_block.3} parent=80 // pred_region
              %s346 = ssub.s32 256, 1
              loop: start=0, step=1, limit=1
              $region90: #{vae_attention_block.3} parent=88 // loop_pre_header
                _
              $region91: #{vae_attention_block.3} parent=88 // loop_header
                %s348 = sphi 0, %s352
                %p349 = scmp.ge.s32.totalorder %s348, 1
                %s353 = sphi %s338, %s338
                %s354 = sphi %s334, %s334
              $region92: #{vae_attention_block.3} parent=88 // loop_header_branch
                %351 = sbr.rel (%p349) target = $region96
              $region93: #{vae_attention_block.3} parent=88 // loop_body
                %v355 = vld [vmem:[%s353] sm:%s346]
                %356 = vst [vmem:[%s354] sm:%s346] %v355
                %v357 = vld [vmem:[%s353 + $0x10] sm:%s346]
                %358 = vst [vmem:[%s354 + $0x8] sm:%s346] %v357
                %v359 = vld [vmem:[%s353 + $0x20] sm:%s346]
                %360 = vst [vmem:[%s354 + $0x10] sm:%s346] %v359
                %v361 = vld [vmem:[%s353 + $0x30] sm:%s346]
                %362 = vst [vmem:[%s354 + $0x18] sm:%s346] %v361
              $region94: #{vae_attention_block.3} parent=88 // loop_footer
                %s352 = sadd.s32 1, %s348
              $region95: #{vae_attention_block.3} parent=88 // loop_footer_branch
                %347 = sbr.rel target = $region91
              $region96: #{vae_attention_block.3} parent=88 // loop_exit
                _
            $region89: #{vae_attention_block.3} parent=80 // pred_fallthru
              _
          $region81: #{vae_attention_block.3} parent=76 // pred_fallthru
            _
          %383 = vnop
        $region77: #{vae_attention_block.3} parent=23 // pred_fallthru
          _
      $region24: #{vae_attention_block.3} parent=5 // pred_fallthru
        _
      %p384 = scmp.le.s32.totalorder 1, %s12
      %p385 = scmp.lt.s32.totalorder %s12, 9
      %p386 = pnand %p384, %p385
      %p387 = pneg %p386
      // Predicated region
      $region112: #{vae_attention_block.3} parent=5 // pred_check
        _
      $region113: #{vae_attention_block.3} parent=5 // pred_check_branch
        %389 = sbr.rel (%p386) target = $region115
      $region114: #{vae_attention_block.3} parent=5 // pred_region
        %s390 = ssub.s32 %s12, 1
        %s391 = sand.u32 %s74, 1
        %s392 = sand.u32 %s74, 1
        %s393 = smul.addr %s392, 16
        %s394 = scalar_lea.vmem [#allocation5], %s393
        // Predicated region
        $region116: #{vae_attention_block.3} parent=114 // pred_check
          %p395 = pneg %p87
        $region117: #{vae_attention_block.3} parent=114 // pred_check_branch
          %397 = sbr.rel (%p395) target = $region119
        $region118: #{vae_attention_block.3} parent=114 // pred_region
          _
        $region119: #{vae_attention_block.3} parent=114 // pred_fallthru
          _
        %s398 = sand.u32 %s130, 1
        %s399 = sand.u32 %s130, 1
        %s400 = smul.addr %s399, 32
        %s401 = scalar_lea.vmem [#allocation6], %s400
        // Predicated region
        $region120: #{vae_attention_block.3} parent=114 // pred_check
          %p402 = pneg %p143
        $region121: #{vae_attention_block.3} parent=114 // pred_check_branch
          %404 = sbr.rel (%p402) target = $region123
        $region122: #{vae_attention_block.3} parent=114 // pred_region
          _
        $region123: #{vae_attention_block.3} parent=114 // pred_fallthru
          _
        %s405 = smul.u32 16, %s23
        %p406 = scmp.lt.s32.totalorder %s22, 1
        %s407 = scalar_select %p406, %s22, 1
        %p408 = scmp.lt.s32.totalorder %s405, 31
        %s409 = scalar_select %p408, %s405, 31
        %s410 = smul.addr %s407, 32
        %s411 = sadd.s32 %s409, %s410
        %s412 = smul.addr %s411, 4
        %s413 = scalar_lea.vmem %s0, %s412
        %p414 = pneg %p59
        %p415 = pneg %p56
        %s416 = sand.u32 %s74, 1
        %s417 = sand.u32 %s74, 1
        %s418 = smul.addr %s417, 16
        %s419 = scalar_lea.vmem [#allocation5], %s418
        %p420 = pneg %p87
        %p421 = pneg %p84
        %s422 = smul.u32 16, %s24
        %p423 = scmp.lt.s32.totalorder %s22, 1
        %s424 = scalar_select %p423, %s22, 1
        %p425 = scmp.lt.s32.totalorder %s422, 31
        %s426 = scalar_select %p425, %s422, 31
        %s427 = smul.addr %s424, 32
        %s428 = sadd.s32 %s426, %s427
        %s429 = smul.addr %s428, 4
        %s430 = scalar_lea.vmem %s2, %s429
        %p431 = pneg %p115
        %p432 = pneg %p112
        %s433 = sand.u32 %s130, 1
        %s434 = sand.u32 %s130, 1
        %s435 = smul.addr %s434, 32
        %s436 = scalar_lea.vmem [#allocation6], %s435
        %p437 = pneg %p143
        %p438 = pneg %p140
        %p439 = pneg %p164
        %p440 = pneg %p161
        %p441 = pneg %p185
        %p442 = pneg %p182
        %p443 = pneg %p213
        %p444 = pneg %p210
        %s445 = sand.u32 %s200, 1
        %s446 = sand.u32 %s200, 1
        %s447 = smul.addr %s446, 32
        %s448 = scalar_lea.vmem [#allocation7], %s447
        %s449 = smul.u32 16, %s23
        %p450 = scmp.lt.s32.totalorder %s22, 1
        %s451 = scalar_select %p450, %s22, 1
        %p452 = scmp.lt.s32.totalorder %s449, 31
        %s453 = scalar_select %p452, %s449, 31
        %s454 = smul.addr %s451, 32
        %s455 = sadd.s32 %s453, %s454
        %s456 = smul.addr %s455, 4
        %s457 = scalar_lea.vmem %s0, %s456
        %s458 = smul.u32 16, %s23
        %s459 = smul.u32 16, %s24
        %p460 = scmp.lt.s32.totalorder %s22, 1
        %s461 = scalar_select %p460, %s22, 1
        %p462 = scmp.lt.s32.totalorder %s459, 31
        %s463 = scalar_select %p462, %s459, 31
        %s464 = smul.addr %s461, 32
        %s465 = sadd.s32 %s463, %s464
        %s466 = smul.addr %s465, 4
        %s467 = scalar_lea.vmem %s2, %s466
        %s468 = smul.u32 16, %s24
        %p470 = scmp.eq.s32.totalorder %s24, 0
        // Predicated region
        $region124: #{vae_attention_block.3} parent=114 // pred_check
          %p471 = pneg %p470
        $region125: #{vae_attention_block.3} parent=114 // pred_check_branch
          %473 = sbr.rel (%p471) target = $region127
        $region126: #{vae_attention_block.3} parent=114 // pred_region
          %vm474 = vcmask 7168
          %475 = vst.msk [vmem:[#allocation2] sm:$0xff] %vm474, -inf
          %476 = vst.msk [vmem:[#allocation2 + $0x8] sm:$0xff] %vm474, -inf
          %477 = vst.msk [vmem:[#allocation2 + $0x10] sm:$0xff] %vm474, -inf
          %478 = vst.msk [vmem:[#allocation2 + $0x18] sm:$0xff] %vm474, -inf
          %479 = vst.msk [vmem:[#allocation2 + $0x20] sm:$0xff] %vm474, -inf
          %480 = vst.msk [vmem:[#allocation2 + $0x28] sm:$0xff] %vm474, -inf
          %481 = vst.msk [vmem:[#allocation2 + $0x30] sm:$0xff] %vm474, -inf
          %482 = vst.msk [vmem:[#allocation2 + $0x38] sm:$0xff] %vm474, -inf
          %483 = vst.msk [vmem:[#allocation2 + $0x40] sm:$0xff] %vm474, -inf
          %484 = vst.msk [vmem:[#allocation2 + $0x48] sm:$0xff] %vm474, -inf
          %485 = vst.msk [vmem:[#allocation2 + $0x50] sm:$0xff] %vm474, -inf
          %486 = vst.msk [vmem:[#allocation2 + $0x58] sm:$0xff] %vm474, -inf
          %487 = vst.msk [vmem:[#allocation2 + $0x60] sm:$0xff] %vm474, -inf
          %488 = vst.msk [vmem:[#allocation2 + $0x68] sm:$0xff] %vm474, -inf
          %489 = vst.msk [vmem:[#allocation2 + $0x70] sm:$0xff] %vm474, -inf
          %490 = vst.msk [vmem:[#allocation2 + $0x78] sm:$0xff] %vm474, -inf
          %491 = vst.msk [vmem:[#allocation3] sm:$0xff] %vm474, 0.0
          %492 = vst.msk [vmem:[#allocation3 + $0x8] sm:$0xff] %vm474, 0.0
          %493 = vst.msk [vmem:[#allocation3 + $0x10] sm:$0xff] %vm474, 0.0
          %494 = vst.msk [vmem:[#allocation3 + $0x18] sm:$0xff] %vm474, 0.0
          %495 = vst.msk [vmem:[#allocation3 + $0x20] sm:$0xff] %vm474, 0.0
          %496 = vst.msk [vmem:[#allocation3 + $0x28] sm:$0xff] %vm474, 0.0
          %497 = vst.msk [vmem:[#allocation3 + $0x30] sm:$0xff] %vm474, 0.0
          %498 = vst.msk [vmem:[#allocation3 + $0x38] sm:$0xff] %vm474, 0.0
          %499 = vst.msk [vmem:[#allocation3 + $0x40] sm:$0xff] %vm474, 0.0
          %500 = vst.msk [vmem:[#allocation3 + $0x48] sm:$0xff] %vm474, 0.0
          %501 = vst.msk [vmem:[#allocation3 + $0x50] sm:$0xff] %vm474, 0.0
          %502 = vst.msk [vmem:[#allocation3 + $0x58] sm:$0xff] %vm474, 0.0
          %503 = vst.msk [vmem:[#allocation3 + $0x60] sm:$0xff] %vm474, 0.0
          %504 = vst.msk [vmem:[#allocation3 + $0x68] sm:$0xff] %vm474, 0.0
          %505 = vst.msk [vmem:[#allocation3 + $0x70] sm:$0xff] %vm474, 0.0
          %506 = vst.msk [vmem:[#allocation3 + $0x78] sm:$0xff] %vm474, 0.0
          %vm507 = vcmask 261120
          %508 = vst.msk [vmem:[#allocation4] sm:$0xff] %vm507, 0.0
          %509 = vst.msk [vmem:[#allocation4 + $0x8] sm:$0xff] %vm507, 0.0
          %510 = vst.msk [vmem:[#allocation4 + $0x10] sm:$0xff] %vm507, 0.0
          %511 = vst.msk [vmem:[#allocation4 + $0x18] sm:$0xff] %vm507, 0.0
          %512 = vst.msk [vmem:[#allocation4 + $0x20] sm:$0xff] %vm507, 0.0
          %513 = vst.msk [vmem:[#allocation4 + $0x28] sm:$0xff] %vm507, 0.0
          %514 = vst.msk [vmem:[#allocation4 + $0x30] sm:$0xff] %vm507, 0.0
          %515 = vst.msk [vmem:[#allocation4 + $0x38] sm:$0xff] %vm507, 0.0
          %516 = vst.msk [vmem:[#allocation4 + $0x40] sm:$0xff] %vm507, 0.0
          %517 = vst.msk [vmem:[#allocation4 + $0x48] sm:$0xff] %vm507, 0.0
          %518 = vst.msk [vmem:[#allocation4 + $0x50] sm:$0xff] %vm507, 0.0
          %519 = vst.msk [vmem:[#allocation4 + $0x58] sm:$0xff] %vm507, 0.0
          %520 = vst.msk [vmem:[#allocation4 + $0x60] sm:$0xff] %vm507, 0.0
          %521 = vst.msk [vmem:[#allocation4 + $0x68] sm:$0xff] %vm507, 0.0
          %522 = vst.msk [vmem:[#allocation4 + $0x70] sm:$0xff] %vm507, 0.0
          %523 = vst.msk [vmem:[#allocation4 + $0x78] sm:$0xff] %vm507, 0.0
        $region127: #{vae_attention_block.3} parent=114 // pred_fallthru
          _
        %v524 = vld [vmem:[%s457] sm:$0xf]
        %v525 = vld [vmem:[%s457 + $0x4] sm:$0xf]
        %v526 = vld [vmem:[%s457 + $0x8] sm:$0xf]
        %v527 = vld [vmem:[%s457 + $0xc] sm:$0xf]
        %v528 = vld [vmem:[%s457 + $0x10] sm:$0xf]
        %v529 = vld [vmem:[%s457 + $0x14] sm:$0xf]
        %v530 = vld [vmem:[%s457 + $0x18] sm:$0xf]
        %v531 = vld [vmem:[%s457 + $0x1c] sm:$0xf]
        %v532 = vld [vmem:[%s457 + $0x20] sm:$0xf]
        %v533 = vld [vmem:[%s457 + $0x24] sm:$0xf]
        %v534 = vld [vmem:[%s457 + $0x28] sm:$0xf]
        %v535 = vld [vmem:[%s457 + $0x2c] sm:$0xf]
        %v536 = vld [vmem:[%s457 + $0x30] sm:$0xf]
        %v537 = vld [vmem:[%s457 + $0x34] sm:$0xf]
        %v538 = vld [vmem:[%s457 + $0x38] sm:$0xf]
        %v539 = vld [vmem:[%s457 + $0x3c] sm:$0xf]
        %v540 = vld [vmem:[%s394] sm:$0xf]
        %v541 = vld [vmem:[%s394 + $0x4] sm:$0xf]
        %v542 = vld [vmem:[%s394 + $0x8] sm:$0xf]
        %v543 = vld [vmem:[%s394 + $0xc] sm:$0xf]
        %v560 = vunpack.c.l.b16 %v524
        %v561 = vunpack.c.l.b16 %v525
        %v562 = vunpack.c.l.b16 %v526
        %v563 = vunpack.c.l.b16 %v527
        %v564 = vunpack.c.l.b16 %v528
        %v565 = vunpack.c.l.b16 %v529
        %v566 = vunpack.c.l.b16 %v530
        %v567 = vunpack.c.l.b16 %v531
        %v568 = vunpack.c.l.b16 %v532
        %v569 = vunpack.c.l.b16 %v533
        %v570 = vunpack.c.l.b16 %v534
        %v571 = vunpack.c.l.b16 %v535
        %v572 = vunpack.c.l.b16 %v536
        %v573 = vunpack.c.l.b16 %v537
        %v574 = vunpack.c.l.b16 %v538
        %v575 = vunpack.c.l.b16 %v539
        %v576 = vpack.c.b16 %v561, %v560
        %v577 = vpack.c.b16 %v563, %v562
        %v578 = vpack.c.b16 %v565, %v564
        %v579 = vpack.c.b16 %v567, %v566
        %v580 = vpack.c.b16 %v569, %v568
        %v581 = vpack.c.b16 %v571, %v570
        %v582 = vpack.c.b16 %v573, %v572
        %v583 = vpack.c.b16 %v575, %v574
        %v588 = vunpack.c.l.b16 %v540
        %v589 = vunpack.c.l.b16 %v541
        %v590 = vunpack.c.l.b16 %v542
        %v591 = vunpack.c.l.b16 %v543
        %v592 = vpack.c.b16 %v589, %v588
        %v593 = vpack.c.b16 %v591, %v590
        %vm596 = vcmask 261120
        %v598 = vsel %vm596, %v576, 0
        %v601 = vsel %vm596, %v577, 0
        %v604 = vsel %vm596, %v578, 0
        %v607 = vsel %vm596, %v579, 0
        %v610 = vsel %vm596, %v580, 0
        %v613 = vsel %vm596, %v581, 0
        %v616 = vsel %vm596, %v582, 0
        %v619 = vsel %vm596, %v583, 0
        %621 = vmatprep.subr.bf16.mxu0 0
        %622 = vmatpush1.bf16.msra.mxu0 0
        %623 = vmatprep.subr.bf16.mxu0 0
        %624 = vmatpush1.bf16.msra.mxu0 0
        %625 = vmatprep.subr.bf16.mxu0 0
        %626 = vmatpush1.bf16.msra.mxu0 0
        %627 = vmatprep.subr.bf16.mxu0 0
        %628 = vmatpush1.bf16.msra.mxu0 0
        %629 = vmatprep.subr.bf16.mxu0 0
        %630 = vmatpush1.bf16.msra.mxu0 0
        %631 = vmatprep.subr.bf16.mxu0 0
        %632 = vmatpush1.bf16.msra.mxu0 0
        %633 = vmatprep.subr.bf16.mxu0 0
        %634 = vmatpush1.bf16.msra.mxu0 %v593
        %635 = vmatprep.subr.bf16.mxu0 0
        %636 = vmatpush1.bf16.msra.mxu0 %v592
        %637 = vmatprep.subr.bf16.mxu0 0
        %638 = vmatpush2.bf16.msra.mxu0 0
        %639 = vmatprep.subr.bf16.mxu0 0
        %640 = vmatpush2.bf16.msra.mxu0 0
        %641 = vmatprep.subr.bf16.mxu0 0
        %642 = vmatpush2.bf16.msra.mxu0 0
        %643 = vmatprep.subr.bf16.mxu0 0
        %644 = vmatpush2.bf16.msra.mxu0 0
        %645 = vmatprep.subr.bf16.mxu0 0
        %646 = vmatpush2.bf16.msra.mxu0 0
        %647 = vmatprep.subr.bf16.mxu0 0
        %648 = vmatpush2.bf16.msra.mxu0 0
        %649 = vmatprep.subr.bf16.mxu0 0
        %650 = vmatpush2.bf16.msra.mxu0 0
        %651 = vmatprep.subr.bf16.mxu0 0
        %652 = vmatpush2.bf16.msra.mxu0 0
        %653 = vmatprep.mubr.bf16.mxu0 0
        %654 = vmatmul.mubr.bf16.gmra.mxu0 %v598
        %v655 = vpop.f32.mrf.mxu0
        %v656 = vadd.f32 0.0, %v655
        %v657 = vpop.f32.mrf.mxu0
        %v658 = vpop.f32.mrf.mxu0
        %v659 = vadd.f32 0.0, %v658
        %v660 = vpop.f32.mrf.mxu0
        %661 = vmatprep.mubr.bf16.mxu0 0
        %662 = vmatmul.mubr.bf16.gmra.mxu0 %v601
        %v663 = vpop.f32.mrf.mxu0
        %v664 = vadd.f32 0.0, %v663
        %v665 = vpop.f32.mrf.mxu0
        %v666 = vpop.f32.mrf.mxu0
        %v667 = vadd.f32 0.0, %v666
        %v668 = vpop.f32.mrf.mxu0
        %669 = vmatprep.mubr.bf16.mxu0 0
        %670 = vmatmul.mubr.bf16.gmra.mxu0 %v604
        %v671 = vpop.f32.mrf.mxu0
        %v672 = vadd.f32 0.0, %v671
        %v673 = vpop.f32.mrf.mxu0
        %v674 = vpop.f32.mrf.mxu0
        %v675 = vadd.f32 0.0, %v674
        %v676 = vpop.f32.mrf.mxu0
        %677 = vmatprep.mubr.bf16.mxu0 0
        %678 = vmatmul.mubr.bf16.gmra.mxu0 %v607
        %v679 = vpop.f32.mrf.mxu0
        %v680 = vadd.f32 0.0, %v679
        %v681 = vpop.f32.mrf.mxu0
        %v682 = vpop.f32.mrf.mxu0
        %v683 = vadd.f32 0.0, %v682
        %v684 = vpop.f32.mrf.mxu0
        %685 = vmatprep.mubr.bf16.mxu0 0
        %686 = vmatmul.mubr.bf16.gmra.mxu0 %v610
        %v687 = vpop.f32.mrf.mxu0
        %v688 = vadd.f32 0.0, %v687
        %v689 = vpop.f32.mrf.mxu0
        %v690 = vpop.f32.mrf.mxu0
        %v691 = vadd.f32 0.0, %v690
        %v692 = vpop.f32.mrf.mxu0
        %693 = vmatprep.mubr.bf16.mxu0 0
        %694 = vmatmul.mubr.bf16.gmra.mxu0 %v613
        %v695 = vpop.f32.mrf.mxu0
        %v696 = vadd.f32 0.0, %v695
        %v697 = vpop.f32.mrf.mxu0
        %v698 = vpop.f32.mrf.mxu0
        %v699 = vadd.f32 0.0, %v698
        %v700 = vpop.f32.mrf.mxu0
        %701 = vmatprep.mubr.bf16.mxu0 0
        %702 = vmatmul.mubr.bf16.gmra.mxu0 %v616
        %v703 = vpop.f32.mrf.mxu0
        %v704 = vadd.f32 0.0, %v703
        %v705 = vpop.f32.mrf.mxu0
        %v706 = vpop.f32.mrf.mxu0
        %v707 = vadd.f32 0.0, %v706
        %v708 = vpop.f32.mrf.mxu0
        %709 = vmatprep.mubr.bf16.mxu0 0
        %710 = vmatmul.mubr.bf16.gmra.mxu0 %v619
        %v711 = vpop.f32.mrf.mxu0
        %v712 = vadd.f32 0.0, %v711
        %v713 = vpop.f32.mrf.mxu0
        %v714 = vpop.f32.mrf.mxu0
        %v715 = vadd.f32 0.0, %v714
        %v716 = vpop.f32.mrf.mxu0
        %717 = vdwg.mxu0
        %v718 = vld [vmem:[#allocation2] sm:$0xff]
        %v719 = vld [vmem:[#allocation2 + $0x8] sm:$0xff]
        %v720 = vld [vmem:[#allocation2 + $0x10] sm:$0xff]
        %v721 = vld [vmem:[#allocation2 + $0x18] sm:$0xff]
        %v722 = vld [vmem:[#allocation2 + $0x20] sm:$0xff]
        %v723 = vld [vmem:[#allocation2 + $0x28] sm:$0xff]
        %v724 = vld [vmem:[#allocation2 + $0x30] sm:$0xff]
        %v725 = vld [vmem:[#allocation2 + $0x38] sm:$0xff]
        %v726 = vld [vmem:[#allocation2 + $0x40] sm:$0xff]
        %v727 = vld [vmem:[#allocation2 + $0x48] sm:$0xff]
        %v728 = vld [vmem:[#allocation2 + $0x50] sm:$0xff]
        %v729 = vld [vmem:[#allocation2 + $0x58] sm:$0xff]
        %v730 = vld [vmem:[#allocation2 + $0x60] sm:$0xff]
        %v731 = vld [vmem:[#allocation2 + $0x68] sm:$0xff]
        %v732 = vld [vmem:[#allocation2 + $0x70] sm:$0xff]
        %v733 = vld [vmem:[#allocation2 + $0x78] sm:$0xff]
        %734 = vmax.xlane.f32.xlu0 %v656
        %v735 = vpop.xlane.xlu0 %734
        %736 = vmax.xlane.f32.xlu0 %v659
        %v737 = vpop.xlane.xlu0 %736
        %738 = vmax.xlane.f32.xlu0 %v664
        %v739 = vpop.xlane.xlu0 %738
        %740 = vmax.xlane.f32.xlu0 %v667
        %v741 = vpop.xlane.xlu0 %740
        %742 = vmax.xlane.f32.xlu0 %v672
        %v743 = vpop.xlane.xlu0 %742
        %744 = vmax.xlane.f32.xlu0 %v675
        %v745 = vpop.xlane.xlu0 %744
        %746 = vmax.xlane.f32.xlu0 %v680
        %v747 = vpop.xlane.xlu0 %746
        %748 = vmax.xlane.f32.xlu0 %v683
        %v749 = vpop.xlane.xlu0 %748
        %750 = vmax.xlane.f32.xlu0 %v688
        %v751 = vpop.xlane.xlu0 %750
        %752 = vmax.xlane.f32.xlu0 %v691
        %v753 = vpop.xlane.xlu0 %752
        %754 = vmax.xlane.f32.xlu0 %v696
        %v755 = vpop.xlane.xlu0 %754
        %756 = vmax.xlane.f32.xlu0 %v699
        %v757 = vpop.xlane.xlu0 %756
        %758 = vmax.xlane.f32.xlu0 %v704
        %v759 = vpop.xlane.xlu0 %758
        %760 = vmax.xlane.f32.xlu0 %v707
        %v761 = vpop.xlane.xlu0 %760
        %762 = vmax.xlane.f32.xlu0 %v712
        %v763 = vpop.xlane.xlu0 %762
        %764 = vmax.xlane.f32.xlu0 %v715
        %v765 = vpop.xlane.xlu0 %764
        %v766 = vmax.f32 %v718, %v735
        %v767 = vmax.f32 %v719, %v737
        %v768 = vmax.f32 %v720, %v739
        %v769 = vmax.f32 %v721, %v741
        %v770 = vmax.f32 %v722, %v743
        %v771 = vmax.f32 %v723, %v745
        %v772 = vmax.f32 %v724, %v747
        %v773 = vmax.f32 %v725, %v749
        %v774 = vmax.f32 %v726, %v751
        %v775 = vmax.f32 %v727, %v753
        %v776 = vmax.f32 %v728, %v755
        %v777 = vmax.f32 %v729, %v757
        %v778 = vmax.f32 %v730, %v759
        %v779 = vmax.f32 %v731, %v761
        %v780 = vmax.f32 %v732, %v763
        %v781 = vmax.f32 %v733, %v765
        %v782 = vsub.f32 %v718, %v766
        %v783 = vsub.f32 %v719, %v767
        %v784 = vsub.f32 %v720, %v768
        %v785 = vsub.f32 %v721, %v769
        %v786 = vsub.f32 %v722, %v770
        %v787 = vsub.f32 %v723, %v771
        %v788 = vsub.f32 %v724, %v772
        %v789 = vsub.f32 %v725, %v773
        %v790 = vsub.f32 %v726, %v774
        %v791 = vsub.f32 %v727, %v775
        %v792 = vsub.f32 %v728, %v776
        %v793 = vsub.f32 %v729, %v777
        %v794 = vsub.f32 %v730, %v778
        %v795 = vsub.f32 %v731, %v779
        %v796 = vsub.f32 %v732, %v780
        %v797 = vsub.f32 %v733, %v781
        %v798 = vmul.f32 %v782, 1.442695
        %v799 = vpow.pop %v798
        %v800 = vmul.f32 %v783, 1.442695
        %v801 = vpow.pop %v800
        %v802 = vmul.f32 %v784, 1.442695
        %v803 = vpow.pop %v802
        %v804 = vmul.f32 %v785, 1.442695
        %v805 = vpow.pop %v804
        %v806 = vmul.f32 %v786, 1.442695
        %v807 = vpow.pop %v806
        %v808 = vmul.f32 %v787, 1.442695
        %v809 = vpow.pop %v808
        %v810 = vmul.f32 %v788, 1.442695
        %v811 = vpow.pop %v810
        %v812 = vmul.f32 %v789, 1.442695
        %v813 = vpow.pop %v812
        %v814 = vmul.f32 %v790, 1.442695
        %v815 = vpow.pop %v814
        %v816 = vmul.f32 %v791, 1.442695
        %v817 = vpow.pop %v816
        %v818 = vmul.f32 %v792, 1.442695
        %v819 = vpow.pop %v818
        %v820 = vmul.f32 %v793, 1.442695
        %v821 = vpow.pop %v820
        %v822 = vmul.f32 %v794, 1.442695
        %v823 = vpow.pop %v822
        %v824 = vmul.f32 %v795, 1.442695
        %v825 = vpow.pop %v824
        %v826 = vmul.f32 %v796, 1.442695
        %v827 = vpow.pop %v826
        %v828 = vmul.f32 %v797, 1.442695
        %v829 = vpow.pop %v828
        %831 = vset.pattern.permute.xlu0 0
        %832 = vperm.xlu0 %831, %v766
        %v833 = vpop.permute.xlu0 %832
        %836 = vset.pattern.permute.xlu0 0
        %837 = vperm.xlu0 %836, %v767
        %v838 = vpop.permute.xlu0 %837
        %841 = vset.pattern.permute.xlu0 0
        %842 = vperm.xlu0 %841, %v768
        %v843 = vpop.permute.xlu0 %842
        %846 = vset.pattern.permute.xlu0 0
        %847 = vperm.xlu0 %846, %v769
        %v848 = vpop.permute.xlu0 %847
        %851 = vset.pattern.permute.xlu0 0
        %852 = vperm.xlu0 %851, %v770
        %v853 = vpop.permute.xlu0 %852
        %856 = vset.pattern.permute.xlu0 0
        %857 = vperm.xlu0 %856, %v771
        %v858 = vpop.permute.xlu0 %857
        %861 = vset.pattern.permute.xlu0 0
        %862 = vperm.xlu0 %861, %v772
        %v863 = vpop.permute.xlu0 %862
        %866 = vset.pattern.permute.xlu0 0
        %867 = vperm.xlu0 %866, %v773
        %v868 = vpop.permute.xlu0 %867
        %871 = vset.pattern.permute.xlu0 0
        %872 = vperm.xlu0 %871, %v774
        %v873 = vpop.permute.xlu0 %872
        %876 = vset.pattern.permute.xlu0 0
        %877 = vperm.xlu0 %876, %v775
        %v878 = vpop.permute.xlu0 %877
        %881 = vset.pattern.permute.xlu0 0
        %882 = vperm.xlu0 %881, %v776
        %v883 = vpop.permute.xlu0 %882
        %886 = vset.pattern.permute.xlu0 0
        %887 = vperm.xlu0 %886, %v777
        %v888 = vpop.permute.xlu0 %887
        %891 = vset.pattern.permute.xlu0 0
        %892 = vperm.xlu0 %891, %v778
        %v893 = vpop.permute.xlu0 %892
        %896 = vset.pattern.permute.xlu0 0
        %897 = vperm.xlu0 %896, %v779
        %v898 = vpop.permute.xlu0 %897
        %901 = vset.pattern.permute.xlu0 0
        %902 = vperm.xlu0 %901, %v780
        %v903 = vpop.permute.xlu0 %902
        %906 = vset.pattern.permute.xlu0 0
        %907 = vperm.xlu0 %906, %v781
        %v908 = vpop.permute.xlu0 %907
        %v910 = vsub.f32 %v656, %v833
        %v911 = vsub.f32 %v659, %v838
        %v912 = vsub.f32 %v664, %v843
        %v913 = vsub.f32 %v667, %v848
        %v914 = vsub.f32 %v672, %v853
        %v915 = vsub.f32 %v675, %v858
        %v916 = vsub.f32 %v680, %v863
        %v917 = vsub.f32 %v683, %v868
        %v918 = vsub.f32 %v688, %v873
        %v919 = vsub.f32 %v691, %v878
        %v920 = vsub.f32 %v696, %v883
        %v921 = vsub.f32 %v699, %v888
        %v922 = vsub.f32 %v704, %v893
        %v923 = vsub.f32 %v707, %v898
        %v924 = vsub.f32 %v712, %v903
        %v925 = vsub.f32 %v715, %v908
        %v926 = vmul.f32 %v910, 1.442695
        %v927 = vpow.pop %v926
        %v928 = vmul.f32 %v911, 1.442695
        %v929 = vpow.pop %v928
        %v930 = vmul.f32 %v912, 1.442695
        %v931 = vpow.pop %v930
        %v932 = vmul.f32 %v913, 1.442695
        %v933 = vpow.pop %v932
        %v934 = vmul.f32 %v914, 1.442695
        %v935 = vpow.pop %v934
        %v936 = vmul.f32 %v915, 1.442695
        %v937 = vpow.pop %v936
        %v938 = vmul.f32 %v916, 1.442695
        %v939 = vpow.pop %v938
        %v940 = vmul.f32 %v917, 1.442695
        %v941 = vpow.pop %v940
        %v942 = vmul.f32 %v918, 1.442695
        %v943 = vpow.pop %v942
        %v944 = vmul.f32 %v919, 1.442695
        %v945 = vpow.pop %v944
        %v946 = vmul.f32 %v920, 1.442695
        %v947 = vpow.pop %v946
        %v948 = vmul.f32 %v921, 1.442695
        %v949 = vpow.pop %v948
        %v950 = vmul.f32 %v922, 1.442695
        %v951 = vpow.pop %v950
        %v952 = vmul.f32 %v923, 1.442695
        %v953 = vpow.pop %v952
        %v954 = vmul.f32 %v924, 1.442695
        %v955 = vpow.pop %v954
        %v956 = vmul.f32 %v925, 1.442695
        %v957 = vpow.pop %v956
        %v958 = vld [vmem:[#allocation3] sm:$0xff]
        %v959 = vld [vmem:[#allocation3 + $0x8] sm:$0xff]
        %v960 = vld [vmem:[#allocation3 + $0x10] sm:$0xff]
        %v961 = vld [vmem:[#allocation3 + $0x18] sm:$0xff]
        %v962 = vld [vmem:[#allocation3 + $0x20] sm:$0xff]
        %v963 = vld [vmem:[#allocation3 + $0x28] sm:$0xff]
        %v964 = vld [vmem:[#allocation3 + $0x30] sm:$0xff]
        %v965 = vld [vmem:[#allocation3 + $0x38] sm:$0xff]
        %v966 = vld [vmem:[#allocation3 + $0x40] sm:$0xff]
        %v967 = vld [vmem:[#allocation3 + $0x48] sm:$0xff]
        %v968 = vld [vmem:[#allocation3 + $0x50] sm:$0xff]
        %v969 = vld [vmem:[#allocation3 + $0x58] sm:$0xff]
        %v970 = vld [vmem:[#allocation3 + $0x60] sm:$0xff]
        %v971 = vld [vmem:[#allocation3 + $0x68] sm:$0xff]
        %v972 = vld [vmem:[#allocation3 + $0x70] sm:$0xff]
        %v973 = vld [vmem:[#allocation3 + $0x78] sm:$0xff]
        %v974 = vmul.f32 %v799, %v958
        %v975 = vmul.f32 %v801, %v959
        %v976 = vmul.f32 %v803, %v960
        %v977 = vmul.f32 %v805, %v961
        %v978 = vmul.f32 %v807, %v962
        %v979 = vmul.f32 %v809, %v963
        %v980 = vmul.f32 %v811, %v964
        %v981 = vmul.f32 %v813, %v965
        %v982 = vmul.f32 %v815, %v966
        %v983 = vmul.f32 %v817, %v967
        %v984 = vmul.f32 %v819, %v968
        %v985 = vmul.f32 %v821, %v969
        %v986 = vmul.f32 %v823, %v970
        %v987 = vmul.f32 %v825, %v971
        %v988 = vmul.f32 %v827, %v972
        %v989 = vmul.f32 %v829, %v973
        %990 = vadd.xlane.f32.xlu0 %v927
        %v991 = vpop.xlane.xlu0 %990
        %992 = vadd.xlane.f32.xlu0 %v929
        %v993 = vpop.xlane.xlu0 %992
        %994 = vadd.xlane.f32.xlu0 %v931
        %v995 = vpop.xlane.xlu0 %994
        %996 = vadd.xlane.f32.xlu0 %v933
        %v997 = vpop.xlane.xlu0 %996
        %998 = vadd.xlane.f32.xlu0 %v935
        %v999 = vpop.xlane.xlu0 %998
        %1000 = vadd.xlane.f32.xlu0 %v937
        %v1001 = vpop.xlane.xlu0 %1000
        %1002 = vadd.xlane.f32.xlu0 %v939
        %v1003 = vpop.xlane.xlu0 %1002
        %1004 = vadd.xlane.f32.xlu0 %v941
        %v1005 = vpop.xlane.xlu0 %1004
        %1006 = vadd.xlane.f32.xlu0 %v943
        %v1007 = vpop.xlane.xlu0 %1006
        %1008 = vadd.xlane.f32.xlu0 %v945
        %v1009 = vpop.xlane.xlu0 %1008
        %1010 = vadd.xlane.f32.xlu0 %v947
        %v1011 = vpop.xlane.xlu0 %1010
        %1012 = vadd.xlane.f32.xlu0 %v949
        %v1013 = vpop.xlane.xlu0 %1012
        %1014 = vadd.xlane.f32.xlu0 %v951
        %v1015 = vpop.xlane.xlu0 %1014
        %1016 = vadd.xlane.f32.xlu0 %v953
        %v1017 = vpop.xlane.xlu0 %1016
        %1018 = vadd.xlane.f32.xlu0 %v955
        %v1019 = vpop.xlane.xlu0 %1018
        %1020 = vadd.xlane.f32.xlu0 %v957
        %v1021 = vpop.xlane.xlu0 %1020
        %v1022 = vadd.f32 %v974, %v991
        %v1023 = vadd.f32 %v975, %v993
        %v1024 = vadd.f32 %v976, %v995
        %v1025 = vadd.f32 %v977, %v997
        %v1026 = vadd.f32 %v978, %v999
        %v1027 = vadd.f32 %v979, %v1001
        %v1028 = vadd.f32 %v980, %v1003
        %v1029 = vadd.f32 %v981, %v1005
        %v1030 = vadd.f32 %v982, %v1007
        %v1031 = vadd.f32 %v983, %v1009
        %v1032 = vadd.f32 %v984, %v1011
        %v1033 = vadd.f32 %v985, %v1013
        %v1034 = vadd.f32 %v986, %v1015
        %v1035 = vadd.f32 %v987, %v1017
        %v1036 = vadd.f32 %v988, %v1019
        %v1037 = vadd.f32 %v989, %v1021
        %vm1038 = vcmask 7168
        %1039 = vst.msk [vmem:[#allocation3] sm:$0xff] %vm1038, %v1022
        %1040 = vst.msk [vmem:[#allocation3 + $0x8] sm:$0xff] %vm1038, %v1023
        %1041 = vst.msk [vmem:[#allocation3 + $0x10] sm:$0xff] %vm1038, %v1024
        %1042 = vst.msk [vmem:[#allocation3 + $0x18] sm:$0xff] %vm1038, %v1025
        %1043 = vst.msk [vmem:[#allocation3 + $0x20] sm:$0xff] %vm1038, %v1026
        %1044 = vst.msk [vmem:[#allocation3 + $0x28] sm:$0xff] %vm1038, %v1027
        %1045 = vst.msk [vmem:[#allocation3 + $0x30] sm:$0xff] %vm1038, %v1028
        %1046 = vst.msk [vmem:[#allocation3 + $0x38] sm:$0xff] %vm1038, %v1029
        %1047 = vst.msk [vmem:[#allocation3 + $0x40] sm:$0xff] %vm1038, %v1030
        %1048 = vst.msk [vmem:[#allocation3 + $0x48] sm:$0xff] %vm1038, %v1031
        %1049 = vst.msk [vmem:[#allocation3 + $0x50] sm:$0xff] %vm1038, %v1032
        %1050 = vst.msk [vmem:[#allocation3 + $0x58] sm:$0xff] %vm1038, %v1033
        %1051 = vst.msk [vmem:[#allocation3 + $0x60] sm:$0xff] %vm1038, %v1034
        %1052 = vst.msk [vmem:[#allocation3 + $0x68] sm:$0xff] %vm1038, %v1035
        %1053 = vst.msk [vmem:[#allocation3 + $0x70] sm:$0xff] %vm1038, %v1036
        %1054 = vst.msk [vmem:[#allocation3 + $0x78] sm:$0xff] %vm1038, %v1037
        %v1055 = vld [vmem:[#allocation4] sm:$0xff]
        %v1056 = vld [vmem:[#allocation4 + $0x8] sm:$0xff]
        %v1057 = vld [vmem:[#allocation4 + $0x10] sm:$0xff]
        %v1058 = vld [vmem:[#allocation4 + $0x18] sm:$0xff]
        %v1059 = vld [vmem:[#allocation4 + $0x20] sm:$0xff]
        %v1060 = vld [vmem:[#allocation4 + $0x28] sm:$0xff]
        %v1061 = vld [vmem:[#allocation4 + $0x30] sm:$0xff]
        %v1062 = vld [vmem:[#allocation4 + $0x38] sm:$0xff]
        %v1063 = vld [vmem:[#allocation4 + $0x40] sm:$0xff]
        %v1064 = vld [vmem:[#allocation4 + $0x48] sm:$0xff]
        %v1065 = vld [vmem:[#allocation4 + $0x50] sm:$0xff]
        %v1066 = vld [vmem:[#allocation4 + $0x58] sm:$0xff]
        %v1067 = vld [vmem:[#allocation4 + $0x60] sm:$0xff]
        %v1068 = vld [vmem:[#allocation4 + $0x68] sm:$0xff]
        %v1069 = vld [vmem:[#allocation4 + $0x70] sm:$0xff]
        %v1070 = vld [vmem:[#allocation4 + $0x78] sm:$0xff]
        %1072 = vset.pattern.permute.xlu0 0
        %1073 = vperm.xlu0 %1072, %v799
        %v1074 = vpop.permute.xlu0 %1073
        %1077 = vset.pattern.permute.xlu0 0
        %1078 = vperm.xlu0 %1077, %v801
        %v1079 = vpop.permute.xlu0 %1078
        %1082 = vset.pattern.permute.xlu0 0
        %1083 = vperm.xlu0 %1082, %v803
        %v1084 = vpop.permute.xlu0 %1083
        %1087 = vset.pattern.permute.xlu0 0
        %1088 = vperm.xlu0 %1087, %v805
        %v1089 = vpop.permute.xlu0 %1088
        %1092 = vset.pattern.permute.xlu0 0
        %1093 = vperm.xlu0 %1092, %v807
        %v1094 = vpop.permute.xlu0 %1093
        %1097 = vset.pattern.permute.xlu0 0
        %1098 = vperm.xlu0 %1097, %v809
        %v1099 = vpop.permute.xlu0 %1098
        %1102 = vset.pattern.permute.xlu0 0
        %1103 = vperm.xlu0 %1102, %v811
        %v1104 = vpop.permute.xlu0 %1103
        %1107 = vset.pattern.permute.xlu0 0
        %1108 = vperm.xlu0 %1107, %v813
        %v1109 = vpop.permute.xlu0 %1108
        %1112 = vset.pattern.permute.xlu0 0
        %1113 = vperm.xlu0 %1112, %v815
        %v1114 = vpop.permute.xlu0 %1113
        %1117 = vset.pattern.permute.xlu0 0
        %1118 = vperm.xlu0 %1117, %v817
        %v1119 = vpop.permute.xlu0 %1118
        %1122 = vset.pattern.permute.xlu0 0
        %1123 = vperm.xlu0 %1122, %v819
        %v1124 = vpop.permute.xlu0 %1123
        %1127 = vset.pattern.permute.xlu0 0
        %1128 = vperm.xlu0 %1127, %v821
        %v1129 = vpop.permute.xlu0 %1128
        %1132 = vset.pattern.permute.xlu0 0
        %1133 = vperm.xlu0 %1132, %v823
        %v1134 = vpop.permute.xlu0 %1133
        %1137 = vset.pattern.permute.xlu0 0
        %1138 = vperm.xlu0 %1137, %v825
        %v1139 = vpop.permute.xlu0 %1138
        %1142 = vset.pattern.permute.xlu0 0
        %1143 = vperm.xlu0 %1142, %v827
        %v1144 = vpop.permute.xlu0 %1143
        %1147 = vset.pattern.permute.xlu0 0
        %1148 = vperm.xlu0 %1147, %v829
        %v1149 = vpop.permute.xlu0 %1148
        %v1151 = vmul.f32 %v1074, %v1055
        %v1152 = vmul.f32 %v1079, %v1056
        %v1153 = vmul.f32 %v1084, %v1057
        %v1154 = vmul.f32 %v1089, %v1058
        %v1155 = vmul.f32 %v1094, %v1059
        %v1156 = vmul.f32 %v1099, %v1060
        %v1157 = vmul.f32 %v1104, %v1061
        %v1158 = vmul.f32 %v1109, %v1062
        %v1159 = vmul.f32 %v1114, %v1063
        %v1160 = vmul.f32 %v1119, %v1064
        %v1161 = vmul.f32 %v1124, %v1065
        %v1162 = vmul.f32 %v1129, %v1066
        %v1163 = vmul.f32 %v1134, %v1067
        %v1164 = vmul.f32 %v1139, %v1068
        %v1165 = vmul.f32 %v1144, %v1069
        %v1166 = vmul.f32 %v1149, %v1070
        %v1167 = vpack.c.bf16 %v929, %v927
        %v1168 = vpack.c.bf16 %v933, %v931
        %v1169 = vpack.c.bf16 %v937, %v935
        %v1170 = vpack.c.bf16 %v941, %v939
        %v1171 = vpack.c.bf16 %v945, %v943
        %v1172 = vpack.c.bf16 %v949, %v947
        %v1173 = vpack.c.bf16 %v953, %v951
        %v1174 = vpack.c.bf16 %v957, %v955
        %v1175 = vld [vmem:[%s467] sm:$0xf]
        %v1176 = vld [vmem:[%s467 + $0x4] sm:$0xf]
        %v1177 = vld [vmem:[%s467 + $0x8] sm:$0xf]
        %v1178 = vld [vmem:[%s467 + $0xc] sm:$0xf]
        %v1179 = vld [vmem:[%s467 + $0x10] sm:$0xf]
        %v1180 = vld [vmem:[%s467 + $0x14] sm:$0xf]
        %v1181 = vld [vmem:[%s467 + $0x18] sm:$0xf]
        %v1182 = vld [vmem:[%s467 + $0x1c] sm:$0xf]
        %v1183 = vld [vmem:[%s467 + $0x20] sm:$0xf]
        %v1184 = vld [vmem:[%s467 + $0x24] sm:$0xf]
        %v1185 = vld [vmem:[%s467 + $0x28] sm:$0xf]
        %v1186 = vld [vmem:[%s467 + $0x2c] sm:$0xf]
        %v1187 = vld [vmem:[%s467 + $0x30] sm:$0xf]
        %v1188 = vld [vmem:[%s467 + $0x34] sm:$0xf]
        %v1189 = vld [vmem:[%s467 + $0x38] sm:$0xf]
        %v1190 = vld [vmem:[%s467 + $0x3c] sm:$0xf]
        %v1207 = vunpack.c.l.b16 %v1175
        %v1208 = vunpack.c.l.b16 %v1176
        %v1209 = vunpack.c.l.b16 %v1177
        %v1210 = vunpack.c.l.b16 %v1178
        %v1211 = vunpack.c.l.b16 %v1179
        %v1212 = vunpack.c.l.b16 %v1180
        %v1213 = vunpack.c.l.b16 %v1181
        %v1214 = vunpack.c.l.b16 %v1182
        %v1215 = vunpack.c.l.b16 %v1183
        %v1216 = vunpack.c.l.b16 %v1184
        %v1217 = vunpack.c.l.b16 %v1185
        %v1218 = vunpack.c.l.b16 %v1186
        %v1219 = vunpack.c.l.b16 %v1187
        %v1220 = vunpack.c.l.b16 %v1188
        %v1221 = vunpack.c.l.b16 %v1189
        %v1222 = vunpack.c.l.b16 %v1190
        %v1223 = vpack.c.b16 %v1208, %v1207
        %v1224 = vpack.c.b16 %v1210, %v1209
        %v1225 = vpack.c.b16 %v1212, %v1211
        %v1226 = vpack.c.b16 %v1214, %v1213
        %v1227 = vpack.c.b16 %v1216, %v1215
        %v1228 = vpack.c.b16 %v1218, %v1217
        %v1229 = vpack.c.b16 %v1220, %v1219
        %v1230 = vpack.c.b16 %v1222, %v1221
        %1239 = vmatprep.subr.bf16.mxu0 0
        %1240 = vmatpush1.bf16.msra.mxu0 %v1230
        %1241 = vmatprep.subr.bf16.mxu0 0
        %1242 = vmatpush1.bf16.msra.mxu0 %v1229
        %1243 = vmatprep.subr.bf16.mxu0 0
        %1244 = vmatpush1.bf16.msra.mxu0 %v1228
        %1245 = vmatprep.subr.bf16.mxu0 0
        %1246 = vmatpush1.bf16.msra.mxu0 %v1227
        %1247 = vmatprep.subr.bf16.mxu0 0
        %1248 = vmatpush1.bf16.msra.mxu0 %v1226
        %1249 = vmatprep.subr.bf16.mxu0 0
        %1250 = vmatpush1.bf16.msra.mxu0 %v1225
        %1251 = vmatprep.subr.bf16.mxu0 0
        %1252 = vmatpush1.bf16.msra.mxu0 %v1224
        %1253 = vmatprep.subr.bf16.mxu0 0
        %1254 = vmatpush1.bf16.msra.mxu0 %v1223
        %1255 = vmatprep.subr.bf16.mxu0 0
        %1256 = vmatpush2.bf16.msra.mxu0 0
        %1257 = vmatprep.subr.bf16.mxu0 0
        %1258 = vmatpush2.bf16.msra.mxu0 0
        %1259 = vmatprep.subr.bf16.mxu0 0
        %1260 = vmatpush2.bf16.msra.mxu0 0
        %1261 = vmatprep.subr.bf16.mxu0 0
        %1262 = vmatpush2.bf16.msra.mxu0 0
        %1263 = vmatprep.subr.bf16.mxu0 0
        %1264 = vmatpush2.bf16.msra.mxu0 0
        %1265 = vmatprep.subr.bf16.mxu0 0
        %1266 = vmatpush2.bf16.msra.mxu0 0
        %1267 = vmatprep.subr.bf16.mxu0 0
        %1268 = vmatpush2.bf16.msra.mxu0 0
        %1269 = vmatprep.subr.bf16.mxu0 0
        %1270 = vmatpush2.bf16.msra.mxu0 0
        %1271 = vmatprep.mubr.bf16.mxu0 0
        %1272 = vmatmul.mubr.bf16.gmra.mxu0 %v1167
        %v1273 = vpop.f32.mrf.mxu0
        %v1274 = vadd.f32 0.0, %v1273
        %v1275 = vpop.f32.mrf.mxu0
        %v1276 = vpop.f32.mrf.mxu0
        %v1277 = vadd.f32 0.0, %v1276
        %v1278 = vpop.f32.mrf.mxu0
        %1279 = vmatprep.mubr.bf16.mxu0 0
        %1280 = vmatmul.mubr.bf16.gmra.mxu0 %v1168
        %v1281 = vpop.f32.mrf.mxu0
        %v1282 = vadd.f32 0.0, %v1281
        %v1283 = vpop.f32.mrf.mxu0
        %v1284 = vpop.f32.mrf.mxu0
        %v1285 = vadd.f32 0.0, %v1284
        %v1286 = vpop.f32.mrf.mxu0
        %1287 = vmatprep.mubr.bf16.mxu0 0
        %1288 = vmatmul.mubr.bf16.gmra.mxu0 %v1169
        %v1289 = vpop.f32.mrf.mxu0
        %v1290 = vadd.f32 0.0, %v1289
        %v1291 = vpop.f32.mrf.mxu0
        %v1292 = vpop.f32.mrf.mxu0
        %v1293 = vadd.f32 0.0, %v1292
        %v1294 = vpop.f32.mrf.mxu0
        %1295 = vmatprep.mubr.bf16.mxu0 0
        %1296 = vmatmul.mubr.bf16.gmra.mxu0 %v1170
        %v1297 = vpop.f32.mrf.mxu0
        %v1298 = vadd.f32 0.0, %v1297
        %v1299 = vpop.f32.mrf.mxu0
        %v1300 = vpop.f32.mrf.mxu0
        %v1301 = vadd.f32 0.0, %v1300
        %v1302 = vpop.f32.mrf.mxu0
        %1303 = vmatprep.mubr.bf16.mxu0 0
        %1304 = vmatmul.mubr.bf16.gmra.mxu0 %v1171
        %v1305 = vpop.f32.mrf.mxu0
        %v1306 = vadd.f32 0.0, %v1305
        %v1307 = vpop.f32.mrf.mxu0
        %v1308 = vpop.f32.mrf.mxu0
        %v1309 = vadd.f32 0.0, %v1308
        %v1310 = vpop.f32.mrf.mxu0
        %1311 = vmatprep.mubr.bf16.mxu0 0
        %1312 = vmatmul.mubr.bf16.gmra.mxu0 %v1172
        %v1313 = vpop.f32.mrf.mxu0
        %v1314 = vadd.f32 0.0, %v1313
        %v1315 = vpop.f32.mrf.mxu0
        %v1316 = vpop.f32.mrf.mxu0
        %v1317 = vadd.f32 0.0, %v1316
        %v1318 = vpop.f32.mrf.mxu0
        %1319 = vmatprep.mubr.bf16.mxu0 0
        %1320 = vmatmul.mubr.bf16.gmra.mxu0 %v1173
        %v1321 = vpop.f32.mrf.mxu0
        %v1322 = vadd.f32 0.0, %v1321
        %v1323 = vpop.f32.mrf.mxu0
        %v1324 = vpop.f32.mrf.mxu0
        %v1325 = vadd.f32 0.0, %v1324
        %v1326 = vpop.f32.mrf.mxu0
        %1327 = vmatprep.mubr.bf16.mxu0 0
        %1328 = vmatmul.mubr.bf16.gmra.mxu0 %v1174
        %v1329 = vpop.f32.mrf.mxu0
        %v1330 = vadd.f32 0.0, %v1329
        %v1331 = vpop.f32.mrf.mxu0
        %v1332 = vpop.f32.mrf.mxu0
        %v1333 = vadd.f32 0.0, %v1332
        %v1334 = vpop.f32.mrf.mxu0
        %1335 = vdwg.mxu0
        %v1336 = vadd.f32 %v1151, %v1274
        %v1337 = vadd.f32 %v1152, %v1277
        %v1338 = vadd.f32 %v1153, %v1282
        %v1339 = vadd.f32 %v1154, %v1285
        %v1340 = vadd.f32 %v1155, %v1290
        %v1341 = vadd.f32 %v1156, %v1293
        %v1342 = vadd.f32 %v1157, %v1298
        %v1343 = vadd.f32 %v1158, %v1301
        %v1344 = vadd.f32 %v1159, %v1306
        %v1345 = vadd.f32 %v1160, %v1309
        %v1346 = vadd.f32 %v1161, %v1314
        %v1347 = vadd.f32 %v1162, %v1317
        %v1348 = vadd.f32 %v1163, %v1322
        %v1349 = vadd.f32 %v1164, %v1325
        %v1350 = vadd.f32 %v1165, %v1330
        %v1351 = vadd.f32 %v1166, %v1333
        %1352 = vst.msk [vmem:[#allocation4] sm:$0xff] %vm596, %v1336
        %1353 = vst.msk [vmem:[#allocation4 + $0x8] sm:$0xff] %vm596, %v1337
        %1354 = vst.msk [vmem:[#allocation4 + $0x10] sm:$0xff] %vm596, %v1338
        %1355 = vst.msk [vmem:[#allocation4 + $0x18] sm:$0xff] %vm596, %v1339
        %1356 = vst.msk [vmem:[#allocation4 + $0x20] sm:$0xff] %vm596, %v1340
        %1357 = vst.msk [vmem:[#allocation4 + $0x28] sm:$0xff] %vm596, %v1341
        %1358 = vst.msk [vmem:[#allocation4 + $0x30] sm:$0xff] %vm596, %v1342
        %1359 = vst.msk [vmem:[#allocation4 + $0x38] sm:$0xff] %vm596, %v1343
        %1360 = vst.msk [vmem:[#allocation4 + $0x40] sm:$0xff] %vm596, %v1344
        %1361 = vst.msk [vmem:[#allocation4 + $0x48] sm:$0xff] %vm596, %v1345
        %1362 = vst.msk [vmem:[#allocation4 + $0x50] sm:$0xff] %vm596, %v1346
        %1363 = vst.msk [vmem:[#allocation4 + $0x58] sm:$0xff] %vm596, %v1347
        %1364 = vst.msk [vmem:[#allocation4 + $0x60] sm:$0xff] %vm596, %v1348
        %1365 = vst.msk [vmem:[#allocation4 + $0x68] sm:$0xff] %vm596, %v1349
        %1366 = vst.msk [vmem:[#allocation4 + $0x70] sm:$0xff] %vm596, %v1350
        %1367 = vst.msk [vmem:[#allocation4 + $0x78] sm:$0xff] %vm596, %v1351
        %1368 = vst.msk [vmem:[#allocation2] sm:$0xff] %vm1038, %v766
        %1369 = vst.msk [vmem:[#allocation2 + $0x8] sm:$0xff] %vm1038, %v767
        %1370 = vst.msk [vmem:[#allocation2 + $0x10] sm:$0xff] %vm1038, %v768
        %1371 = vst.msk [vmem:[#allocation2 + $0x18] sm:$0xff] %vm1038, %v769
        %1372 = vst.msk [vmem:[#allocation2 + $0x20] sm:$0xff] %vm1038, %v770
        %1373 = vst.msk [vmem:[#allocation2 + $0x28] sm:$0xff] %vm1038, %v771
        %1374 = vst.msk [vmem:[#allocation2 + $0x30] sm:$0xff] %vm1038, %v772
        %1375 = vst.msk [vmem:[#allocation2 + $0x38] sm:$0xff] %vm1038, %v773
        %1376 = vst.msk [vmem:[#allocation2 + $0x40] sm:$0xff] %vm1038, %v774
        %1377 = vst.msk [vmem:[#allocation2 + $0x48] sm:$0xff] %vm1038, %v775
        %1378 = vst.msk [vmem:[#allocation2 + $0x50] sm:$0xff] %vm1038, %v776
        %1379 = vst.msk [vmem:[#allocation2 + $0x58] sm:$0xff] %vm1038, %v777
        %1380 = vst.msk [vmem:[#allocation2 + $0x60] sm:$0xff] %vm1038, %v778
        %1381 = vst.msk [vmem:[#allocation2 + $0x68] sm:$0xff] %vm1038, %v779
        %1382 = vst.msk [vmem:[#allocation2 + $0x70] sm:$0xff] %vm1038, %v780
        %1383 = vst.msk [vmem:[#allocation2 + $0x78] sm:$0xff] %vm1038, %v781
        %p1384 = scmp.eq.s32.totalorder %s24, 1
        // Predicated region
        $region128: #{vae_attention_block.3} parent=114 // pred_check
          %p1385 = pneg %p1384
        $region129: #{vae_attention_block.3} parent=114 // pred_check_branch
          %1387 = sbr.rel (%p1385) target = $region131
        $region130: #{vae_attention_block.3} parent=114 // pred_region
          %v1388 = vld [vmem:[#allocation4] sm:$0xff]
          %v1389 = vld [vmem:[#allocation4 + $0x8] sm:$0xff]
          %v1390 = vld [vmem:[#allocation4 + $0x10] sm:$0xff]
          %v1391 = vld [vmem:[#allocation4 + $0x18] sm:$0xff]
          %v1392 = vld [vmem:[#allocation4 + $0x20] sm:$0xff]
          %v1393 = vld [vmem:[#allocation4 + $0x28] sm:$0xff]
          %v1394 = vld [vmem:[#allocation4 + $0x30] sm:$0xff]
          %v1395 = vld [vmem:[#allocation4 + $0x38] sm:$0xff]
          %v1396 = vld [vmem:[#allocation4 + $0x40] sm:$0xff]
          %v1397 = vld [vmem:[#allocation4 + $0x48] sm:$0xff]
          %v1398 = vld [vmem:[#allocation4 + $0x50] sm:$0xff]
          %v1399 = vld [vmem:[#allocation4 + $0x58] sm:$0xff]
          %v1400 = vld [vmem:[#allocation4 + $0x60] sm:$0xff]
          %v1401 = vld [vmem:[#allocation4 + $0x68] sm:$0xff]
          %v1402 = vld [vmem:[#allocation4 + $0x70] sm:$0xff]
          %v1403 = vld [vmem:[#allocation4 + $0x78] sm:$0xff]
          %v1404 = vld [vmem:[#allocation3] sm:$0xff]
          %v1405 = vld [vmem:[#allocation3 + $0x8] sm:$0xff]
          %v1406 = vld [vmem:[#allocation3 + $0x10] sm:$0xff]
          %v1407 = vld [vmem:[#allocation3 + $0x18] sm:$0xff]
          %v1408 = vld [vmem:[#allocation3 + $0x20] sm:$0xff]
          %v1409 = vld [vmem:[#allocation3 + $0x28] sm:$0xff]
          %v1410 = vld [vmem:[#allocation3 + $0x30] sm:$0xff]
          %v1411 = vld [vmem:[#allocation3 + $0x38] sm:$0xff]
          %v1412 = vld [vmem:[#allocation3 + $0x40] sm:$0xff]
          %v1413 = vld [vmem:[#allocation3 + $0x48] sm:$0xff]
          %v1414 = vld [vmem:[#allocation3 + $0x50] sm:$0xff]
          %v1415 = vld [vmem:[#allocation3 + $0x58] sm:$0xff]
          %v1416 = vld [vmem:[#allocation3 + $0x60] sm:$0xff]
          %v1417 = vld [vmem:[#allocation3 + $0x68] sm:$0xff]
          %v1418 = vld [vmem:[#allocation3 + $0x70] sm:$0xff]
          %v1419 = vld [vmem:[#allocation3 + $0x78] sm:$0xff]
          %1421 = vset.pattern.permute.xlu0 0
          %1422 = vperm.xlu0 %1421, %v1404
          %v1423 = vpop.permute.xlu0 %1422
          %1426 = vset.pattern.permute.xlu0 0
          %1427 = vperm.xlu0 %1426, %v1405
          %v1428 = vpop.permute.xlu0 %1427
          %1431 = vset.pattern.permute.xlu0 0
          %1432 = vperm.xlu0 %1431, %v1406
          %v1433 = vpop.permute.xlu0 %1432
          %1436 = vset.pattern.permute.xlu0 0
          %1437 = vperm.xlu0 %1436, %v1407
          %v1438 = vpop.permute.xlu0 %1437
          %1441 = vset.pattern.permute.xlu0 0
          %1442 = vperm.xlu0 %1441, %v1408
          %v1443 = vpop.permute.xlu0 %1442
          %1446 = vset.pattern.permute.xlu0 0
          %1447 = vperm.xlu0 %1446, %v1409
          %v1448 = vpop.permute.xlu0 %1447
          %1451 = vset.pattern.permute.xlu0 0
          %1452 = vperm.xlu0 %1451, %v1410
          %v1453 = vpop.permute.xlu0 %1452
          %1456 = vset.pattern.permute.xlu0 0
          %1457 = vperm.xlu0 %1456, %v1411
          %v1458 = vpop.permute.xlu0 %1457
          %1461 = vset.pattern.permute.xlu0 0
          %1462 = vperm.xlu0 %1461, %v1412
          %v1463 = vpop.permute.xlu0 %1462
          %1466 = vset.pattern.permute.xlu0 0
          %1467 = vperm.xlu0 %1466, %v1413
          %v1468 = vpop.permute.xlu0 %1467
          %1471 = vset.pattern.permute.xlu0 0
          %1472 = vperm.xlu0 %1471, %v1414
          %v1473 = vpop.permute.xlu0 %1472
          %1476 = vset.pattern.permute.xlu0 0
          %1477 = vperm.xlu0 %1476, %v1415
          %v1478 = vpop.permute.xlu0 %1477
          %1481 = vset.pattern.permute.xlu0 0
          %1482 = vperm.xlu0 %1481, %v1416
          %v1483 = vpop.permute.xlu0 %1482
          %1486 = vset.pattern.permute.xlu0 0
          %1487 = vperm.xlu0 %1486, %v1417
          %v1488 = vpop.permute.xlu0 %1487
          %1491 = vset.pattern.permute.xlu0 0
          %1492 = vperm.xlu0 %1491, %v1418
          %v1493 = vpop.permute.xlu0 %1492
          %1496 = vset.pattern.permute.xlu0 0
          %1497 = vperm.xlu0 %1496, %v1419
          %v1498 = vpop.permute.xlu0 %1497
          %v1500 = vrcp.pop %v1423
          %v1501 = vmul.f32 %v1388, %v1500
          %v1502 = vrcp.pop %v1428
          %v1503 = vmul.f32 %v1389, %v1502
          %v1504 = vrcp.pop %v1433
          %v1505 = vmul.f32 %v1390, %v1504
          %v1506 = vrcp.pop %v1438
          %v1507 = vmul.f32 %v1391, %v1506
          %v1508 = vrcp.pop %v1443
          %v1509 = vmul.f32 %v1392, %v1508
          %v1510 = vrcp.pop %v1448
          %v1511 = vmul.f32 %v1393, %v1510
          %v1512 = vrcp.pop %v1453
          %v1513 = vmul.f32 %v1394, %v1512
          %v1514 = vrcp.pop %v1458
          %v1515 = vmul.f32 %v1395, %v1514
          %v1516 = vrcp.pop %v1463
          %v1517 = vmul.f32 %v1396, %v1516
          %v1518 = vrcp.pop %v1468
          %v1519 = vmul.f32 %v1397, %v1518
          %v1520 = vrcp.pop %v1473
          %v1521 = vmul.f32 %v1398, %v1520
          %v1522 = vrcp.pop %v1478
          %v1523 = vmul.f32 %v1399, %v1522
          %v1524 = vrcp.pop %v1483
          %v1525 = vmul.f32 %v1400, %v1524
          %v1526 = vrcp.pop %v1488
          %v1527 = vmul.f32 %v1401, %v1526
          %v1528 = vrcp.pop %v1493
          %v1529 = vmul.f32 %v1402, %v1528
          %v1530 = vrcp.pop %v1498
          %v1531 = vmul.f32 %v1403, %v1530
          %v1532 = vpack.c.bf16 %v1503, %v1501
          %v1533 = vpack.c.bf16 %v1507, %v1505
          %v1534 = vpack.c.bf16 %v1511, %v1509
          %v1535 = vpack.c.bf16 %v1515, %v1513
          %v1536 = vpack.c.bf16 %v1519, %v1517
          %v1537 = vpack.c.bf16 %v1523, %v1521
          %v1538 = vpack.c.bf16 %v1527, %v1525
          %v1539 = vpack.c.bf16 %v1531, %v1529
          %v1540 = vld [vmem:[%s4] sm:$0xf]
          %v1541 = vld [vmem:[%s4 + $0x4] sm:$0xf]
          %v1542 = vld [vmem:[%s4 + $0x8] sm:$0xf]
          %v1543 = vld [vmem:[%s4 + $0xc] sm:$0xf]
          %v1544 = vld [vmem:[%s5] sm:$0xff]
          %v1545 = vld [vmem:[%s5 + $0x8] sm:$0xff]
          %v1546 = vld [vmem:[%s5 + $0x10] sm:$0xff]
          %v1547 = vld [vmem:[%s5 + $0x18] sm:$0xff]
          %1549 = vset.pattern.permute.xlu0 0
          %1550 = vperm.xlu0 %1549, %v1544
          %v1551 = vpop.permute.xlu0 %1550
          %1554 = vset.pattern.permute.xlu0 0
          %1555 = vperm.xlu0 %1554, %v1545
          %v1556 = vpop.permute.xlu0 %1555
          %1559 = vset.pattern.permute.xlu0 0
          %1560 = vperm.xlu0 %1559, %v1546
          %v1561 = vpop.permute.xlu0 %1560
          %1564 = vset.pattern.permute.xlu0 0
          %1565 = vperm.xlu0 %1564, %v1547
          %v1566 = vpop.permute.xlu0 %1565
          %v1572 = vunpack.c.l.b16 %v1540
          %v1573 = vunpack.c.l.b16 %v1541
          %v1574 = vunpack.c.l.b16 %v1542
          %v1575 = vunpack.c.l.b16 %v1543
          %v1576 = vpack.c.b16 %v1573, %v1572
          %v1577 = vpack.c.b16 %v1575, %v1574
          %1580 = vxpose.xlu0.c.b16.start [1/8] %v1576, 128
          %1581 = vxpose.xlu0.c.b16.cont [2/8] %v1577, 128
          %1582 = vxpose.xlu0.c.b16.cont [3/8] 0, 128
          %1583 = vxpose.xlu0.c.b16.cont [4/8] 0, 128
          %1584 = vxpose.xlu0.c.b16.cont [5/8] 0, 128
          %1585 = vxpose.xlu0.c.b16.cont [6/8] 0, 128
          %1586 = vxpose.xlu0.c.b16.cont [7/8] 0, 128
          %1587 = vxpose.xlu0.c.b16.end [8/8] 0, 128
          %v1588 = vpop.trf.xlu0
          %v1589 = vpop.trf.xlu0
          %v1590 = vpop.trf.xlu0
          %v1591 = vpop.trf.xlu0
          %v1592 = vpop.trf.xlu0
          %v1593 = vpop.trf.xlu0
          %v1594 = vpop.trf.xlu0
          %v1595 = vpop.trf.xlu0
          %v1597 = vsel %vm596, %v1588, 0
          %v1600 = vsel %vm596, %v1589, 0
          %v1603 = vsel %vm596, %v1532, 0
          %v1606 = vsel %vm596, %v1533, 0
          %v1609 = vsel %vm596, %v1534, 0
          %v1612 = vsel %vm596, %v1535, 0
          %v1615 = vsel %vm596, %v1536, 0
          %v1618 = vsel %vm596, %v1537, 0
          %v1621 = vsel %vm596, %v1538, 0
          %v1624 = vsel %vm596, %v1539, 0
          %1626 = vmatprep.subr.bf16.mxu0 0
          %1627 = vmatpush1.bf16.xpose.msra.mxu0 %v1624
          %1628 = vmatprep.subr.bf16.mxu0 0
          %1629 = vmatpush1.bf16.xpose.msra.mxu0 %v1621
          %1630 = vmatprep.subr.bf16.mxu0 0
          %1631 = vmatpush1.bf16.xpose.msra.mxu0 %v1618
          %1632 = vmatprep.subr.bf16.mxu0 0
          %1633 = vmatpush1.bf16.xpose.msra.mxu0 %v1615
          %1634 = vmatprep.subr.bf16.mxu0 0
          %1635 = vmatpush1.bf16.xpose.msra.mxu0 %v1612
          %1636 = vmatprep.subr.bf16.mxu0 0
          %1637 = vmatpush1.bf16.xpose.msra.mxu0 %v1609
          %1638 = vmatprep.subr.bf16.mxu0 0
          %1639 = vmatpush1.bf16.xpose.msra.mxu0 %v1606
          %1640 = vmatprep.subr.bf16.mxu0 0
          %1641 = vmatpush1.bf16.xpose.msra.mxu0 %v1603
          %1642 = vmatprep.subr.bf16.mxu0 0
          %1643 = vmatpush2.bf16.xpose.msra.mxu0 0
          %1644 = vmatprep.subr.bf16.mxu0 0
          %1645 = vmatpush2.bf16.xpose.msra.mxu0 0
          %1646 = vmatprep.subr.bf16.mxu0 0
          %1647 = vmatpush2.bf16.xpose.msra.mxu0 0
          %1648 = vmatprep.subr.bf16.mxu0 0
          %1649 = vmatpush2.bf16.xpose.msra.mxu0 0
          %1650 = vmatprep.subr.bf16.mxu0 0
          %1651 = vmatpush2.bf16.xpose.msra.mxu0 0
          %1652 = vmatprep.subr.bf16.mxu0 0
          %1653 = vmatpush2.bf16.xpose.msra.mxu0 0
          %1654 = vmatprep.subr.bf16.mxu0 0
          %1655 = vmatpush2.bf16.xpose.msra.mxu0 0
          %1656 = vmatprep.subr.bf16.mxu0 0
          %1657 = vmatpush2.bf16.xpose.msra.mxu0 0
          %1658 = vmatprep.mubr.bf16.mxu0 0
          %1659 = vmatmul.mubr.bf16.gmra.mxu0 %v1597
          %v1660 = vpop.f32.mrf.mxu0
          %v1661 = vadd.f32 %v1551, %v1660
          %v1662 = vpop.f32.mrf.mxu0
          %v1663 = vpop.f32.mrf.mxu0
          %v1664 = vadd.f32 %v1556, %v1663
          %v1665 = vpop.f32.mrf.mxu0
          %1666 = vmatprep.mubr.bf16.mxu0 0
          %1667 = vmatmul.mubr.bf16.gmra.mxu0 %v1600
          %v1668 = vpop.f32.mrf.mxu0
          %v1669 = vadd.f32 %v1561, %v1668
          %v1670 = vpop.f32.mrf.mxu0
          %v1671 = vpop.f32.mrf.mxu0
          %v1672 = vadd.f32 %v1566, %v1671
          %v1673 = vpop.f32.mrf.mxu0
          %1674 = vdwg.mxu0
          %v1675 = vld [vmem:[%s401] sm:$0xff]
          %v1676 = vld [vmem:[%s401 + $0x8] sm:$0xff]
          %v1677 = vld [vmem:[%s401 + $0x10] sm:$0xff]
          %v1678 = vld [vmem:[%s401 + $0x18] sm:$0xff]
          %v1679 = vadd.f32 %v1661, %v1675
          %v1680 = vadd.f32 %v1664, %v1676
          %v1681 = vadd.f32 %v1669, %v1677
          %v1682 = vadd.f32 %v1672, %v1678
          %1683 = vst [vmem:[%s448] sm:$0xff] %v1679
          %1684 = vst [vmem:[%s448 + $0x8] sm:$0xff] %v1680
          %1685 = vst [vmem:[%s448 + $0x10] sm:$0xff] %v1681
          %1686 = vst [vmem:[%s448 + $0x18] sm:$0xff] %v1682
        $region131: #{vae_attention_block.3} parent=114 // pred_fallthru
          _
        %s1687 = sand.u32 %s200, 1
        %s1688 = sand.u32 %s200, 1
        %s1689 = smul.addr %s1688, 32
        %s1690 = scalar_lea.vmem [#allocation7], %s1689
        // Predicated region
        $region132: #{vae_attention_block.3} parent=114 // pred_check
          %p1691 = pneg %p210
        $region133: #{vae_attention_block.3} parent=114 // pred_check_branch
          %1693 = sbr.rel (%p1691) target = $region135
        $region134: #{vae_attention_block.3} parent=114 // pred_region
          %s1694 = smul.addr %s22, 8
          %s1695 = sadd.s32 %s23, %s1694
          %s1696 = smul.addr %s1695, 8
          %s1697 = scalar_lea.vmem %s6, %s1696
          // Predicated region
          $region136: #{vae_attention_block.3} parent=134 // pred_check
            _
          $region137: #{vae_attention_block.3} parent=134 // pred_check_branch
            %1699 = sbr.rel (0) target = $region139
          $region138: #{vae_attention_block.3} parent=134 // pred_region
            // Predicated region
            $region140: #{vae_attention_block.3} parent=138 // pred_check
              _
            $region141: #{vae_attention_block.3} parent=138 // pred_check_branch
              %1701 = sbr.rel (0) target = $region143
            $region142: #{vae_attention_block.3} parent=138 // pred_region
              // Predicated region
              $region155: #{vae_attention_block.3} parent=142 // pred_check
                _
              $region156: #{vae_attention_block.3} parent=142 // pred_check_branch
                %1723 = sbr.rel (0) target = $region158
              $region157: #{vae_attention_block.3} parent=142 // pred_region
                loop: start=0, step=1, limit=1
                $region159: #{vae_attention_block.3} parent=157 // loop_pre_header
                  _
                $region160: #{vae_attention_block.3} parent=157 // loop_header
                  %s1725 = sphi 0, %s1729
                  %p1726 = scmp.ge.s32.totalorder %s1725, 1
                  %s1730 = sphi %s1690, %s1690
                  %s1731 = sphi %s1697, %s1697
                $region161: #{vae_attention_block.3} parent=157 // loop_header_branch
                  %1728 = sbr.rel (%p1726) target = $region165
                $region162: #{vae_attention_block.3} parent=157 // loop_body
                  %v1732 = vld [vmem:[%s1730] sm:$0xff]
                  %1733 = vst [vmem:[%s1731] sm:$0xff] %v1732
                  %v1734 = vld [vmem:[%s1730 + $0x8] sm:$0xff]
                  %1735 = vst [vmem:[%s1731 + $0x10] sm:$0xff] %v1734
                  %v1736 = vld [vmem:[%s1730 + $0x10] sm:$0xff]
                  %1737 = vst [vmem:[%s1731 + $0x20] sm:$0xff] %v1736
                  %v1738 = vld [vmem:[%s1730 + $0x18] sm:$0xff]
                  %1739 = vst [vmem:[%s1731 + $0x30] sm:$0xff] %v1738
                $region163: #{vae_attention_block.3} parent=157 // loop_footer
                  %s1729 = sadd.s32 1, %s1725
                $region164: #{vae_attention_block.3} parent=157 // loop_footer_branch
                  %1724 = sbr.rel target = $region160
                $region165: #{vae_attention_block.3} parent=157 // loop_exit
                  _
              $region158: #{vae_attention_block.3} parent=142 // pred_fallthru
                _
              // Predicated region
              $region166: #{vae_attention_block.3} parent=142 // pred_check
                _
              $region167: #{vae_attention_block.3} parent=142 // pred_check_branch
                %1741 = sbr.rel target = $region169
              $region168: #{vae_attention_block.3} parent=142 // pred_region
                _
              $region169: #{vae_attention_block.3} parent=142 // pred_fallthru
                _
            $region143: #{vae_attention_block.3} parent=138 // pred_fallthru
              _
            // Predicated region
            $region144: #{vae_attention_block.3} parent=138 // pred_check
              _
            $region145: #{vae_attention_block.3} parent=138 // pred_check_branch
              %1703 = sbr.rel target = $region147
            $region146: #{vae_attention_block.3} parent=138 // pred_region
              %s1705 = ssub.s32 256, 1
              loop: start=0, step=1, limit=1
              $region148: #{vae_attention_block.3} parent=146 // loop_pre_header
                _
              $region149: #{vae_attention_block.3} parent=146 // loop_header
                %s1707 = sphi 0, %s1711
                %p1708 = scmp.ge.s32.totalorder %s1707, 1
                %s1712 = sphi %s1690, %s1690
                %s1713 = sphi %s1697, %s1697
              $region150: #{vae_attention_block.3} parent=146 // loop_header_branch
                %1710 = sbr.rel (%p1708) target = $region154
              $region151: #{vae_attention_block.3} parent=146 // loop_body
                %v1714 = vld [vmem:[%s1712] sm:%s1705]
                %1715 = vst [vmem:[%s1713] sm:%s1705] %v1714
                %v1716 = vld [vmem:[%s1712 + $0x8] sm:%s1705]
                %1717 = vst [vmem:[%s1713 + $0x10] sm:%s1705] %v1716
                %v1718 = vld [vmem:[%s1712 + $0x10] sm:%s1705]
                %1719 = vst [vmem:[%s1713 + $0x20] sm:%s1705] %v1718
                %v1720 = vld [vmem:[%s1712 + $0x18] sm:%s1705]
                %1721 = vst [vmem:[%s1713 + $0x30] sm:%s1705] %v1720
              $region152: #{vae_attention_block.3} parent=146 // loop_footer
                %s1711 = sadd.s32 1, %s1707
              $region153: #{vae_attention_block.3} parent=146 // loop_footer_branch
                %1706 = sbr.rel target = $region149
              $region154: #{vae_attention_block.3} parent=146 // loop_exit
                _
            $region147: #{vae_attention_block.3} parent=138 // pred_fallthru
              _
          $region139: #{vae_attention_block.3} parent=134 // pred_fallthru
            _
          %1742 = vnop
        $region135: #{vae_attention_block.3} parent=114 // pred_fallthru
          _
      $region115: #{vae_attention_block.3} parent=5 // pred_fallthru
        _
      %p1743 = scmp.le.s32.totalorder 2, %s12
      // Predicated region
      $region170: #{vae_attention_block.3} parent=5 // pred_check
        %p1744 = pneg %p1743
      $region171: #{vae_attention_block.3} parent=5 // pred_check_branch
        %1746 = sbr.rel (%p1744) target = $region173
      $region172: #{vae_attention_block.3} parent=5 // pred_region
        %s1747 = ssub.s32 %s12, 2
        // Predicated region
        $region174: #{vae_attention_block.3} parent=172 // pred_check
          %p1748 = pneg %p216
        $region175: #{vae_attention_block.3} parent=172 // pred_check_branch
          %1750 = sbr.rel (%p1748) target = $region177
        $region176: #{vae_attention_block.3} parent=172 // pred_region
          %s1751 = sand.u32 %s201, 1
          %s1752 = sand.u32 %s201, 1
          %s1753 = smul.addr %s1752, 32
          %s1754 = scalar_lea.vmem [#allocation7], %s1753
        $region177: #{vae_attention_block.3} parent=172 // pred_fallthru
          _
      $region173: #{vae_attention_block.3} parent=5 // pred_fallthru
        _
    $region6: #{vae_attention_block.3} parent=1 // loop_footer
      %s16 = sadd.s32 1, %s12
    $region7: #{vae_attention_block.3} parent=1 // loop_footer_branch
      %11 = sbr.rel target = $region3
    $region8: #{vae_attention_block.3} parent=1 // loop_exit
      _

</llo_original>
